<compile_context>
chip_gen: v6e
topology: v6e:2x2x1
jax: 0.10.0
libtpu: 0.0.40
codegen_flags: <defaults>
</compile_context>

<pallas_src>
import functools

import jax
import jax.numpy as jnp
from jax.experimental import pallas as pl
from jax.experimental.pallas import tpu as pltpu


# ----------------------------------------------------------------------------
# Fused forward kernel (single grid step; everything VMEM resident)
# ----------------------------------------------------------------------------
def _sym_reg_fused_kernel(x_ref, a_ref, w1_ref, b1_ref, g1_ref, be1_ref,
                          w2_ref, b2_ref, g2_ref, be2_ref, wc_ref, bc_ref,
                          o_ref, *, eps):
    n = x_ref.shape[0]
    out_dim = o_ref.shape[1]

    def bn_block(z, gamma, beta):
        # Training-mode BatchNorm1d on one disjoint channel block:
        # batch stats over the node axis, biased variance (PyTorch semantics).
        mean = jnp.mean(z, axis=0, keepdims=True)
        var = jnp.mean((z - mean) ** 2, axis=0, keepdims=True)
        return (z - mean) * jax.lax.rsqrt(var + eps) * gamma + beta

    # ---- lin1 (bias-free) ---------------------------------------------------
    h1 = jnp.dot(x_ref[...], w1_ref[...], preferred_element_type=jnp.float32)

    # ---- 4x gconv + bias1 -> BN1 -> ReLU -> lin2, per block, accumulated ----
    b1 = b1_ref[...]
    h2 = jnp.zeros((n, out_dim), jnp.float32)
    for g in range(4):  # static unroll: 4 MXU matmul pairs, no concat
        xg = jnp.dot(a_ref[g], h1, preferred_element_type=jnp.float32) + b1
        xg = bn_block(xg, g1_ref[g], be1_ref[g])
        xg = jnp.maximum(xg, 0.0)                               # ReLU
        h2 = h2 + jnp.dot(xg, w2_ref[g], preferred_element_type=jnp.float32)

    # ---- 4x gconv + bias2 -> BN2 -> Conv1d(k=1), per block, accumulated -----
    b2 = b2_ref[...]
    out = jnp.zeros((n, out_dim), jnp.float32)
    for g in range(4):
        xg = jnp.dot(a_ref[g], h2, preferred_element_type=jnp.float32) + b2
        xg = bn_block(xg, g2_ref[g], be2_ref[g])
        out = out + jnp.dot(xg, wc_ref[g], preferred_element_type=jnp.float32)

    o_ref[...] = out + bc_ref[...]                              # Conv1d bias


def sym_reg_forward(params, x, a, eps=1e-5):
    """Fused SymRegLayer2BN_Qin2 forward.

    x: (N, input_dim) node features.
    a: (4, N, N) stacked dense symmetric-normalized adjacencies in the order
       [edge_in/in_w, edge_out/out_w, edge_Qin_in, edge_Qin_out].
    """
    N, Fin = x.shape
    nhid = params["W1_t"].shape[1]
    out_dim = params["W2_t"].shape[1]

    # Per-block parameter views matching the torch.cat channel layout
    # (channel k of the concat -> block g = k // width, channel c = k % width).
    w2 = params["W2_t"].reshape(4, nhid, out_dim)        # lin2 weight^T blocks
    wc = params["Wc_t"].reshape(4, out_dim, out_dim)     # Conv1d weight^T blocks
    g1 = params["gamma1"].reshape(4, 1, nhid)
    be1 = params["beta1"].reshape(4, 1, nhid)
    g2 = params["gamma2"].reshape(4, 1, out_dim)
    be2 = params["beta2"].reshape(4, 1, out_dim)

    kernel = functools.partial(_sym_reg_fused_kernel, eps=eps)
    return pl.pallas_call(
        kernel,
        out_shape=jax.ShapeDtypeStruct((N, out_dim), jnp.float32),
        grid=(1,),
        in_specs=[
            pl.BlockSpec((N, Fin), lambda i: (0, 0)),               # x
            pl.BlockSpec((4, N, N), lambda i: (0, 0, 0)),           # A stack
            pl.BlockSpec((Fin, nhid), lambda i: (0, 0)),            # W1^T
            pl.BlockSpec((1, nhid), lambda i: (0, 0)),              # bias1
            pl.BlockSpec((4, 1, nhid), lambda i: (0, 0, 0)),        # gamma1 blocks
            pl.BlockSpec((4, 1, nhid), lambda i: (0, 0, 0)),        # beta1 blocks
            pl.BlockSpec((4, nhid, out_dim), lambda i: (0, 0, 0)),  # W2^T blocks
            pl.BlockSpec((1, out_dim), lambda i: (0, 0)),           # bias2
            pl.BlockSpec((4, 1, out_dim), lambda i: (0, 0, 0)),     # gamma2 blocks
            pl.BlockSpec((4, 1, out_dim), lambda i: (0, 0, 0)),     # beta2 blocks
            pl.BlockSpec((4, out_dim, out_dim), lambda i: (0, 0, 0)),  # Conv^T blocks
            pl.BlockSpec((1, out_dim), lambda i: (0, 0)),           # Conv bias
        ],
        out_specs=pl.BlockSpec((N, out_dim), lambda i: (0, 0)),
        compiler_params=pltpu.CompilerParams(
            dimension_semantics=("arbitrary",)),
    )(x, a, params["W1_t"], params["bias1"], g1, be1,
      w2, params["bias2"], g2, be2, wc, params["bc"])


# ----------------------------------------------------------------------------
# Plain-JAX glue: dense gcn_norm (add_remaining_self_loops + symmetric norm)
# ----------------------------------------------------------------------------
def build_norm_adj(edge_index, edge_weight, num_nodes):
    """out[i] = sum_{edges j->i} d^{-1/2}[i] * w * d^{-1/2}[j] * x[j].

    Edges are assumed to contain no self loops; self loops with weight 1.0 are
    added (add_remaining_self_loops, fill_value=1.0)."""
    row, col = edge_index[0], edge_index[1]
    if edge_weight is None:
        edge_weight = jnp.ones((edge_index.shape[1],), jnp.float32)
    a = jnp.zeros((num_nodes, num_nodes), jnp.float32)
    a = a.at[col, row].add(edge_weight)               # A[target, source]
    a = a + jnp.eye(num_nodes, dtype=jnp.float32)     # self loops, fill=1.0
    deg = jnp.sum(a, axis=1)                          # scatter_add over col
    dinv = jnp.where(deg > 0.0, deg ** -0.5, 0.0)
    return dinv[:, None] * a * dinv[None, :]


# ----------------------------------------------------------------------------
# Pure-JAX reference (mirrors the PyTorch forward literally) for validation
# ----------------------------------------------------------------------------
def reference_forward(params, x, a, eps=1e-5):
    dot = functools.partial(jnp.dot, precision=jax.lax.Precision.HIGHEST)

    def bn(z, gamma, beta):
        mean = z.mean(0, keepdims=True)
        var = ((z - mean) ** 2).mean(0, keepdims=True)
        return (z - mean) / jnp.sqrt(var + eps) * gamma[None, :] + beta[None, :]

    h = dot(x, params["W1_t"])
    xc = jnp.concatenate([dot(a[g], h) + params["bias1"] for g in range(4)], -1)
    xc = jnp.maximum(bn(xc, params["gamma1"], params["beta1"]), 0.0)
    h2 = dot(xc, params["W2_t"])
    xc = jnp.concatenate([dot(a[g], h2) + params["bias2"] for g in range(4)], -1)
    xc = bn(xc, params["gamma2"], params["beta2"])
    return dot(xc, params["Wc_t"]) + params["bc"]


# ----------------------------------------------------------------------------
# Driver
# ----------------------------------------------------------------------------
if __name__ == "__main__":
    N, E = 64, 128                            # nodes, edges per edge set
    input_dim, nhid, out_dim = 16, 32, 8

    key = jax.random.PRNGKey(0)
    keys = jax.random.split(key, 16)

    x = jax.random.normal(keys[0], (N, input_dim), jnp.float32)

    def rand_edges(k):
        k1, k2 = jax.random.split(k)
        row = jax.random.randint(k1, (E,), 0, N)
        off = jax.random.randint(k2, (E,), 1, N)   # guarantees no self loops
        col = (row + off) % N
        return jnp.stack([row, col], axis=0)

    edge_in = rand_edges(keys[1])
    edge_out = rand_edges(keys[2])
    edge_qin_in = rand_edges(keys[3])
    edge_qin_out = rand_edges(keys[4])
    in_w = jax.random.uniform(keys[5], (E,), jnp.float32, 0.5, 1.5)
    out_w = jax.random.uniform(keys[6], (E,), jnp.float32, 0.5, 1.5)
    # NOTE: the PyTorch forward never uses its `edge_index` argument, only the
    # four edge sets below — so only these four adjacencies are built.

    a = jnp.stack([
        build_norm_adj(edge_in, in_w, N),          # gconv(x, edge_in, in_w)
        build_norm_adj(edge_out, out_w, N),        # gconv(x, edge_out, out_w)
        build_norm_adj(edge_qin_in, None, N),      # gconv(x, edge_Qin_in_tensor)
        build_norm_adj(edge_qin_out, None, N),     # gconv(x, edge_Qin_out_tensor)
    ], axis=0)

    # Deterministic synthetic parameters (shapes from SymRegLayer2BN_Qin2.__init__).
    s = 0.1
    params = {
        "W1_t": s * jax.random.normal(keys[7], (input_dim, nhid), jnp.float32),
        "W2_t": s * jax.random.normal(keys[8], (4 * nhid, out_dim), jnp.float32),
        "bias1": jnp.zeros((1, nhid), jnp.float32),
        "bias2": jnp.zeros((1, out_dim), jnp.float32),
        "gamma1": 1.0 + s * jax.random.normal(keys[9], (4 * nhid,), jnp.float32),
        "beta1": s * jax.random.normal(keys[10], (4 * nhid,), jnp.float32),
        "gamma2": 1.0 + s * jax.random.normal(keys[11], (4 * out_dim,), jnp.float32),
        "beta2": s * jax.random.normal(keys[12], (4 * out_dim,), jnp.float32),
        "Wc_t": s * jax.random.normal(keys[13], (4 * out_dim, out_dim), jnp.float32),
        "bc": s * jax.random.normal(keys[14], (1, out_dim), jnp.float32),
    }

    out = jax.block_until_ready(sym_reg_forward(params, x, a))
    assert out.shape == (N, out_dim), out.shape

    ref = jax.block_until_ready(reference_forward(params, x, a))
    max_err = float(jnp.max(jnp.abs(out - ref)))
    assert jnp.allclose(out, ref, atol=2e-3, rtol=2e-3), max_err

    print("KERNEL_OK")
</pallas_src>

<mosaic_0001>
module attributes {stable_mosaic.version = 11 : i64} {
  func.func @_sym_reg_fused_kernel(%arg0: i32, %arg1: memref<64x16xf32, #tpu.memory_space<vmem>>, %arg2: memref<4x64x64xf32, #tpu.memory_space<vmem>>, %arg3: memref<16x32xf32, #tpu.memory_space<vmem>>, %arg4: memref<1x32xf32, #tpu.memory_space<vmem>>, %arg5: memref<4x1x32xf32, #tpu.memory_space<vmem>>, %arg6: memref<4x1x32xf32, #tpu.memory_space<vmem>>, %arg7: memref<4x32x8xf32, #tpu.memory_space<vmem>>, %arg8: memref<1x8xf32, #tpu.memory_space<vmem>>, %arg9: memref<4x1x8xf32, #tpu.memory_space<vmem>>, %arg10: memref<4x1x8xf32, #tpu.memory_space<vmem>>, %arg11: memref<4x8x8xf32, #tpu.memory_space<vmem>>, %arg12: memref<1x8xf32, #tpu.memory_space<vmem>>, %arg13: memref<64x8xf32, #tpu.memory_space<vmem>>) attributes {dimension_semantics = [#tpu.dimension_semantics<arbitrary>], iteration_bounds = array<i64: 1>, scalar_prefetch = 0 : i64, scratch_operands = 0 : i64, tpu.core_type = #tpu.core_type<tc>, window_params = [{pipeline_mode = #tpu.pipeline_mode<synchronous>, transform_indices = @transform_0, window_bounds = array<i64: 64, 16>}, {pipeline_mode = #tpu.pipeline_mode<synchronous>, transform_indices = @transform_1, window_bounds = array<i64: 4, 64, 64>}, {pipeline_mode = #tpu.pipeline_mode<synchronous>, transform_indices = @transform_2, window_bounds = array<i64: 16, 32>}, {pipeline_mode = #tpu.pipeline_mode<synchronous>, transform_indices = @transform_3, window_bounds = array<i64: 1, 32>}, {pipeline_mode = #tpu.pipeline_mode<synchronous>, transform_indices = @transform_4, window_bounds = array<i64: 4, 1, 32>}, {pipeline_mode = #tpu.pipeline_mode<synchronous>, transform_indices = @transform_5, window_bounds = array<i64: 4, 1, 32>}, {pipeline_mode = #tpu.pipeline_mode<synchronous>, transform_indices = @transform_6, window_bounds = array<i64: 4, 32, 8>}, {pipeline_mode = #tpu.pipeline_mode<synchronous>, transform_indices = @transform_7, window_bounds = array<i64: 1, 8>}, {pipeline_mode = #tpu.pipeline_mode<synchronous>, transform_indices = @transform_8, window_bounds = array<i64: 4, 1, 8>}, {pipeline_mode = #tpu.pipeline_mode<synchronous>, transform_indices = @transform_9, window_bounds = array<i64: 4, 1, 8>}, {pipeline_mode = #tpu.pipeline_mode<synchronous>, transform_indices = @transform_10, window_bounds = array<i64: 4, 8, 8>}, {pipeline_mode = #tpu.pipeline_mode<synchronous>, transform_indices = @transform_11, window_bounds = array<i64: 1, 8>}, {pipeline_mode = #tpu.pipeline_mode<synchronous>, transform_indices = @transform_12, window_bounds = array<i64: 64, 8>}]} {
    %c0 = arith.constant 0 : index
    %c0_0 = arith.constant 0 : index
    %0 = vector.load %arg1[%c0, %c0_0] : memref<64x16xf32, #tpu.memory_space<vmem>>, vector<64x16xf32>
    %c0_1 = arith.constant 0 : index
    %c0_2 = arith.constant 0 : index
    %1 = vector.load %arg3[%c0_1, %c0_2] : memref<16x32xf32, #tpu.memory_space<vmem>>, vector<16x32xf32>
    %cst = arith.constant dense<0.000000e+00> : vector<64x32xf32>
    %2 = tpu.matmul %0, %1, %cst {dimension_numbers = #tpu.dot_dimension_numbers<[1], [0], [0], [1], [0, 0, 1, 1], [], []>} : vector<64x16xf32>, vector<16x32xf32>, vector<64x32xf32> -> vector<64x32xf32>
    %c0_3 = arith.constant 0 : index
    %c0_4 = arith.constant 0 : index
    %3 = vector.load %arg4[%c0_3, %c0_4] : memref<1x32xf32, #tpu.memory_space<vmem>>, vector<1x32xf32>
    %cst_5 = arith.constant 0.000000e+00 : f32
    %4 = vector.broadcast %cst_5 : f32 to vector<64x8xf32>
    %c0_6 = arith.constant 0 : index
    %c0_7 = arith.constant 0 : index
    %c0_8 = arith.constant 0 : index
    %5 = vector.load %arg2[%c0_6, %c0_7, %c0_8] : memref<4x64x64xf32, #tpu.memory_space<vmem>>, vector<1x64x64xf32>
    %6 = vector.shape_cast %5 : vector<1x64x64xf32> to vector<64x64xf32>
    %cst_9 = arith.constant dense<0.000000e+00> : vector<64x32xf32>
    %7 = tpu.matmul %6, %2, %cst_9 {dimension_numbers = #tpu.dot_dimension_numbers<[1], [0], [0], [1], [0, 0, 1, 1], [], []>} : vector<64x64xf32>, vector<64x32xf32>, vector<64x32xf32> -> vector<64x32xf32>
    %8 = vector.broadcast %3 : vector<1x32xf32> to vector<64x32xf32>
    %9 = arith.addf %7, %8 : vector<64x32xf32>
    %c0_10 = arith.constant 0 : index
    %c0_11 = arith.constant 0 : index
    %c0_12 = arith.constant 0 : index
    %10 = vector.load %arg5[%c0_10, %c0_11, %c0_12] : memref<4x1x32xf32, #tpu.memory_space<vmem>>, vector<1x1x32xf32>
    %11 = vector.shape_cast %10 : vector<1x1x32xf32> to vector<1x32xf32>
    %c0_13 = arith.constant 0 : index
    %c0_14 = arith.constant 0 : index
    %c0_15 = arith.constant 0 : index
    %12 = vector.load %arg6[%c0_13, %c0_14, %c0_15] : memref<4x1x32xf32, #tpu.memory_space<vmem>>, vector<1x1x32xf32>
    %13 = vector.shape_cast %12 : vector<1x1x32xf32> to vector<1x32xf32>
    %cst_16 = arith.constant dense<0.000000e+00> : vector<32xf32>
    %14 = vector.multi_reduction <add>, %9, %cst_16 [0] : vector<64x32xf32> to vector<32xf32>
    %15 = vector.shape_cast %14 : vector<32xf32> to vector<1x32xf32>
    %cst_17 = arith.constant 6.400000e+01 : f32
    %16 = vector.broadcast %cst_17 : f32 to vector<1x32xf32>
    %17 = arith.divf %15, %16 : vector<1x32xf32>
    %18 = vector.broadcast %17 : vector<1x32xf32> to vector<64x32xf32>
    %19 = arith.subf %9, %18 : vector<64x32xf32>
    %20 = arith.mulf %19, %19 : vector<64x32xf32>
    %cst_18 = arith.constant dense<0.000000e+00> : vector<32xf32>
    %21 = vector.multi_reduction <add>, %20, %cst_18 [0] : vector<64x32xf32> to vector<32xf32>
    %22 = vector.shape_cast %21 : vector<32xf32> to vector<1x32xf32>
    %cst_19 = arith.constant 6.400000e+01 : f32
    %23 = vector.broadcast %cst_19 : f32 to vector<1x32xf32>
    %24 = arith.divf %22, %23 : vector<1x32xf32>
    %25 = vector.broadcast %17 : vector<1x32xf32> to vector<64x32xf32>
    %26 = arith.subf %9, %25 : vector<64x32xf32>
    %cst_20 = arith.constant 9.99999974E-6 : f32
    %27 = vector.broadcast %cst_20 : f32 to vector<1x32xf32>
    %28 = arith.addf %24, %27 : vector<1x32xf32>
    %29 = math.rsqrt %28 : vector<1x32xf32>
    %30 = vector.broadcast %29 : vector<1x32xf32> to vector<64x32xf32>
    %31 = arith.mulf %26, %30 : vector<64x32xf32>
    %32 = vector.broadcast %11 : vector<1x32xf32> to vector<64x32xf32>
    %33 = arith.mulf %31, %32 : vector<64x32xf32>
    %34 = vector.broadcast %13 : vector<1x32xf32> to vector<64x32xf32>
    %35 = arith.addf %33, %34 : vector<64x32xf32>
    %cst_21 = arith.constant 0.000000e+00 : f32
    %36 = vector.broadcast %cst_21 : f32 to vector<64x32xf32>
    %37 = arith.maximumf %35, %36 : vector<64x32xf32>
    %c0_22 = arith.constant 0 : index
    %c0_23 = arith.constant 0 : index
    %c0_24 = arith.constant 0 : index
    %38 = vector.load %arg7[%c0_22, %c0_23, %c0_24] : memref<4x32x8xf32, #tpu.memory_space<vmem>>, vector<1x32x8xf32>
    %39 = vector.shape_cast %38 : vector<1x32x8xf32> to vector<32x8xf32>
    %cst_25 = arith.constant dense<0.000000e+00> : vector<64x8xf32>
    %40 = tpu.matmul %37, %39, %cst_25 {dimension_numbers = #tpu.dot_dimension_numbers<[1], [0], [0], [1], [0, 0, 1, 1], [], []>} : vector<64x32xf32>, vector<32x8xf32>, vector<64x8xf32> -> vector<64x8xf32>
    %41 = arith.addf %4, %40 : vector<64x8xf32>
    %c1 = arith.constant 1 : index
    %c0_26 = arith.constant 0 : index
    %c0_27 = arith.constant 0 : index
    %42 = vector.load %arg2[%c1, %c0_26, %c0_27] : memref<4x64x64xf32, #tpu.memory_space<vmem>>, vector<1x64x64xf32>
    %43 = vector.shape_cast %42 : vector<1x64x64xf32> to vector<64x64xf32>
    %cst_28 = arith.constant dense<0.000000e+00> : vector<64x32xf32>
    %44 = tpu.matmul %43, %2, %cst_28 {dimension_numbers = #tpu.dot_dimension_numbers<[1], [0], [0], [1], [0, 0, 1, 1], [], []>} : vector<64x64xf32>, vector<64x32xf32>, vector<64x32xf32> -> vector<64x32xf32>
    %45 = vector.broadcast %3 : vector<1x32xf32> to vector<64x32xf32>
    %46 = arith.addf %44, %45 : vector<64x32xf32>
    %c1_29 = arith.constant 1 : index
    %c0_30 = arith.constant 0 : index
    %c0_31 = arith.constant 0 : index
    %47 = vector.load %arg5[%c1_29, %c0_30, %c0_31] : memref<4x1x32xf32, #tpu.memory_space<vmem>>, vector<1x1x32xf32>
    %48 = vector.shape_cast %47 : vector<1x1x32xf32> to vector<1x32xf32>
    %c1_32 = arith.constant 1 : index
    %c0_33 = arith.constant 0 : index
    %c0_34 = arith.constant 0 : index
    %49 = vector.load %arg6[%c1_32, %c0_33, %c0_34] : memref<4x1x32xf32, #tpu.memory_space<vmem>>, vector<1x1x32xf32>
    %50 = vector.shape_cast %49 : vector<1x1x32xf32> to vector<1x32xf32>
    %cst_35 = arith.constant dense<0.000000e+00> : vector<32xf32>
    %51 = vector.multi_reduction <add>, %46, %cst_35 [0] : vector<64x32xf32> to vector<32xf32>
    %52 = vector.shape_cast %51 : vector<32xf32> to vector<1x32xf32>
    %cst_36 = arith.constant 6.400000e+01 : f32
    %53 = vector.broadcast %cst_36 : f32 to vector<1x32xf32>
    %54 = arith.divf %52, %53 : vector<1x32xf32>
    %55 = vector.broadcast %54 : vector<1x32xf32> to vector<64x32xf32>
    %56 = arith.subf %46, %55 : vector<64x32xf32>
    %57 = arith.mulf %56, %56 : vector<64x32xf32>
    %cst_37 = arith.constant dense<0.000000e+00> : vector<32xf32>
    %58 = vector.multi_reduction <add>, %57, %cst_37 [0] : vector<64x32xf32> to vector<32xf32>
    %59 = vector.shape_cast %58 : vector<32xf32> to vector<1x32xf32>
    %cst_38 = arith.constant 6.400000e+01 : f32
    %60 = vector.broadcast %cst_38 : f32 to vector<1x32xf32>
    %61 = arith.divf %59, %60 : vector<1x32xf32>
    %62 = vector.broadcast %54 : vector<1x32xf32> to vector<64x32xf32>
    %63 = arith.subf %46, %62 : vector<64x32xf32>
    %cst_39 = arith.constant 9.99999974E-6 : f32
    %64 = vector.broadcast %cst_39 : f32 to vector<1x32xf32>
    %65 = arith.addf %61, %64 : vector<1x32xf32>
    %66 = math.rsqrt %65 : vector<1x32xf32>
    %67 = vector.broadcast %66 : vector<1x32xf32> to vector<64x32xf32>
    %68 = arith.mulf %63, %67 : vector<64x32xf32>
    %69 = vector.broadcast %48 : vector<1x32xf32> to vector<64x32xf32>
    %70 = arith.mulf %68, %69 : vector<64x32xf32>
    %71 = vector.broadcast %50 : vector<1x32xf32> to vector<64x32xf32>
    %72 = arith.addf %70, %71 : vector<64x32xf32>
    %cst_40 = arith.constant 0.000000e+00 : f32
    %73 = vector.broadcast %cst_40 : f32 to vector<64x32xf32>
    %74 = arith.maximumf %72, %73 : vector<64x32xf32>
    %c1_41 = arith.constant 1 : index
    %c0_42 = arith.constant 0 : index
    %c0_43 = arith.constant 0 : index
    %75 = vector.load %arg7[%c1_41, %c0_42, %c0_43] : memref<4x32x8xf32, #tpu.memory_space<vmem>>, vector<1x32x8xf32>
    %76 = vector.shape_cast %75 : vector<1x32x8xf32> to vector<32x8xf32>
    %cst_44 = arith.constant dense<0.000000e+00> : vector<64x8xf32>
    %77 = tpu.matmul %74, %76, %cst_44 {dimension_numbers = #tpu.dot_dimension_numbers<[1], [0], [0], [1], [0, 0, 1, 1], [], []>} : vector<64x32xf32>, vector<32x8xf32>, vector<64x8xf32> -> vector<64x8xf32>
    %78 = arith.addf %41, %77 : vector<64x8xf32>
    %c2 = arith.constant 2 : index
    %c0_45 = arith.constant 0 : index
    %c0_46 = arith.constant 0 : index
    %79 = vector.load %arg2[%c2, %c0_45, %c0_46] : memref<4x64x64xf32, #tpu.memory_space<vmem>>, vector<1x64x64xf32>
    %80 = vector.shape_cast %79 : vector<1x64x64xf32> to vector<64x64xf32>
    %cst_47 = arith.constant dense<0.000000e+00> : vector<64x32xf32>
    %81 = tpu.matmul %80, %2, %cst_47 {dimension_numbers = #tpu.dot_dimension_numbers<[1], [0], [0], [1], [0, 0, 1, 1], [], []>} : vector<64x64xf32>, vector<64x32xf32>, vector<64x32xf32> -> vector<64x32xf32>
    %82 = vector.broadcast %3 : vector<1x32xf32> to vector<64x32xf32>
    %83 = arith.addf %81, %82 : vector<64x32xf32>
    %c2_48 = arith.constant 2 : index
    %c0_49 = arith.constant 0 : index
    %c0_50 = arith.constant 0 : index
    %84 = vector.load %arg5[%c2_48, %c0_49, %c0_50] : memref<4x1x32xf32, #tpu.memory_space<vmem>>, vector<1x1x32xf32>
    %85 = vector.shape_cast %84 : vector<1x1x32xf32> to vector<1x32xf32>
    %c2_51 = arith.constant 2 : index
    %c0_52 = arith.constant 0 : index
    %c0_53 = arith.constant 0 : index
    %86 = vector.load %arg6[%c2_51, %c0_52, %c0_53] : memref<4x1x32xf32, #tpu.memory_space<vmem>>, vector<1x1x32xf32>
    %87 = vector.shape_cast %86 : vector<1x1x32xf32> to vector<1x32xf32>
    %cst_54 = arith.constant dense<0.000000e+00> : vector<32xf32>
    %88 = vector.multi_reduction <add>, %83, %cst_54 [0] : vector<64x32xf32> to vector<32xf32>
    %89 = vector.shape_cast %88 : vector<32xf32> to vector<1x32xf32>
    %cst_55 = arith.constant 6.400000e+01 : f32
    %90 = vector.broadcast %cst_55 : f32 to vector<1x32xf32>
    %91 = arith.divf %89, %90 : vector<1x32xf32>
    %92 = vector.broadcast %91 : vector<1x32xf32> to vector<64x32xf32>
    %93 = arith.subf %83, %92 : vector<64x32xf32>
    %94 = arith.mulf %93, %93 : vector<64x32xf32>
    %cst_56 = arith.constant dense<0.000000e+00> : vector<32xf32>
    %95 = vector.multi_reduction <add>, %94, %cst_56 [0] : vector<64x32xf32> to vector<32xf32>
    %96 = vector.shape_cast %95 : vector<32xf32> to vector<1x32xf32>
    %cst_57 = arith.constant 6.400000e+01 : f32
    %97 = vector.broadcast %cst_57 : f32 to vector<1x32xf32>
    %98 = arith.divf %96, %97 : vector<1x32xf32>
    %99 = vector.broadcast %91 : vector<1x32xf32> to vector<64x32xf32>
    %100 = arith.subf %83, %99 : vector<64x32xf32>
    %cst_58 = arith.constant 9.99999974E-6 : f32
    %101 = vector.broadcast %cst_58 : f32 to vector<1x32xf32>
    %102 = arith.addf %98, %101 : vector<1x32xf32>
    %103 = math.rsqrt %102 : vector<1x32xf32>
    %104 = vector.broadcast %103 : vector<1x32xf32> to vector<64x32xf32>
    %105 = arith.mulf %100, %104 : vector<64x32xf32>
    %106 = vector.broadcast %85 : vector<1x32xf32> to vector<64x32xf32>
    %107 = arith.mulf %105, %106 : vector<64x32xf32>
    %108 = vector.broadcast %87 : vector<1x32xf32> to vector<64x32xf32>
    %109 = arith.addf %107, %108 : vector<64x32xf32>
    %cst_59 = arith.constant 0.000000e+00 : f32
    %110 = vector.broadcast %cst_59 : f32 to vector<64x32xf32>
    %111 = arith.maximumf %109, %110 : vector<64x32xf32>
    %c2_60 = arith.constant 2 : index
    %c0_61 = arith.constant 0 : index
    %c0_62 = arith.constant 0 : index
    %112 = vector.load %arg7[%c2_60, %c0_61, %c0_62] : memref<4x32x8xf32, #tpu.memory_space<vmem>>, vector<1x32x8xf32>
    %113 = vector.shape_cast %112 : vector<1x32x8xf32> to vector<32x8xf32>
    %cst_63 = arith.constant dense<0.000000e+00> : vector<64x8xf32>
    %114 = tpu.matmul %111, %113, %cst_63 {dimension_numbers = #tpu.dot_dimension_numbers<[1], [0], [0], [1], [0, 0, 1, 1], [], []>} : vector<64x32xf32>, vector<32x8xf32>, vector<64x8xf32> -> vector<64x8xf32>
    %115 = arith.addf %78, %114 : vector<64x8xf32>
    %c3 = arith.constant 3 : index
    %c0_64 = arith.constant 0 : index
    %c0_65 = arith.constant 0 : index
    %116 = vector.load %arg2[%c3, %c0_64, %c0_65] : memref<4x64x64xf32, #tpu.memory_space<vmem>>, vector<1x64x64xf32>
    %117 = vector.shape_cast %116 : vector<1x64x64xf32> to vector<64x64xf32>
    %cst_66 = arith.constant dense<0.000000e+00> : vector<64x32xf32>
    %118 = tpu.matmul %117, %2, %cst_66 {dimension_numbers = #tpu.dot_dimension_numbers<[1], [0], [0], [1], [0, 0, 1, 1], [], []>} : vector<64x64xf32>, vector<64x32xf32>, vector<64x32xf32> -> vector<64x32xf32>
    %119 = vector.broadcast %3 : vector<1x32xf32> to vector<64x32xf32>
    %120 = arith.addf %118, %119 : vector<64x32xf32>
    %c3_67 = arith.constant 3 : index
    %c0_68 = arith.constant 0 : index
    %c0_69 = arith.constant 0 : index
    %121 = vector.load %arg5[%c3_67, %c0_68, %c0_69] : memref<4x1x32xf32, #tpu.memory_space<vmem>>, vector<1x1x32xf32>
    %122 = vector.shape_cast %121 : vector<1x1x32xf32> to vector<1x32xf32>
    %c3_70 = arith.constant 3 : index
    %c0_71 = arith.constant 0 : index
    %c0_72 = arith.constant 0 : index
    %123 = vector.load %arg6[%c3_70, %c0_71, %c0_72] : memref<4x1x32xf32, #tpu.memory_space<vmem>>, vector<1x1x32xf32>
    %124 = vector.shape_cast %123 : vector<1x1x32xf32> to vector<1x32xf32>
    %cst_73 = arith.constant dense<0.000000e+00> : vector<32xf32>
    %125 = vector.multi_reduction <add>, %120, %cst_73 [0] : vector<64x32xf32> to vector<32xf32>
    %126 = vector.shape_cast %125 : vector<32xf32> to vector<1x32xf32>
    %cst_74 = arith.constant 6.400000e+01 : f32
    %127 = vector.broadcast %cst_74 : f32 to vector<1x32xf32>
    %128 = arith.divf %126, %127 : vector<1x32xf32>
    %129 = vector.broadcast %128 : vector<1x32xf32> to vector<64x32xf32>
    %130 = arith.subf %120, %129 : vector<64x32xf32>
    %131 = arith.mulf %130, %130 : vector<64x32xf32>
    %cst_75 = arith.constant dense<0.000000e+00> : vector<32xf32>
    %132 = vector.multi_reduction <add>, %131, %cst_75 [0] : vector<64x32xf32> to vector<32xf32>
    %133 = vector.shape_cast %132 : vector<32xf32> to vector<1x32xf32>
    %cst_76 = arith.constant 6.400000e+01 : f32
    %134 = vector.broadcast %cst_76 : f32 to vector<1x32xf32>
    %135 = arith.divf %133, %134 : vector<1x32xf32>
    %136 = vector.broadcast %128 : vector<1x32xf32> to vector<64x32xf32>
    %137 = arith.subf %120, %136 : vector<64x32xf32>
    %cst_77 = arith.constant 9.99999974E-6 : f32
    %138 = vector.broadcast %cst_77 : f32 to vector<1x32xf32>
    %139 = arith.addf %135, %138 : vector<1x32xf32>
    %140 = math.rsqrt %139 : vector<1x32xf32>
    %141 = vector.broadcast %140 : vector<1x32xf32> to vector<64x32xf32>
    %142 = arith.mulf %137, %141 : vector<64x32xf32>
    %143 = vector.broadcast %122 : vector<1x32xf32> to vector<64x32xf32>
    %144 = arith.mulf %142, %143 : vector<64x32xf32>
    %145 = vector.broadcast %124 : vector<1x32xf32> to vector<64x32xf32>
    %146 = arith.addf %144, %145 : vector<64x32xf32>
    %cst_78 = arith.constant 0.000000e+00 : f32
    %147 = vector.broadcast %cst_78 : f32 to vector<64x32xf32>
    %148 = arith.maximumf %146, %147 : vector<64x32xf32>
    %c3_79 = arith.constant 3 : index
    %c0_80 = arith.constant 0 : index
    %c0_81 = arith.constant 0 : index
    %149 = vector.load %arg7[%c3_79, %c0_80, %c0_81] : memref<4x32x8xf32, #tpu.memory_space<vmem>>, vector<1x32x8xf32>
    %150 = vector.shape_cast %149 : vector<1x32x8xf32> to vector<32x8xf32>
    %cst_82 = arith.constant dense<0.000000e+00> : vector<64x8xf32>
    %151 = tpu.matmul %148, %150, %cst_82 {dimension_numbers = #tpu.dot_dimension_numbers<[1], [0], [0], [1], [0, 0, 1, 1], [], []>} : vector<64x32xf32>, vector<32x8xf32>, vector<64x8xf32> -> vector<64x8xf32>
    %152 = arith.addf %115, %151 : vector<64x8xf32>
    %c0_83 = arith.constant 0 : index
    %c0_84 = arith.constant 0 : index
    %153 = vector.load %arg8[%c0_83, %c0_84] : memref<1x8xf32, #tpu.memory_space<vmem>>, vector<1x8xf32>
    %cst_85 = arith.constant 0.000000e+00 : f32
    %154 = vector.broadcast %cst_85 : f32 to vector<64x8xf32>
    %c0_86 = arith.constant 0 : index
    %c0_87 = arith.constant 0 : index
    %c0_88 = arith.constant 0 : index
    %155 = vector.load %arg2[%c0_86, %c0_87, %c0_88] : memref<4x64x64xf32, #tpu.memory_space<vmem>>, vector<1x64x64xf32>
    %156 = vector.shape_cast %155 : vector<1x64x64xf32> to vector<64x64xf32>
    %cst_89 = arith.constant dense<0.000000e+00> : vector<64x8xf32>
    %157 = tpu.matmul %156, %152, %cst_89 {dimension_numbers = #tpu.dot_dimension_numbers<[1], [0], [0], [1], [0, 0, 1, 1], [], []>} : vector<64x64xf32>, vector<64x8xf32>, vector<64x8xf32> -> vector<64x8xf32>
    %158 = vector.broadcast %153 : vector<1x8xf32> to vector<64x8xf32>
    %159 = arith.addf %157, %158 : vector<64x8xf32>
    %c0_90 = arith.constant 0 : index
    %c0_91 = arith.constant 0 : index
    %c0_92 = arith.constant 0 : index
    %160 = vector.load %arg9[%c0_90, %c0_91, %c0_92] : memref<4x1x8xf32, #tpu.memory_space<vmem>>, vector<1x1x8xf32>
    %161 = vector.shape_cast %160 : vector<1x1x8xf32> to vector<1x8xf32>
    %c0_93 = arith.constant 0 : index
    %c0_94 = arith.constant 0 : index
    %c0_95 = arith.constant 0 : index
    %162 = vector.load %arg10[%c0_93, %c0_94, %c0_95] : memref<4x1x8xf32, #tpu.memory_space<vmem>>, vector<1x1x8xf32>
    %163 = vector.shape_cast %162 : vector<1x1x8xf32> to vector<1x8xf32>
    %cst_96 = arith.constant dense<0.000000e+00> : vector<8xf32>
    %164 = vector.multi_reduction <add>, %159, %cst_96 [0] : vector<64x8xf32> to vector<8xf32>
    %165 = vector.shape_cast %164 : vector<8xf32> to vector<1x8xf32>
    %cst_97 = arith.constant 6.400000e+01 : f32
    %166 = vector.broadcast %cst_97 : f32 to vector<1x8xf32>
    %167 = arith.divf %165, %166 : vector<1x8xf32>
    %168 = vector.broadcast %167 : vector<1x8xf32> to vector<64x8xf32>
    %169 = arith.subf %159, %168 : vector<64x8xf32>
    %170 = arith.mulf %169, %169 : vector<64x8xf32>
    %cst_98 = arith.constant dense<0.000000e+00> : vector<8xf32>
    %171 = vector.multi_reduction <add>, %170, %cst_98 [0] : vector<64x8xf32> to vector<8xf32>
    %172 = vector.shape_cast %171 : vector<8xf32> to vector<1x8xf32>
    %cst_99 = arith.constant 6.400000e+01 : f32
    %173 = vector.broadcast %cst_99 : f32 to vector<1x8xf32>
    %174 = arith.divf %172, %173 : vector<1x8xf32>
    %175 = vector.broadcast %167 : vector<1x8xf32> to vector<64x8xf32>
    %176 = arith.subf %159, %175 : vector<64x8xf32>
    %cst_100 = arith.constant 9.99999974E-6 : f32
    %177 = vector.broadcast %cst_100 : f32 to vector<1x8xf32>
    %178 = arith.addf %174, %177 : vector<1x8xf32>
    %179 = math.rsqrt %178 : vector<1x8xf32>
    %180 = vector.broadcast %179 : vector<1x8xf32> to vector<64x8xf32>
    %181 = arith.mulf %176, %180 : vector<64x8xf32>
    %182 = vector.broadcast %161 : vector<1x8xf32> to vector<64x8xf32>
    %183 = arith.mulf %181, %182 : vector<64x8xf32>
    %184 = vector.broadcast %163 : vector<1x8xf32> to vector<64x8xf32>
    %185 = arith.addf %183, %184 : vector<64x8xf32>
    %c0_101 = arith.constant 0 : index
    %c0_102 = arith.constant 0 : index
    %c0_103 = arith.constant 0 : index
    %186 = vector.load %arg11[%c0_101, %c0_102, %c0_103] : memref<4x8x8xf32, #tpu.memory_space<vmem>>, vector<1x8x8xf32>
    %187 = vector.shape_cast %186 : vector<1x8x8xf32> to vector<8x8xf32>
    %cst_104 = arith.constant dense<0.000000e+00> : vector<64x8xf32>
    %188 = tpu.matmul %185, %187, %cst_104 {dimension_numbers = #tpu.dot_dimension_numbers<[1], [0], [0], [1], [0, 0, 1, 1], [], []>} : vector<64x8xf32>, vector<8x8xf32>, vector<64x8xf32> -> vector<64x8xf32>
    %189 = arith.addf %154, %188 : vector<64x8xf32>
    %c1_105 = arith.constant 1 : index
    %c0_106 = arith.constant 0 : index
    %c0_107 = arith.constant 0 : index
    %190 = vector.load %arg2[%c1_105, %c0_106, %c0_107] : memref<4x64x64xf32, #tpu.memory_space<vmem>>, vector<1x64x64xf32>
    %191 = vector.shape_cast %190 : vector<1x64x64xf32> to vector<64x64xf32>
    %cst_108 = arith.constant dense<0.000000e+00> : vector<64x8xf32>
    %192 = tpu.matmul %191, %152, %cst_108 {dimension_numbers = #tpu.dot_dimension_numbers<[1], [0], [0], [1], [0, 0, 1, 1], [], []>} : vector<64x64xf32>, vector<64x8xf32>, vector<64x8xf32> -> vector<64x8xf32>
    %193 = vector.broadcast %153 : vector<1x8xf32> to vector<64x8xf32>
    %194 = arith.addf %192, %193 : vector<64x8xf32>
    %c1_109 = arith.constant 1 : index
    %c0_110 = arith.constant 0 : index
    %c0_111 = arith.constant 0 : index
    %195 = vector.load %arg9[%c1_109, %c0_110, %c0_111] : memref<4x1x8xf32, #tpu.memory_space<vmem>>, vector<1x1x8xf32>
    %196 = vector.shape_cast %195 : vector<1x1x8xf32> to vector<1x8xf32>
    %c1_112 = arith.constant 1 : index
    %c0_113 = arith.constant 0 : index
    %c0_114 = arith.constant 0 : index
    %197 = vector.load %arg10[%c1_112, %c0_113, %c0_114] : memref<4x1x8xf32, #tpu.memory_space<vmem>>, vector<1x1x8xf32>
    %198 = vector.shape_cast %197 : vector<1x1x8xf32> to vector<1x8xf32>
    %cst_115 = arith.constant dense<0.000000e+00> : vector<8xf32>
    %199 = vector.multi_reduction <add>, %194, %cst_115 [0] : vector<64x8xf32> to vector<8xf32>
    %200 = vector.shape_cast %199 : vector<8xf32> to vector<1x8xf32>
    %cst_116 = arith.constant 6.400000e+01 : f32
    %201 = vector.broadcast %cst_116 : f32 to vector<1x8xf32>
    %202 = arith.divf %200, %201 : vector<1x8xf32>
    %203 = vector.broadcast %202 : vector<1x8xf32> to vector<64x8xf32>
    %204 = arith.subf %194, %203 : vector<64x8xf32>
    %205 = arith.mulf %204, %204 : vector<64x8xf32>
    %cst_117 = arith.constant dense<0.000000e+00> : vector<8xf32>
    %206 = vector.multi_reduction <add>, %205, %cst_117 [0] : vector<64x8xf32> to vector<8xf32>
    %207 = vector.shape_cast %206 : vector<8xf32> to vector<1x8xf32>
    %cst_118 = arith.constant 6.400000e+01 : f32
    %208 = vector.broadcast %cst_118 : f32 to vector<1x8xf32>
    %209 = arith.divf %207, %208 : vector<1x8xf32>
    %210 = vector.broadcast %202 : vector<1x8xf32> to vector<64x8xf32>
    %211 = arith.subf %194, %210 : vector<64x8xf32>
    %cst_119 = arith.constant 9.99999974E-6 : f32
    %212 = vector.broadcast %cst_119 : f32 to vector<1x8xf32>
    %213 = arith.addf %209, %212 : vector<1x8xf32>
    %214 = math.rsqrt %213 : vector<1x8xf32>
    %215 = vector.broadcast %214 : vector<1x8xf32> to vector<64x8xf32>
    %216 = arith.mulf %211, %215 : vector<64x8xf32>
    %217 = vector.broadcast %196 : vector<1x8xf32> to vector<64x8xf32>
    %218 = arith.mulf %216, %217 : vector<64x8xf32>
    %219 = vector.broadcast %198 : vector<1x8xf32> to vector<64x8xf32>
    %220 = arith.addf %218, %219 : vector<64x8xf32>
    %c1_120 = arith.constant 1 : index
    %c0_121 = arith.constant 0 : index
    %c0_122 = arith.constant 0 : index
    %221 = vector.load %arg11[%c1_120, %c0_121, %c0_122] : memref<4x8x8xf32, #tpu.memory_space<vmem>>, vector<1x8x8xf32>
    %222 = vector.shape_cast %221 : vector<1x8x8xf32> to vector<8x8xf32>
    %cst_123 = arith.constant dense<0.000000e+00> : vector<64x8xf32>
    %223 = tpu.matmul %220, %222, %cst_123 {dimension_numbers = #tpu.dot_dimension_numbers<[1], [0], [0], [1], [0, 0, 1, 1], [], []>} : vector<64x8xf32>, vector<8x8xf32>, vector<64x8xf32> -> vector<64x8xf32>
    %224 = arith.addf %189, %223 : vector<64x8xf32>
    %c2_124 = arith.constant 2 : index
    %c0_125 = arith.constant 0 : index
    %c0_126 = arith.constant 0 : index
    %225 = vector.load %arg2[%c2_124, %c0_125, %c0_126] : memref<4x64x64xf32, #tpu.memory_space<vmem>>, vector<1x64x64xf32>
    %226 = vector.shape_cast %225 : vector<1x64x64xf32> to vector<64x64xf32>
    %cst_127 = arith.constant dense<0.000000e+00> : vector<64x8xf32>
    %227 = tpu.matmul %226, %152, %cst_127 {dimension_numbers = #tpu.dot_dimension_numbers<[1], [0], [0], [1], [0, 0, 1, 1], [], []>} : vector<64x64xf32>, vector<64x8xf32>, vector<64x8xf32> -> vector<64x8xf32>
    %228 = vector.broadcast %153 : vector<1x8xf32> to vector<64x8xf32>
    %229 = arith.addf %227, %228 : vector<64x8xf32>
    %c2_128 = arith.constant 2 : index
    %c0_129 = arith.constant 0 : index
    %c0_130 = arith.constant 0 : index
    %230 = vector.load %arg9[%c2_128, %c0_129, %c0_130] : memref<4x1x8xf32, #tpu.memory_space<vmem>>, vector<1x1x8xf32>
    %231 = vector.shape_cast %230 : vector<1x1x8xf32> to vector<1x8xf32>
    %c2_131 = arith.constant 2 : index
    %c0_132 = arith.constant 0 : index
    %c0_133 = arith.constant 0 : index
    %232 = vector.load %arg10[%c2_131, %c0_132, %c0_133] : memref<4x1x8xf32, #tpu.memory_space<vmem>>, vector<1x1x8xf32>
    %233 = vector.shape_cast %232 : vector<1x1x8xf32> to vector<1x8xf32>
    %cst_134 = arith.constant dense<0.000000e+00> : vector<8xf32>
    %234 = vector.multi_reduction <add>, %229, %cst_134 [0] : vector<64x8xf32> to vector<8xf32>
    %235 = vector.shape_cast %234 : vector<8xf32> to vector<1x8xf32>
    %cst_135 = arith.constant 6.400000e+01 : f32
    %236 = vector.broadcast %cst_135 : f32 to vector<1x8xf32>
    %237 = arith.divf %235, %236 : vector<1x8xf32>
    %238 = vector.broadcast %237 : vector<1x8xf32> to vector<64x8xf32>
    %239 = arith.subf %229, %238 : vector<64x8xf32>
    %240 = arith.mulf %239, %239 : vector<64x8xf32>
    %cst_136 = arith.constant dense<0.000000e+00> : vector<8xf32>
    %241 = vector.multi_reduction <add>, %240, %cst_136 [0] : vector<64x8xf32> to vector<8xf32>
    %242 = vector.shape_cast %241 : vector<8xf32> to vector<1x8xf32>
    %cst_137 = arith.constant 6.400000e+01 : f32
    %243 = vector.broadcast %cst_137 : f32 to vector<1x8xf32>
    %244 = arith.divf %242, %243 : vector<1x8xf32>
    %245 = vector.broadcast %237 : vector<1x8xf32> to vector<64x8xf32>
    %246 = arith.subf %229, %245 : vector<64x8xf32>
    %cst_138 = arith.constant 9.99999974E-6 : f32
    %247 = vector.broadcast %cst_138 : f32 to vector<1x8xf32>
    %248 = arith.addf %244, %247 : vector<1x8xf32>
    %249 = math.rsqrt %248 : vector<1x8xf32>
    %250 = vector.broadcast %249 : vector<1x8xf32> to vector<64x8xf32>
    %251 = arith.mulf %246, %250 : vector<64x8xf32>
    %252 = vector.broadcast %231 : vector<1x8xf32> to vector<64x8xf32>
    %253 = arith.mulf %251, %252 : vector<64x8xf32>
    %254 = vector.broadcast %233 : vector<1x8xf32> to vector<64x8xf32>
    %255 = arith.addf %253, %254 : vector<64x8xf32>
    %c2_139 = arith.constant 2 : index
    %c0_140 = arith.constant 0 : index
    %c0_141 = arith.constant 0 : index
    %256 = vector.load %arg11[%c2_139, %c0_140, %c0_141] : memref<4x8x8xf32, #tpu.memory_space<vmem>>, vector<1x8x8xf32>
    %257 = vector.shape_cast %256 : vector<1x8x8xf32> to vector<8x8xf32>
    %cst_142 = arith.constant dense<0.000000e+00> : vector<64x8xf32>
    %258 = tpu.matmul %255, %257, %cst_142 {dimension_numbers = #tpu.dot_dimension_numbers<[1], [0], [0], [1], [0, 0, 1, 1], [], []>} : vector<64x8xf32>, vector<8x8xf32>, vector<64x8xf32> -> vector<64x8xf32>
    %259 = arith.addf %224, %258 : vector<64x8xf32>
    %c3_143 = arith.constant 3 : index
    %c0_144 = arith.constant 0 : index
    %c0_145 = arith.constant 0 : index
    %260 = vector.load %arg2[%c3_143, %c0_144, %c0_145] : memref<4x64x64xf32, #tpu.memory_space<vmem>>, vector<1x64x64xf32>
    %261 = vector.shape_cast %260 : vector<1x64x64xf32> to vector<64x64xf32>
    %cst_146 = arith.constant dense<0.000000e+00> : vector<64x8xf32>
    %262 = tpu.matmul %261, %152, %cst_146 {dimension_numbers = #tpu.dot_dimension_numbers<[1], [0], [0], [1], [0, 0, 1, 1], [], []>} : vector<64x64xf32>, vector<64x8xf32>, vector<64x8xf32> -> vector<64x8xf32>
    %263 = vector.broadcast %153 : vector<1x8xf32> to vector<64x8xf32>
    %264 = arith.addf %262, %263 : vector<64x8xf32>
    %c3_147 = arith.constant 3 : index
    %c0_148 = arith.constant 0 : index
    %c0_149 = arith.constant 0 : index
    %265 = vector.load %arg9[%c3_147, %c0_148, %c0_149] : memref<4x1x8xf32, #tpu.memory_space<vmem>>, vector<1x1x8xf32>
    %266 = vector.shape_cast %265 : vector<1x1x8xf32> to vector<1x8xf32>
    %c3_150 = arith.constant 3 : index
    %c0_151 = arith.constant 0 : index
    %c0_152 = arith.constant 0 : index
    %267 = vector.load %arg10[%c3_150, %c0_151, %c0_152] : memref<4x1x8xf32, #tpu.memory_space<vmem>>, vector<1x1x8xf32>
    %268 = vector.shape_cast %267 : vector<1x1x8xf32> to vector<1x8xf32>
    %cst_153 = arith.constant dense<0.000000e+00> : vector<8xf32>
    %269 = vector.multi_reduction <add>, %264, %cst_153 [0] : vector<64x8xf32> to vector<8xf32>
    %270 = vector.shape_cast %269 : vector<8xf32> to vector<1x8xf32>
    %cst_154 = arith.constant 6.400000e+01 : f32
    %271 = vector.broadcast %cst_154 : f32 to vector<1x8xf32>
    %272 = arith.divf %270, %271 : vector<1x8xf32>
    %273 = vector.broadcast %272 : vector<1x8xf32> to vector<64x8xf32>
    %274 = arith.subf %264, %273 : vector<64x8xf32>
    %275 = arith.mulf %274, %274 : vector<64x8xf32>
    %cst_155 = arith.constant dense<0.000000e+00> : vector<8xf32>
    %276 = vector.multi_reduction <add>, %275, %cst_155 [0] : vector<64x8xf32> to vector<8xf32>
    %277 = vector.shape_cast %276 : vector<8xf32> to vector<1x8xf32>
    %cst_156 = arith.constant 6.400000e+01 : f32
    %278 = vector.broadcast %cst_156 : f32 to vector<1x8xf32>
    %279 = arith.divf %277, %278 : vector<1x8xf32>
    %280 = vector.broadcast %272 : vector<1x8xf32> to vector<64x8xf32>
    %281 = arith.subf %264, %280 : vector<64x8xf32>
    %cst_157 = arith.constant 9.99999974E-6 : f32
    %282 = vector.broadcast %cst_157 : f32 to vector<1x8xf32>
    %283 = arith.addf %279, %282 : vector<1x8xf32>
    %284 = math.rsqrt %283 : vector<1x8xf32>
    %285 = vector.broadcast %284 : vector<1x8xf32> to vector<64x8xf32>
    %286 = arith.mulf %281, %285 : vector<64x8xf32>
    %287 = vector.broadcast %266 : vector<1x8xf32> to vector<64x8xf32>
    %288 = arith.mulf %286, %287 : vector<64x8xf32>
    %289 = vector.broadcast %268 : vector<1x8xf32> to vector<64x8xf32>
    %290 = arith.addf %288, %289 : vector<64x8xf32>
    %c3_158 = arith.constant 3 : index
    %c0_159 = arith.constant 0 : index
    %c0_160 = arith.constant 0 : index
    %291 = vector.load %arg11[%c3_158, %c0_159, %c0_160] : memref<4x8x8xf32, #tpu.memory_space<vmem>>, vector<1x8x8xf32>
    %292 = vector.shape_cast %291 : vector<1x8x8xf32> to vector<8x8xf32>
    %cst_161 = arith.constant dense<0.000000e+00> : vector<64x8xf32>
    %293 = tpu.matmul %290, %292, %cst_161 {dimension_numbers = #tpu.dot_dimension_numbers<[1], [0], [0], [1], [0, 0, 1, 1], [], []>} : vector<64x8xf32>, vector<8x8xf32>, vector<64x8xf32> -> vector<64x8xf32>
    %294 = arith.addf %259, %293 : vector<64x8xf32>
    %c0_162 = arith.constant 0 : index
    %c0_163 = arith.constant 0 : index
    %295 = vector.load %arg12[%c0_162, %c0_163] : memref<1x8xf32, #tpu.memory_space<vmem>>, vector<1x8xf32>
    %296 = vector.broadcast %295 : vector<1x8xf32> to vector<64x8xf32>
    %297 = arith.addf %294, %296 : vector<64x8xf32>
    %c0_164 = arith.constant 0 : index
    %c0_165 = arith.constant 0 : index
    %298 = vector.load %arg13[%c0_164, %c0_165] : memref<64x8xf32, #tpu.memory_space<vmem>>, vector<64x8xf32>
    tpu.vector_store %arg13[%c0_164, %c0_165], %297 {strides = array<i32>} : memref<64x8xf32, #tpu.memory_space<vmem>>, vector<64x8xf32>,
    return
  }
  func.func @transform_0(%arg0: i32) -> (i32, i32) {
    %c0_i32 = arith.constant 0 : i32
    %c0_i32_0 = arith.constant 0 : i32
    %c0_i32_1 = arith.constant 0 : i32
    return %c0_i32, %c0_i32_0 : i32, i32
  }
  func.func @transform_1(%arg0: i32) -> (i32, i32, i32) {
    %c0_i32 = arith.constant 0 : i32
    %c0_i32_0 = arith.constant 0 : i32
    %c0_i32_1 = arith.constant 0 : i32
    %c0_i32_2 = arith.constant 0 : i32
    return %c0_i32, %c0_i32_0, %c0_i32_1 : i32, i32, i32
  }
  func.func @transform_2(%arg0: i32) -> (i32, i32) {
    %c0_i32 = arith.constant 0 : i32
    %c0_i32_0 = arith.constant 0 : i32
    %c0_i32_1 = arith.constant 0 : i32
    return %c0_i32, %c0_i32_0 : i32, i32
  }
  func.func @transform_3(%arg0: i32) -> (i32, i32) {
    %c0_i32 = arith.constant 0 : i32
    %c0_i32_0 = arith.constant 0 : i32
    %c0_i32_1 = arith.constant 0 : i32
    return %c0_i32, %c0_i32_0 : i32, i32
  }
  func.func @transform_4(%arg0: i32) -> (i32, i32, i32) {
    %c0_i32 = arith.constant 0 : i32
    %c0_i32_0 = arith.constant 0 : i32
    %c0_i32_1 = arith.constant 0 : i32
    %c0_i32_2 = arith.constant 0 : i32
    return %c0_i32, %c0_i32_0, %c0_i32_1 : i32, i32, i32
  }
  func.func @transform_5(%arg0: i32) -> (i32, i32, i32) {
    %c0_i32 = arith.constant 0 : i32
    %c0_i32_0 = arith.constant 0 : i32
    %c0_i32_1 = arith.constant 0 : i32
    %c0_i32_2 = arith.constant 0 : i32
    return %c0_i32, %c0_i32_0, %c0_i32_1 : i32, i32, i32
  }
  func.func @transform_6(%arg0: i32) -> (i32, i32, i32) {
    %c0_i32 = arith.constant 0 : i32
    %c0_i32_0 = arith.constant 0 : i32
    %c0_i32_1 = arith.constant 0 : i32
    %c0_i32_2 = arith.constant 0 : i32
    return %c0_i32, %c0_i32_0, %c0_i32_1 : i32, i32, i32
  }
  func.func @transform_7(%arg0: i32) -> (i32, i32) {
    %c0_i32 = arith.constant 0 : i32
    %c0_i32_0 = arith.constant 0 : i32
    %c0_i32_1 = arith.constant 0 : i32
    return %c0_i32, %c0_i32_0 : i32, i32
  }
  func.func @transform_8(%arg0: i32) -> (i32, i32, i32) {
    %c0_i32 = arith.constant 0 : i32
    %c0_i32_0 = arith.constant 0 : i32
    %c0_i32_1 = arith.constant 0 : i32
    %c0_i32_2 = arith.constant 0 : i32
    return %c0_i32, %c0_i32_0, %c0_i32_1 : i32, i32, i32
  }
  func.func @transform_9(%arg0: i32) -> (i32, i32, i32) {
    %c0_i32 = arith.constant 0 : i32
    %c0_i32_0 = arith.constant 0 : i32
    %c0_i32_1 = arith.constant 0 : i32
    %c0_i32_2 = arith.constant 0 : i32
    return %c0_i32, %c0_i32_0, %c0_i32_1 : i32, i32, i32
  }
  func.func @transform_10(%arg0: i32) -> (i32, i32, i32) {
    %c0_i32 = arith.constant 0 : i32
    %c0_i32_0 = arith.constant 0 : i32
    %c0_i32_1 = arith.constant 0 : i32
    %c0_i32_2 = arith.constant 0 : i32
    return %c0_i32, %c0_i32_0, %c0_i32_1 : i32, i32, i32
  }
  func.func @transform_11(%arg0: i32) -> (i32, i32) {
    %c0_i32 = arith.constant 0 : i32
    %c0_i32_0 = arith.constant 0 : i32
    %c0_i32_1 = arith.constant 0 : i32
    return %c0_i32, %c0_i32_0 : i32, i32
  }
  func.func @transform_12(%arg0: i32) -> (i32, i32) {
    %c0_i32 = arith.constant 0 : i32
    %c0_i32_0 = arith.constant 0 : i32
    %c0_i32_1 = arith.constant 0 : i32
    return %c0_i32, %c0_i32_0 : i32, i32
  }
}

</mosaic_0001>

<llo_original>
// kernel: tpu_custom_call.1
$region0: #{tpu_custom_call.1}
  #allocation0 [shape = 'u32[]', space=smem, size = 0x4, offset = 0x4, fixed_abs, tag = 'smem constant byte address 0x4 - core index']
  #allocation1 [shape = 'u32[144,128]{1,0:T(1,128)}', space=vmem, size = 0x12000, scoped, tag = 'internal scratch']
  %s0 = inlined_call_operand.vmem [shape: f32[64,16], index: 0, kind: input, shape index: {}]
  %s1 = inlined_call_operand.hbm [shape: f32[4,64,64], index: 1, kind: input, shape index: {}]
  %s2 = inlined_call_operand.vmem [shape: f32[16,32], index: 2, kind: input, shape index: {}]
  %s3 = inlined_call_operand.vmem [shape: f32[1,32], index: 3, kind: input, shape index: {}]
  %s4 = inlined_call_operand.vmem [shape: f32[4,1,32], index: 4, kind: input, shape index: {}]
  %s5 = inlined_call_operand.vmem [shape: f32[4,1,32], index: 5, kind: input, shape index: {}]
  %s6 = inlined_call_operand.vmem [shape: f32[4,32,8], index: 6, kind: input, shape index: {}]
  %s7 = inlined_call_operand.vmem [shape: f32[1,8], index: 7, kind: input, shape index: {}]
  %s8 = inlined_call_operand.vmem [shape: f32[4,1,8], index: 8, kind: input, shape index: {}]
  %s9 = inlined_call_operand.vmem [shape: f32[4,1,8], index: 9, kind: input, shape index: {}]
  %s10 = inlined_call_operand.vmem [shape: f32[4,8,8], index: 10, kind: input, shape index: {}]
  %s11 = inlined_call_operand.vmem [shape: f32[1,8], index: 11, kind: input, shape index: {}]
  %s12 = inlined_call_operand.vmem [shape: f32[64,8], index: 12, kind: output, shape index: {}]
  %s13 = sld [smem:[#allocation0]]
  $region62: #{tpu_custom_call.1} parent=0
    _
  %s15 = ssub.s32 1, %s13
  %s16 = scalar_select 0, %s15, %s13
  $region1: #{tpu_custom_call.1} parent=0
    #allocation2 [shape = 'u8[131072]{0}', space=vmem, size = 0x20000, scoped, tag = 'input window, operand 1, single buffered']
    #allocation3 [shape = 's32[1]{0}', space=sflag, size = 0x4, scoped, tag = 'scoped memory for tpu_custom_call.1']
    %17 = vsyncpa [#allocation3], 0
    // Predicated region
    $region2: #{tpu_custom_call.1} parent=1 // pred_check
      _
    $region3: #{tpu_custom_call.1} parent=1 // pred_check_branch
      %19 = sbr.rel (0) target = $region5
    $region4: #{tpu_custom_call.1} parent=1 // pred_region
      _
    $region5: #{tpu_custom_call.1} parent=1 // pred_fallthru
      _
    // Predicated region
    $region6: #{tpu_custom_call.1} parent=1 // pred_check
      _
    $region7: #{tpu_custom_call.1} parent=1 // pred_check_branch
      %21 = sbr.rel (0) target = $region9
    $region8: #{tpu_custom_call.1} parent=1 // pred_region
      %s23 = ssub.s32 4096, 4096
      %24 = vsyncadd [#allocation3], %s23
      %s25 = sshll.u32 [#allocation2], 4
      %s26 = int_to_ptr.vmem [resolvable:$true] %s25
      %31 = dma.hbm_to_vmem [thread:$0]  %s1, 4096, %s26, [#allocation3], 128, 128, 8
    $region9: #{tpu_custom_call.1} parent=1 // pred_fallthru
      _
    // Predicated region
    $region10: #{tpu_custom_call.1} parent=1 // pred_check
      _
    $region11: #{tpu_custom_call.1} parent=1 // pred_check_branch
      %33 = sbr.rel (0) target = $region13
    $region12: #{tpu_custom_call.1} parent=1 // pred_region
      _
    $region13: #{tpu_custom_call.1} parent=1 // pred_fallthru
      _
    // Predicated region
    $region14: #{tpu_custom_call.1} parent=1 // pred_check
      _
    $region15: #{tpu_custom_call.1} parent=1 // pred_check_branch
      %35 = sbr.rel (0) target = $region17
    $region16: #{tpu_custom_call.1} parent=1 // pred_region
      _
    $region17: #{tpu_custom_call.1} parent=1 // pred_fallthru
      _
    // Predicated region
    $region18: #{tpu_custom_call.1} parent=1 // pred_check
      _
    $region19: #{tpu_custom_call.1} parent=1 // pred_check_branch
      %37 = sbr.rel (0) target = $region21
    $region20: #{tpu_custom_call.1} parent=1 // pred_region
      _
    $region21: #{tpu_custom_call.1} parent=1 // pred_fallthru
      _
    // Predicated region
    $region22: #{tpu_custom_call.1} parent=1 // pred_check
      _
    $region23: #{tpu_custom_call.1} parent=1 // pred_check_branch
      %39 = sbr.rel (0) target = $region25
    $region24: #{tpu_custom_call.1} parent=1 // pred_region
      _
    $region25: #{tpu_custom_call.1} parent=1 // pred_fallthru
      _
    // Predicated region
    $region26: #{tpu_custom_call.1} parent=1 // pred_check
      _
    $region27: #{tpu_custom_call.1} parent=1 // pred_check_branch
      %41 = sbr.rel (0) target = $region29
    $region28: #{tpu_custom_call.1} parent=1 // pred_region
      _
    $region29: #{tpu_custom_call.1} parent=1 // pred_fallthru
      _
    // Predicated region
    $region30: #{tpu_custom_call.1} parent=1 // pred_check
      _
    $region31: #{tpu_custom_call.1} parent=1 // pred_check_branch
      %43 = sbr.rel (0) target = $region33
    $region32: #{tpu_custom_call.1} parent=1 // pred_region
      _
    $region33: #{tpu_custom_call.1} parent=1 // pred_fallthru
      _
    // Predicated region
    $region34: #{tpu_custom_call.1} parent=1 // pred_check
      _
    $region35: #{tpu_custom_call.1} parent=1 // pred_check_branch
      %45 = sbr.rel (0) target = $region37
    $region36: #{tpu_custom_call.1} parent=1 // pred_region
      _
    $region37: #{tpu_custom_call.1} parent=1 // pred_fallthru
      _
    // Predicated region
    $region38: #{tpu_custom_call.1} parent=1 // pred_check
      _
    $region39: #{tpu_custom_call.1} parent=1 // pred_check_branch
      %47 = sbr.rel (0) target = $region41
    $region40: #{tpu_custom_call.1} parent=1 // pred_region
      _
    $region41: #{tpu_custom_call.1} parent=1 // pred_fallthru
      _
    // Predicated region
    $region42: #{tpu_custom_call.1} parent=1 // pred_check
      _
    $region43: #{tpu_custom_call.1} parent=1 // pred_check_branch
      %49 = sbr.rel (0) target = $region45
    $region44: #{tpu_custom_call.1} parent=1 // pred_region
      _
    $region45: #{tpu_custom_call.1} parent=1 // pred_fallthru
      _
    // Predicated region
    $region46: #{tpu_custom_call.1} parent=1 // pred_check
      _
    $region47: #{tpu_custom_call.1} parent=1 // pred_check_branch
      %51 = sbr.rel (0) target = $region49
    $region48: #{tpu_custom_call.1} parent=1 // pred_region
      _
    $region49: #{tpu_custom_call.1} parent=1 // pred_fallthru
      _
    // Predicated region
    $region50: #{tpu_custom_call.1} parent=1 // pred_check
      _
    $region51: #{tpu_custom_call.1} parent=1 // pred_check_branch
      %53 = sbr.rel (0) target = $region53
    $region52: #{tpu_custom_call.1} parent=1 // pred_region
      %54 = dma.done [#allocation3], 4096
    $region53: #{tpu_custom_call.1} parent=1 // pred_fallthru
      _
    %v55 = vld [vmem:[%s0] sm:$0xff]
    %v56 = vld [vmem:[%s0 + $0x8] sm:$0xff]
    %v57 = vld [vmem:[%s0 + $0x10] sm:$0xff]
    %v58 = vld [vmem:[%s0 + $0x18] sm:$0xff]
    %v59 = vld [vmem:[%s0 + $0x20] sm:$0xff]
    %v60 = vld [vmem:[%s0 + $0x28] sm:$0xff]
    %v61 = vld [vmem:[%s0 + $0x30] sm:$0xff]
    %v62 = vld [vmem:[%s0 + $0x38] sm:$0xff]
    %v63 = vld [vmem:[%s2] sm:$0xff]
    %v64 = vld [vmem:[%s2 + $0x8] sm:$0xff]
    %vm65 = vcmask 130048
    %v67 = vsel %vm65, %v55, 0
    %v70 = vsel %vm65, %v56, 0
    %v73 = vsel %vm65, %v57, 0
    %v76 = vsel %vm65, %v58, 0
    %v79 = vsel %vm65, %v59, 0
    %v82 = vsel %vm65, %v60, 0
    %v85 = vsel %vm65, %v61, 0
    %v88 = vsel %vm65, %v62, 0
    %90 = vmatprep.subr.mxu0 0.0
    %91 = vmatpush1.msra.mxu0 0.0
    %92 = vmatprep.subr.mxu0 0.0
    %93 = vmatpush1.msra.mxu0 0.0
    %94 = vmatprep.subr.mxu0 0.0
    %95 = vmatpush1.msra.mxu0 0.0
    %96 = vmatprep.subr.mxu0 0.0
    %97 = vmatpush1.msra.mxu0 0.0
    %98 = vmatprep.subr.mxu0 0.0
    %99 = vmatpush1.msra.mxu0 0.0
    %100 = vmatprep.subr.mxu0 0.0
    %101 = vmatpush1.msra.mxu0 0.0
    %102 = vmatprep.subr.mxu0 0.0
    %103 = vmatpush1.msra.mxu0 0.0
    %104 = vmatprep.subr.mxu0 0.0
    %105 = vmatpush1.msra.mxu0 0.0
    %106 = vmatprep.subr.mxu0 0.0
    %107 = vmatpush1.msra.mxu0 0.0
    %108 = vmatprep.subr.mxu0 0.0
    %109 = vmatpush1.msra.mxu0 0.0
    %110 = vmatprep.subr.mxu0 0.0
    %111 = vmatpush1.msra.mxu0 0.0
    %112 = vmatprep.subr.mxu0 0.0
    %113 = vmatpush1.msra.mxu0 0.0
    %114 = vmatprep.subr.mxu0 0.0
    %115 = vmatpush1.msra.mxu0 0.0
    %116 = vmatprep.subr.mxu0 0.0
    %117 = vmatpush1.msra.mxu0 0.0
    %118 = vmatprep.subr.mxu0 0.0
    %119 = vmatpush1.msra.mxu0 %v64
    %120 = vmatprep.subr.mxu0 0.0
    %121 = vmatpush1.msra.mxu0 %v63
    %122 = vmatprep.subr.mxu0 0.0
    %123 = vmatpush2.msra.mxu0 0.0
    %124 = vmatprep.subr.mxu0 0.0
    %125 = vmatpush2.msra.mxu0 0.0
    %126 = vmatprep.subr.mxu0 0.0
    %127 = vmatpush2.msra.mxu0 0.0
    %128 = vmatprep.subr.mxu0 0.0
    %129 = vmatpush2.msra.mxu0 0.0
    %130 = vmatprep.subr.mxu0 0.0
    %131 = vmatpush2.msra.mxu0 0.0
    %132 = vmatprep.subr.mxu0 0.0
    %133 = vmatpush2.msra.mxu0 0.0
    %134 = vmatprep.subr.mxu0 0.0
    %135 = vmatpush2.msra.mxu0 0.0
    %136 = vmatprep.subr.mxu0 0.0
    %137 = vmatpush2.msra.mxu0 0.0
    %138 = vmatprep.subr.mxu0 0.0
    %139 = vmatpush2.msra.mxu0 0.0
    %140 = vmatprep.subr.mxu0 0.0
    %141 = vmatpush2.msra.mxu0 0.0
    %142 = vmatprep.subr.mxu0 0.0
    %143 = vmatpush2.msra.mxu0 0.0
    %144 = vmatprep.subr.mxu0 0.0
    %145 = vmatpush2.msra.mxu0 0.0
    %146 = vmatprep.subr.mxu0 0.0
    %147 = vmatpush2.msra.mxu0 0.0
    %148 = vmatprep.subr.mxu0 0.0
    %149 = vmatpush2.msra.mxu0 0.0
    %150 = vmatprep.subr.mxu0 0.0
    %151 = vmatpush2.msra.mxu0 0.0
    %152 = vmatprep.subr.mxu0 0.0
    %153 = vmatpush2.msra.mxu0 0.0
    %154 = vmatprep.mubr.f32.mxu0 0.0
    %155 = vmatmul.mubr.f32.gmra.mxu0 %v67
    %v156 = vpop.f32.mrf.mxu0
    %v157 = vadd.f32 0.0, %v156
    %v158 = vpop.f32.mrf.mxu0
    %159 = vmatprep.mubr.f32.mxu0 0.0
    %160 = vmatmul.mubr.f32.gmra.mxu0 %v70
    %v161 = vpop.f32.mrf.mxu0
    %v162 = vadd.f32 0.0, %v161
    %v163 = vpop.f32.mrf.mxu0
    %164 = vmatprep.mubr.f32.mxu0 0.0
    %165 = vmatmul.mubr.f32.gmra.mxu0 %v73
    %v166 = vpop.f32.mrf.mxu0
    %v167 = vadd.f32 0.0, %v166
    %v168 = vpop.f32.mrf.mxu0
    %169 = vmatprep.mubr.f32.mxu0 0.0
    %170 = vmatmul.mubr.f32.gmra.mxu0 %v76
    %v171 = vpop.f32.mrf.mxu0
    %v172 = vadd.f32 0.0, %v171
    %v173 = vpop.f32.mrf.mxu0
    %174 = vmatprep.mubr.f32.mxu0 0.0
    %175 = vmatmul.mubr.f32.gmra.mxu0 %v79
    %v176 = vpop.f32.mrf.mxu0
    %v177 = vadd.f32 0.0, %v176
    %v178 = vpop.f32.mrf.mxu0
    %179 = vmatprep.mubr.f32.mxu0 0.0
    %180 = vmatmul.mubr.f32.gmra.mxu0 %v82
    %v181 = vpop.f32.mrf.mxu0
    %v182 = vadd.f32 0.0, %v181
    %v183 = vpop.f32.mrf.mxu0
    %184 = vmatprep.mubr.f32.mxu0 0.0
    %185 = vmatmul.mubr.f32.gmra.mxu0 %v85
    %v186 = vpop.f32.mrf.mxu0
    %v187 = vadd.f32 0.0, %v186
    %v188 = vpop.f32.mrf.mxu0
    %189 = vmatprep.mubr.f32.mxu0 0.0
    %190 = vmatmul.mubr.f32.gmra.mxu0 %v88
    %v191 = vpop.f32.mrf.mxu0
    %v192 = vadd.f32 0.0, %v191
    %v193 = vpop.f32.mrf.mxu0
    %194 = vdwg.mxu0
    %v195 = vld [vmem:[%s3] sm:$0x1]
    %v196 = vld [vmem:[#allocation2] sm:$0xff]
    %v197 = vld [vmem:[#allocation2 + $0x8] sm:$0xff]
    %v198 = vld [vmem:[#allocation2 + $0x10] sm:$0xff]
    %v199 = vld [vmem:[#allocation2 + $0x18] sm:$0xff]
    %v200 = vld [vmem:[#allocation2 + $0x20] sm:$0xff]
    %v201 = vld [vmem:[#allocation2 + $0x28] sm:$0xff]
    %v202 = vld [vmem:[#allocation2 + $0x30] sm:$0xff]
    %v203 = vld [vmem:[#allocation2 + $0x38] sm:$0xff]
    %v205 = vlaneseq
    %v206 = vshrl.u32 %v205, 7
    %v207 = vsub.s32 0, %v206
    %v208 = vrot.slane %v195, %v207
    %vm210 = vcmask 523264
    %v212 = vsel %vm210, %v196, 0
    %v215 = vsel %vm210, %v197, 0
    %v218 = vsel %vm210, %v198, 0
    %v221 = vsel %vm210, %v199, 0
    %v224 = vsel %vm210, %v200, 0
    %v227 = vsel %vm210, %v201, 0
    %v230 = vsel %vm210, %v202, 0
    %v233 = vsel %vm210, %v203, 0
    %235 = vmatprep.subr.mxu0 0.0
    %236 = vmatpush1.msra.mxu0 0.0
    %237 = vmatprep.subr.mxu0 0.0
    %238 = vmatpush1.msra.mxu0 0.0
    %239 = vmatprep.subr.mxu0 0.0
    %240 = vmatpush1.msra.mxu0 0.0
    %241 = vmatprep.subr.mxu0 0.0
    %242 = vmatpush1.msra.mxu0 0.0
    %243 = vmatprep.subr.mxu0 0.0
    %244 = vmatpush1.msra.mxu0 0.0
    %245 = vmatprep.subr.mxu0 0.0
    %246 = vmatpush1.msra.mxu0 0.0
    %247 = vmatprep.subr.mxu0 0.0
    %248 = vmatpush1.msra.mxu0 0.0
    %249 = vmatprep.subr.mxu0 0.0
    %250 = vmatpush1.msra.mxu0 0.0
    %251 = vmatprep.subr.mxu0 0.0
    %252 = vmatpush1.msra.mxu0 %v192
    %253 = vmatprep.subr.mxu0 0.0
    %254 = vmatpush1.msra.mxu0 %v187
    %255 = vmatprep.subr.mxu0 0.0
    %256 = vmatpush1.msra.mxu0 %v182
    %257 = vmatprep.subr.mxu0 0.0
    %258 = vmatpush1.msra.mxu0 %v177
    %259 = vmatprep.subr.mxu0 0.0
    %260 = vmatpush1.msra.mxu0 %v172
    %261 = vmatprep.subr.mxu0 0.0
    %262 = vmatpush1.msra.mxu0 %v167
    %263 = vmatprep.subr.mxu0 0.0
    %264 = vmatpush1.msra.mxu0 %v162
    %265 = vmatprep.subr.mxu0 0.0
    %266 = vmatpush1.msra.mxu0 %v157
    %267 = vmatprep.subr.mxu0 0.0
    %268 = vmatpush2.msra.mxu0 0.0
    %269 = vmatprep.subr.mxu0 0.0
    %270 = vmatpush2.msra.mxu0 0.0
    %271 = vmatprep.subr.mxu0 0.0
    %272 = vmatpush2.msra.mxu0 0.0
    %273 = vmatprep.subr.mxu0 0.0
    %274 = vmatpush2.msra.mxu0 0.0
    %275 = vmatprep.subr.mxu0 0.0
    %276 = vmatpush2.msra.mxu0 0.0
    %277 = vmatprep.subr.mxu0 0.0
    %278 = vmatpush2.msra.mxu0 0.0
    %279 = vmatprep.subr.mxu0 0.0
    %280 = vmatpush2.msra.mxu0 0.0
    %281 = vmatprep.subr.mxu0 0.0
    %282 = vmatpush2.msra.mxu0 0.0
    %283 = vmatprep.subr.mxu0 0.0
    %284 = vmatpush2.msra.mxu0 0.0
    %285 = vmatprep.subr.mxu0 0.0
    %286 = vmatpush2.msra.mxu0 0.0
    %287 = vmatprep.subr.mxu0 0.0
    %288 = vmatpush2.msra.mxu0 0.0
    %289 = vmatprep.subr.mxu0 0.0
    %290 = vmatpush2.msra.mxu0 0.0
    %291 = vmatprep.subr.mxu0 0.0
    %292 = vmatpush2.msra.mxu0 0.0
    %293 = vmatprep.subr.mxu0 0.0
    %294 = vmatpush2.msra.mxu0 0.0
    %295 = vmatprep.subr.mxu0 0.0
    %296 = vmatpush2.msra.mxu0 0.0
    %297 = vmatprep.subr.mxu0 0.0
    %298 = vmatpush2.msra.mxu0 0.0
    %299 = vmatprep.mubr.f32.mxu0 0.0
    %300 = vmatmul.mubr.f32.gmra.mxu0 %v212
    %v301 = vpop.f32.mrf.mxu0
    %v302 = vadd.f32 %v208, %v301
    %v303 = vpop.f32.mrf.mxu0
    %304 = vmatprep.mubr.f32.mxu0 0.0
    %305 = vmatmul.mubr.f32.gmra.mxu0 %v215
    %v306 = vpop.f32.mrf.mxu0
    %v307 = vadd.f32 %v208, %v306
    %v308 = vpop.f32.mrf.mxu0
    %309 = vmatprep.mubr.f32.mxu0 0.0
    %310 = vmatmul.mubr.f32.gmra.mxu0 %v218
    %v311 = vpop.f32.mrf.mxu0
    %v312 = vadd.f32 %v208, %v311
    %v313 = vpop.f32.mrf.mxu0
    %314 = vmatprep.mubr.f32.mxu0 0.0
    %315 = vmatmul.mubr.f32.gmra.mxu0 %v221
    %v316 = vpop.f32.mrf.mxu0
    %v317 = vadd.f32 %v208, %v316
    %v318 = vpop.f32.mrf.mxu0
    %319 = vmatprep.mubr.f32.mxu0 0.0
    %320 = vmatmul.mubr.f32.gmra.mxu0 %v224
    %v321 = vpop.f32.mrf.mxu0
    %v322 = vadd.f32 %v208, %v321
    %v323 = vpop.f32.mrf.mxu0
    %324 = vmatprep.mubr.f32.mxu0 0.0
    %325 = vmatmul.mubr.f32.gmra.mxu0 %v227
    %v326 = vpop.f32.mrf.mxu0
    %v327 = vadd.f32 %v208, %v326
    %v328 = vpop.f32.mrf.mxu0
    %329 = vmatprep.mubr.f32.mxu0 0.0
    %330 = vmatmul.mubr.f32.gmra.mxu0 %v230
    %v331 = vpop.f32.mrf.mxu0
    %v332 = vadd.f32 %v208, %v331
    %v333 = vpop.f32.mrf.mxu0
    %334 = vmatprep.mubr.f32.mxu0 0.0
    %335 = vmatmul.mubr.f32.gmra.mxu0 %v233
    %v336 = vpop.f32.mrf.mxu0
    %v337 = vadd.f32 %v208, %v336
    %v338 = vpop.f32.mrf.mxu0
    %339 = vdwg.mxu0
    %v340 = vld [vmem:[%s4] sm:$0x1]
    %v341 = vld [vmem:[%s5] sm:$0x1]
    %vm342 = vcmask 261120
    %v343 = vsel %vm342, %v302, 0.0
    %v344 = vsel %vm342, %v307, 0.0
    %v345 = vadd.f32 %v343, %v344
    %v346 = vsel %vm342, %v312, 0.0
    %v347 = vadd.f32 %v345, %v346
    %v348 = vsel %vm342, %v317, 0.0
    %v349 = vadd.f32 %v347, %v348
    %v350 = vsel %vm342, %v322, 0.0
    %v351 = vadd.f32 %v349, %v350
    %v352 = vsel %vm342, %v327, 0.0
    %v353 = vadd.f32 %v351, %v352
    %v354 = vsel %vm342, %v332, 0.0
    %v355 = vadd.f32 %v353, %v354
    %v356 = vsel %vm342, %v337, 0.0
    %v357 = vadd.f32 %v355, %v356
    %v358 = vrot.slane %v357, 4
    %v359 = vadd.f32 %v357, %v358
    %v360 = vrot.slane %v359, 2
    %v361 = vadd.f32 %v359, %v360
    %v362 = vrot.slane %v361, 1
    %v363 = vadd.f32 %v361, %v362
    %v364 = vrcp.pop 64.0
    %v365 = vmul.f32 %v363, %v364
    %v366 = vsub.f32 %v302, %v365
    %v367 = vsub.f32 %v307, %v365
    %v368 = vsub.f32 %v312, %v365
    %v369 = vsub.f32 %v317, %v365
    %v370 = vsub.f32 %v322, %v365
    %v371 = vsub.f32 %v327, %v365
    %v372 = vsub.f32 %v332, %v365
    %v373 = vsub.f32 %v337, %v365
    %v374 = vmul.f32 %v366, %v366
    %v375 = vmul.f32 %v367, %v367
    %v376 = vmul.f32 %v368, %v368
    %v377 = vmul.f32 %v369, %v369
    %v378 = vmul.f32 %v370, %v370
    %v379 = vmul.f32 %v371, %v371
    %v380 = vmul.f32 %v372, %v372
    %v381 = vmul.f32 %v373, %v373
    %v382 = vsel %vm342, %v374, 0.0
    %v383 = vsel %vm342, %v375, 0.0
    %v384 = vadd.f32 %v382, %v383
    %v385 = vsel %vm342, %v376, 0.0
    %v386 = vadd.f32 %v384, %v385
    %v387 = vsel %vm342, %v377, 0.0
    %v388 = vadd.f32 %v386, %v387
    %v389 = vsel %vm342, %v378, 0.0
    %v390 = vadd.f32 %v388, %v389
    %v391 = vsel %vm342, %v379, 0.0
    %v392 = vadd.f32 %v390, %v391
    %v393 = vsel %vm342, %v380, 0.0
    %v394 = vadd.f32 %v392, %v393
    %v395 = vsel %vm342, %v381, 0.0
    %v396 = vadd.f32 %v394, %v395
    %v397 = vrot.slane %v396, 4
    %v398 = vadd.f32 %v396, %v397
    %v399 = vrot.slane %v398, 2
    %v400 = vadd.f32 %v398, %v399
    %v401 = vrot.slane %v400, 1
    %v402 = vadd.f32 %v400, %v401
    %v403 = vmul.f32 %v402, %v364
    %v404 = vadd.f32 %v403, 1e-05
    %v405 = vrsqrt.pop %v404
    %v406 = vmul.f32 %v366, %v405
    %v407 = vmul.f32 %v367, %v405
    %v408 = vmul.f32 %v368, %v405
    %v409 = vmul.f32 %v369, %v405
    %v410 = vmul.f32 %v370, %v405
    %v411 = vmul.f32 %v371, %v405
    %v412 = vmul.f32 %v372, %v405
    %v413 = vmul.f32 %v373, %v405
    %v415 = vlaneseq
    %v416 = vshrl.u32 %v415, 7
    %v417 = vsub.s32 0, %v416
    %v418 = vrot.slane %v340, %v417
    %v420 = vmul.f32 %v406, %v418
    %v421 = vmul.f32 %v407, %v418
    %v422 = vmul.f32 %v408, %v418
    %v423 = vmul.f32 %v409, %v418
    %v424 = vmul.f32 %v410, %v418
    %v425 = vmul.f32 %v411, %v418
    %v426 = vmul.f32 %v412, %v418
    %v427 = vmul.f32 %v413, %v418
    %v429 = vlaneseq
    %v430 = vshrl.u32 %v429, 7
    %v431 = vsub.s32 0, %v430
    %v432 = vrot.slane %v341, %v431
    %v434 = vadd.f32 %v420, %v432
    %v435 = vadd.f32 %v421, %v432
    %v436 = vadd.f32 %v422, %v432
    %v437 = vadd.f32 %v423, %v432
    %v438 = vadd.f32 %v424, %v432
    %v439 = vadd.f32 %v425, %v432
    %v440 = vadd.f32 %v426, %v432
    %v441 = vadd.f32 %v427, %v432
    %v442 = vmax.f32 %v434, 0.0
    %v443 = vmax.f32 %v435, 0.0
    %v444 = vmax.f32 %v436, 0.0
    %v445 = vmax.f32 %v437, 0.0
    %v446 = vmax.f32 %v438, 0.0
    %v447 = vmax.f32 %v439, 0.0
    %v448 = vmax.f32 %v440, 0.0
    %v449 = vmax.f32 %v441, 0.0
    %v450 = vld [vmem:[%s6] sm:$0xff]
    %v451 = vld [vmem:[%s6 + $0x8] sm:$0xff]
    %v452 = vld [vmem:[%s6 + $0x10] sm:$0xff]
    %v453 = vld [vmem:[%s6 + $0x18] sm:$0xff]
    %s454 = scalar_lea.vmem [#allocation2], 64
    %v455 = vld [vmem:[%s454] sm:$0xff]
    %v456 = vld [vmem:[%s454 + $0x8] sm:$0xff]
    %v457 = vld [vmem:[%s454 + $0x10] sm:$0xff]
    %v458 = vld [vmem:[%s454 + $0x18] sm:$0xff]
    %v459 = vld [vmem:[%s454 + $0x20] sm:$0xff]
    %v460 = vld [vmem:[%s454 + $0x28] sm:$0xff]
    %v461 = vld [vmem:[%s454 + $0x30] sm:$0xff]
    %v462 = vld [vmem:[%s454 + $0x38] sm:$0xff]
    %v464 = vsel %vm210, %v455, 0
    %v467 = vsel %vm210, %v456, 0
    %v470 = vsel %vm210, %v457, 0
    %v473 = vsel %vm210, %v458, 0
    %v476 = vsel %vm210, %v459, 0
    %v479 = vsel %vm210, %v460, 0
    %v482 = vsel %vm210, %v461, 0
    %v485 = vsel %vm210, %v462, 0
    %487 = vmatprep.subr.mxu0 0.0
    %488 = vmatpush1.msra.mxu0 0.0
    %489 = vmatprep.subr.mxu0 0.0
    %490 = vmatpush1.msra.mxu0 0.0
    %491 = vmatprep.subr.mxu0 0.0
    %492 = vmatpush1.msra.mxu0 0.0
    %493 = vmatprep.subr.mxu0 0.0
    %494 = vmatpush1.msra.mxu0 0.0
    %495 = vmatprep.subr.mxu0 0.0
    %496 = vmatpush1.msra.mxu0 0.0
    %497 = vmatprep.subr.mxu0 0.0
    %498 = vmatpush1.msra.mxu0 0.0
    %499 = vmatprep.subr.mxu0 0.0
    %500 = vmatpush1.msra.mxu0 0.0
    %501 = vmatprep.subr.mxu0 0.0
    %502 = vmatpush1.msra.mxu0 0.0
    %503 = vmatprep.subr.mxu0 0.0
    %504 = vmatpush1.msra.mxu0 %v192
    %505 = vmatprep.subr.mxu0 0.0
    %506 = vmatpush1.msra.mxu0 %v187
    %507 = vmatprep.subr.mxu0 0.0
    %508 = vmatpush1.msra.mxu0 %v182
    %509 = vmatprep.subr.mxu0 0.0
    %510 = vmatpush1.msra.mxu0 %v177
    %511 = vmatprep.subr.mxu0 0.0
    %512 = vmatpush1.msra.mxu0 %v172
    %513 = vmatprep.subr.mxu0 0.0
    %514 = vmatpush1.msra.mxu0 %v167
    %515 = vmatprep.subr.mxu0 0.0
    %516 = vmatpush1.msra.mxu0 %v162
    %517 = vmatprep.subr.mxu0 0.0
    %518 = vmatpush1.msra.mxu0 %v157
    %519 = vmatprep.subr.mxu0 0.0
    %520 = vmatpush2.msra.mxu0 0.0
    %521 = vmatprep.subr.mxu0 0.0
    %522 = vmatpush2.msra.mxu0 0.0
    %523 = vmatprep.subr.mxu0 0.0
    %524 = vmatpush2.msra.mxu0 0.0
    %525 = vmatprep.subr.mxu0 0.0
    %526 = vmatpush2.msra.mxu0 0.0
    %527 = vmatprep.subr.mxu0 0.0
    %528 = vmatpush2.msra.mxu0 0.0
    %529 = vmatprep.subr.mxu0 0.0
    %530 = vmatpush2.msra.mxu0 0.0
    %531 = vmatprep.subr.mxu0 0.0
    %532 = vmatpush2.msra.mxu0 0.0
    %533 = vmatprep.subr.mxu0 0.0
    %534 = vmatpush2.msra.mxu0 0.0
    %535 = vmatprep.subr.mxu0 0.0
    %536 = vmatpush2.msra.mxu0 0.0
    %537 = vmatprep.subr.mxu0 0.0
    %538 = vmatpush2.msra.mxu0 0.0
    %539 = vmatprep.subr.mxu0 0.0
    %540 = vmatpush2.msra.mxu0 0.0
    %541 = vmatprep.subr.mxu0 0.0
    %542 = vmatpush2.msra.mxu0 0.0
    %543 = vmatprep.subr.mxu0 0.0
    %544 = vmatpush2.msra.mxu0 0.0
    %545 = vmatprep.subr.mxu0 0.0
    %546 = vmatpush2.msra.mxu0 0.0
    %547 = vmatprep.subr.mxu0 0.0
    %548 = vmatpush2.msra.mxu0 0.0
    %549 = vmatprep.subr.mxu0 0.0
    %550 = vmatpush2.msra.mxu0 0.0
    %551 = vmatprep.mubr.f32.mxu0 0.0
    %552 = vmatmul.mubr.f32.gmra.mxu0 %v464
    %v553 = vpop.f32.mrf.mxu0
    %v554 = vadd.f32 %v208, %v553
    %v555 = vpop.f32.mrf.mxu0
    %556 = vmatprep.mubr.f32.mxu0 0.0
    %557 = vmatmul.mubr.f32.gmra.mxu0 %v467
    %v558 = vpop.f32.mrf.mxu0
    %v559 = vadd.f32 %v208, %v558
    %v560 = vpop.f32.mrf.mxu0
    %561 = vmatprep.mubr.f32.mxu0 0.0
    %562 = vmatmul.mubr.f32.gmra.mxu0 %v470
    %v563 = vpop.f32.mrf.mxu0
    %v564 = vadd.f32 %v208, %v563
    %v565 = vpop.f32.mrf.mxu0
    %566 = vmatprep.mubr.f32.mxu0 0.0
    %567 = vmatmul.mubr.f32.gmra.mxu0 %v473
    %v568 = vpop.f32.mrf.mxu0
    %v569 = vadd.f32 %v208, %v568
    %v570 = vpop.f32.mrf.mxu0
    %571 = vmatprep.mubr.f32.mxu0 0.0
    %572 = vmatmul.mubr.f32.gmra.mxu0 %v476
    %v573 = vpop.f32.mrf.mxu0
    %v574 = vadd.f32 %v208, %v573
    %v575 = vpop.f32.mrf.mxu0
    %576 = vmatprep.mubr.f32.mxu0 0.0
    %577 = vmatmul.mubr.f32.gmra.mxu0 %v479
    %v578 = vpop.f32.mrf.mxu0
    %v579 = vadd.f32 %v208, %v578
    %v580 = vpop.f32.mrf.mxu0
    %581 = vmatprep.mubr.f32.mxu0 0.0
    %582 = vmatmul.mubr.f32.gmra.mxu0 %v482
    %v583 = vpop.f32.mrf.mxu0
    %v584 = vadd.f32 %v208, %v583
    %v585 = vpop.f32.mrf.mxu0
    %586 = vmatprep.mubr.f32.mxu0 0.0
    %587 = vmatmul.mubr.f32.gmra.mxu0 %v485
    %v588 = vpop.f32.mrf.mxu0
    %v589 = vadd.f32 %v208, %v588
    %v590 = vpop.f32.mrf.mxu0
    %591 = vdwg.mxu0
    %s592 = scalar_lea.vmem %s4, 1
    %v593 = vld [vmem:[%s592] sm:$0x1]
    %s594 = scalar_lea.vmem %s5, 1
    %v595 = vld [vmem:[%s594] sm:$0x1]
    %v596 = vsel %vm342, %v554, 0.0
    %v597 = vsel %vm342, %v559, 0.0
    %v598 = vadd.f32 %v596, %v597
    %v599 = vsel %vm342, %v564, 0.0
    %v600 = vadd.f32 %v598, %v599
    %v601 = vsel %vm342, %v569, 0.0
    %v602 = vadd.f32 %v600, %v601
    %v603 = vsel %vm342, %v574, 0.0
    %v604 = vadd.f32 %v602, %v603
    %v605 = vsel %vm342, %v579, 0.0
    %v606 = vadd.f32 %v604, %v605
    %v607 = vsel %vm342, %v584, 0.0
    %v608 = vadd.f32 %v606, %v607
    %v609 = vsel %vm342, %v589, 0.0
    %v610 = vadd.f32 %v608, %v609
    %v611 = vrot.slane %v610, 4
    %v612 = vadd.f32 %v610, %v611
    %v613 = vrot.slane %v612, 2
    %v614 = vadd.f32 %v612, %v613
    %v615 = vrot.slane %v614, 1
    %v616 = vadd.f32 %v614, %v615
    %v617 = vmul.f32 %v616, %v364
    %v618 = vsub.f32 %v554, %v617
    %v619 = vsub.f32 %v559, %v617
    %v620 = vsub.f32 %v564, %v617
    %v621 = vsub.f32 %v569, %v617
    %v622 = vsub.f32 %v574, %v617
    %v623 = vsub.f32 %v579, %v617
    %v624 = vsub.f32 %v584, %v617
    %v625 = vsub.f32 %v589, %v617
    %v626 = vmul.f32 %v618, %v618
    %v627 = vmul.f32 %v619, %v619
    %v628 = vmul.f32 %v620, %v620
    %v629 = vmul.f32 %v621, %v621
    %v630 = vmul.f32 %v622, %v622
    %v631 = vmul.f32 %v623, %v623
    %v632 = vmul.f32 %v624, %v624
    %v633 = vmul.f32 %v625, %v625
    %v634 = vsel %vm342, %v626, 0.0
    %v635 = vsel %vm342, %v627, 0.0
    %v636 = vadd.f32 %v634, %v635
    %v637 = vsel %vm342, %v628, 0.0
    %v638 = vadd.f32 %v636, %v637
    %v639 = vsel %vm342, %v629, 0.0
    %v640 = vadd.f32 %v638, %v639
    %v641 = vsel %vm342, %v630, 0.0
    %v642 = vadd.f32 %v640, %v641
    %v643 = vsel %vm342, %v631, 0.0
    %v644 = vadd.f32 %v642, %v643
    %v645 = vsel %vm342, %v632, 0.0
    %v646 = vadd.f32 %v644, %v645
    %v647 = vsel %vm342, %v633, 0.0
    %v648 = vadd.f32 %v646, %v647
    %v649 = vrot.slane %v648, 4
    %v650 = vadd.f32 %v648, %v649
    %v651 = vrot.slane %v650, 2
    %v652 = vadd.f32 %v650, %v651
    %v653 = vrot.slane %v652, 1
    %v654 = vadd.f32 %v652, %v653
    %v655 = vmul.f32 %v654, %v364
    %v656 = vadd.f32 %v655, 1e-05
    %v657 = vrsqrt.pop %v656
    %v658 = vmul.f32 %v618, %v657
    %v659 = vmul.f32 %v619, %v657
    %v660 = vmul.f32 %v620, %v657
    %v661 = vmul.f32 %v621, %v657
    %v662 = vmul.f32 %v622, %v657
    %v663 = vmul.f32 %v623, %v657
    %v664 = vmul.f32 %v624, %v657
    %v665 = vmul.f32 %v625, %v657
    %v667 = vlaneseq
    %v668 = vshrl.u32 %v667, 7
    %v669 = vsub.s32 0, %v668
    %v670 = vrot.slane %v593, %v669
    %v672 = vmul.f32 %v658, %v670
    %v673 = vmul.f32 %v659, %v670
    %v674 = vmul.f32 %v660, %v670
    %v675 = vmul.f32 %v661, %v670
    %v676 = vmul.f32 %v662, %v670
    %v677 = vmul.f32 %v663, %v670
    %v678 = vmul.f32 %v664, %v670
    %v679 = vmul.f32 %v665, %v670
    %v681 = vlaneseq
    %v682 = vshrl.u32 %v681, 7
    %v683 = vsub.s32 0, %v682
    %v684 = vrot.slane %v595, %v683
    %v686 = vadd.f32 %v672, %v684
    %v687 = vadd.f32 %v673, %v684
    %v688 = vadd.f32 %v674, %v684
    %v689 = vadd.f32 %v675, %v684
    %v690 = vadd.f32 %v676, %v684
    %v691 = vadd.f32 %v677, %v684
    %v692 = vadd.f32 %v678, %v684
    %v693 = vadd.f32 %v679, %v684
    %v694 = vmax.f32 %v686, 0.0
    %v695 = vmax.f32 %v687, 0.0
    %v696 = vmax.f32 %v688, 0.0
    %v697 = vmax.f32 %v689, 0.0
    %v698 = vmax.f32 %v690, 0.0
    %v699 = vmax.f32 %v691, 0.0
    %v700 = vmax.f32 %v692, 0.0
    %v701 = vmax.f32 %v693, 0.0
    %s702 = scalar_lea.vmem %s6, 32
    %v703 = vld [vmem:[%s702] sm:$0xff]
    %v704 = vld [vmem:[%s702 + $0x8] sm:$0xff]
    %v705 = vld [vmem:[%s702 + $0x10] sm:$0xff]
    %v706 = vld [vmem:[%s702 + $0x18] sm:$0xff]
    %v708 = vsel %vm342, %v694, 0
    %v711 = vsel %vm342, %v695, 0
    %v714 = vsel %vm342, %v696, 0
    %v717 = vsel %vm342, %v697, 0
    %v720 = vsel %vm342, %v698, 0
    %v723 = vsel %vm342, %v699, 0
    %v726 = vsel %vm342, %v700, 0
    %v729 = vsel %vm342, %v701, 0
    %731 = vmatprep.subr.mxu0 0.0
    %732 = vmatpush1.msra.mxu0 0.0
    %733 = vmatprep.subr.mxu0 0.0
    %734 = vmatpush1.msra.mxu0 0.0
    %735 = vmatprep.subr.mxu0 0.0
    %736 = vmatpush1.msra.mxu0 0.0
    %737 = vmatprep.subr.mxu0 0.0
    %738 = vmatpush1.msra.mxu0 0.0
    %739 = vmatprep.subr.mxu0 0.0
    %740 = vmatpush1.msra.mxu0 0.0
    %741 = vmatprep.subr.mxu0 0.0
    %742 = vmatpush1.msra.mxu0 0.0
    %743 = vmatprep.subr.mxu0 0.0
    %744 = vmatpush1.msra.mxu0 0.0
    %745 = vmatprep.subr.mxu0 0.0
    %746 = vmatpush1.msra.mxu0 0.0
    %747 = vmatprep.subr.mxu0 0.0
    %748 = vmatpush1.msra.mxu0 0.0
    %749 = vmatprep.subr.mxu0 0.0
    %750 = vmatpush1.msra.mxu0 0.0
    %751 = vmatprep.subr.mxu0 0.0
    %752 = vmatpush1.msra.mxu0 0.0
    %753 = vmatprep.subr.mxu0 0.0
    %754 = vmatpush1.msra.mxu0 0.0
    %755 = vmatprep.subr.mxu0 0.0
    %756 = vmatpush1.msra.mxu0 %v706
    %757 = vmatprep.subr.mxu0 0.0
    %758 = vmatpush1.msra.mxu0 %v705
    %759 = vmatprep.subr.mxu0 0.0
    %760 = vmatpush1.msra.mxu0 %v704
    %761 = vmatprep.subr.mxu0 0.0
    %762 = vmatpush1.msra.mxu0 %v703
    %763 = vmatprep.subr.mxu0 0.0
    %764 = vmatpush2.msra.mxu0 0.0
    %765 = vmatprep.subr.mxu0 0.0
    %766 = vmatpush2.msra.mxu0 0.0
    %767 = vmatprep.subr.mxu0 0.0
    %768 = vmatpush2.msra.mxu0 0.0
    %769 = vmatprep.subr.mxu0 0.0
    %770 = vmatpush2.msra.mxu0 0.0
    %771 = vmatprep.subr.mxu0 0.0
    %772 = vmatpush2.msra.mxu0 0.0
    %773 = vmatprep.subr.mxu0 0.0
    %774 = vmatpush2.msra.mxu0 0.0
    %775 = vmatprep.subr.mxu0 0.0
    %776 = vmatpush2.msra.mxu0 0.0
    %777 = vmatprep.subr.mxu0 0.0
    %778 = vmatpush2.msra.mxu0 0.0
    %779 = vmatprep.subr.mxu0 0.0
    %780 = vmatpush2.msra.mxu0 0.0
    %781 = vmatprep.subr.mxu0 0.0
    %782 = vmatpush2.msra.mxu0 0.0
    %783 = vmatprep.subr.mxu0 0.0
    %784 = vmatpush2.msra.mxu0 0.0
    %785 = vmatprep.subr.mxu0 0.0
    %786 = vmatpush2.msra.mxu0 0.0
    %787 = vmatprep.subr.mxu0 0.0
    %788 = vmatpush2.msra.mxu0 0.0
    %789 = vmatprep.subr.mxu0 0.0
    %790 = vmatpush2.msra.mxu0 0.0
    %791 = vmatprep.subr.mxu0 0.0
    %792 = vmatpush2.msra.mxu0 0.0
    %793 = vmatprep.subr.mxu0 0.0
    %794 = vmatpush2.msra.mxu0 0.0
    %795 = vmatprep.mubr.f32.mxu0 0.0
    %796 = vmatmul.mubr.f32.gmra.mxu0 %v708
    %v797 = vpop.f32.mrf.mxu0
    %v798 = vadd.f32 0.0, %v797
    %v799 = vpop.f32.mrf.mxu0
    %800 = vmatprep.mubr.f32.mxu0 0.0
    %801 = vmatmul.mubr.f32.gmra.mxu0 %v711
    %v802 = vpop.f32.mrf.mxu0
    %v803 = vadd.f32 0.0, %v802
    %v804 = vpop.f32.mrf.mxu0
    %805 = vmatprep.mubr.f32.mxu0 0.0
    %806 = vmatmul.mubr.f32.gmra.mxu0 %v714
    %v807 = vpop.f32.mrf.mxu0
    %v808 = vadd.f32 0.0, %v807
    %v809 = vpop.f32.mrf.mxu0
    %810 = vmatprep.mubr.f32.mxu0 0.0
    %811 = vmatmul.mubr.f32.gmra.mxu0 %v717
    %v812 = vpop.f32.mrf.mxu0
    %v813 = vadd.f32 0.0, %v812
    %v814 = vpop.f32.mrf.mxu0
    %815 = vmatprep.mubr.f32.mxu0 0.0
    %816 = vmatmul.mubr.f32.gmra.mxu0 %v720
    %v817 = vpop.f32.mrf.mxu0
    %v818 = vadd.f32 0.0, %v817
    %v819 = vpop.f32.mrf.mxu0
    %820 = vmatprep.mubr.f32.mxu0 0.0
    %821 = vmatmul.mubr.f32.gmra.mxu0 %v723
    %v822 = vpop.f32.mrf.mxu0
    %v823 = vadd.f32 0.0, %v822
    %v824 = vpop.f32.mrf.mxu0
    %825 = vmatprep.mubr.f32.mxu0 0.0
    %826 = vmatmul.mubr.f32.gmra.mxu0 %v726
    %v827 = vpop.f32.mrf.mxu0
    %v828 = vadd.f32 0.0, %v827
    %v829 = vpop.f32.mrf.mxu0
    %830 = vmatprep.mubr.f32.mxu0 0.0
    %831 = vmatmul.mubr.f32.gmra.mxu0 %v729
    %v832 = vpop.f32.mrf.mxu0
    %v833 = vadd.f32 0.0, %v832
    %v834 = vpop.f32.mrf.mxu0
    %835 = vdwg.mxu0
    %v837 = vsel %vm342, %v442, 0
    %v840 = vsel %vm342, %v443, 0
    %v843 = vsel %vm342, %v444, 0
    %v846 = vsel %vm342, %v445, 0
    %v849 = vsel %vm342, %v446, 0
    %v852 = vsel %vm342, %v447, 0
    %v855 = vsel %vm342, %v448, 0
    %v858 = vsel %vm342, %v449, 0
    %860 = vmatprep.subr.mxu0 0.0
    %861 = vmatpush1.msra.mxu0 0.0
    %862 = vmatprep.subr.mxu0 0.0
    %863 = vmatpush1.msra.mxu0 0.0
    %864 = vmatprep.subr.mxu0 0.0
    %865 = vmatpush1.msra.mxu0 0.0
    %866 = vmatprep.subr.mxu0 0.0
    %867 = vmatpush1.msra.mxu0 0.0
    %868 = vmatprep.subr.mxu0 0.0
    %869 = vmatpush1.msra.mxu0 0.0
    %870 = vmatprep.subr.mxu0 0.0
    %871 = vmatpush1.msra.mxu0 0.0
    %872 = vmatprep.subr.mxu0 0.0
    %873 = vmatpush1.msra.mxu0 0.0
    %874 = vmatprep.subr.mxu0 0.0
    %875 = vmatpush1.msra.mxu0 0.0
    %876 = vmatprep.subr.mxu0 0.0
    %877 = vmatpush1.msra.mxu0 0.0
    %878 = vmatprep.subr.mxu0 0.0
    %879 = vmatpush1.msra.mxu0 0.0
    %880 = vmatprep.subr.mxu0 0.0
    %881 = vmatpush1.msra.mxu0 0.0
    %882 = vmatprep.subr.mxu0 0.0
    %883 = vmatpush1.msra.mxu0 0.0
    %884 = vmatprep.subr.mxu0 0.0
    %885 = vmatpush1.msra.mxu0 %v453
    %886 = vmatprep.subr.mxu0 0.0
    %887 = vmatpush1.msra.mxu0 %v452
    %888 = vmatprep.subr.mxu0 0.0
    %889 = vmatpush1.msra.mxu0 %v451
    %890 = vmatprep.subr.mxu0 0.0
    %891 = vmatpush1.msra.mxu0 %v450
    %892 = vmatprep.subr.mxu0 0.0
    %893 = vmatpush2.msra.mxu0 0.0
    %894 = vmatprep.subr.mxu0 0.0
    %895 = vmatpush2.msra.mxu0 0.0
    %896 = vmatprep.subr.mxu0 0.0
    %897 = vmatpush2.msra.mxu0 0.0
    %898 = vmatprep.subr.mxu0 0.0
    %899 = vmatpush2.msra.mxu0 0.0
    %900 = vmatprep.subr.mxu0 0.0
    %901 = vmatpush2.msra.mxu0 0.0
    %902 = vmatprep.subr.mxu0 0.0
    %903 = vmatpush2.msra.mxu0 0.0
    %904 = vmatprep.subr.mxu0 0.0
    %905 = vmatpush2.msra.mxu0 0.0
    %906 = vmatprep.subr.mxu0 0.0
    %907 = vmatpush2.msra.mxu0 0.0
    %908 = vmatprep.subr.mxu0 0.0
    %909 = vmatpush2.msra.mxu0 0.0
    %910 = vmatprep.subr.mxu0 0.0
    %911 = vmatpush2.msra.mxu0 0.0
    %912 = vmatprep.subr.mxu0 0.0
    %913 = vmatpush2.msra.mxu0 0.0
    %914 = vmatprep.subr.mxu0 0.0
    %915 = vmatpush2.msra.mxu0 0.0
    %916 = vmatprep.subr.mxu0 0.0
    %917 = vmatpush2.msra.mxu0 0.0
    %918 = vmatprep.subr.mxu0 0.0
    %919 = vmatpush2.msra.mxu0 0.0
    %920 = vmatprep.subr.mxu0 0.0
    %921 = vmatpush2.msra.mxu0 0.0
    %922 = vmatprep.subr.mxu0 0.0
    %923 = vmatpush2.msra.mxu0 0.0
    %924 = vmatprep.mubr.f32.mxu0 0.0
    %925 = vmatmul.mubr.f32.gmra.mxu0 %v837
    %v926 = vpop.f32.mrf.mxu0
    %v927 = vadd.f32 %v798, %v926
    %v928 = vpop.f32.mrf.mxu0
    %929 = vmatprep.mubr.f32.mxu0 0.0
    %930 = vmatmul.mubr.f32.gmra.mxu0 %v840
    %v931 = vpop.f32.mrf.mxu0
    %v932 = vadd.f32 %v803, %v931
    %v933 = vpop.f32.mrf.mxu0
    %934 = vmatprep.mubr.f32.mxu0 0.0
    %935 = vmatmul.mubr.f32.gmra.mxu0 %v843
    %v936 = vpop.f32.mrf.mxu0
    %v937 = vadd.f32 %v808, %v936
    %v938 = vpop.f32.mrf.mxu0
    %939 = vmatprep.mubr.f32.mxu0 0.0
    %940 = vmatmul.mubr.f32.gmra.mxu0 %v846
    %v941 = vpop.f32.mrf.mxu0
    %v942 = vadd.f32 %v813, %v941
    %v943 = vpop.f32.mrf.mxu0
    %944 = vmatprep.mubr.f32.mxu0 0.0
    %945 = vmatmul.mubr.f32.gmra.mxu0 %v849
    %v946 = vpop.f32.mrf.mxu0
    %v947 = vadd.f32 %v818, %v946
    %v948 = vpop.f32.mrf.mxu0
    %949 = vmatprep.mubr.f32.mxu0 0.0
    %950 = vmatmul.mubr.f32.gmra.mxu0 %v852
    %v951 = vpop.f32.mrf.mxu0
    %v952 = vadd.f32 %v823, %v951
    %v953 = vpop.f32.mrf.mxu0
    %954 = vmatprep.mubr.f32.mxu0 0.0
    %955 = vmatmul.mubr.f32.gmra.mxu0 %v855
    %v956 = vpop.f32.mrf.mxu0
    %v957 = vadd.f32 %v828, %v956
    %v958 = vpop.f32.mrf.mxu0
    %959 = vmatprep.mubr.f32.mxu0 0.0
    %960 = vmatmul.mubr.f32.gmra.mxu0 %v858
    %v961 = vpop.f32.mrf.mxu0
    %v962 = vadd.f32 %v833, %v961
    %v963 = vpop.f32.mrf.mxu0
    %964 = vdwg.mxu0
    %s965 = scalar_lea.vmem [#allocation2], 128
    %v966 = vld [vmem:[%s965] sm:$0xff]
    %v967 = vld [vmem:[%s965 + $0x8] sm:$0xff]
    %v968 = vld [vmem:[%s965 + $0x10] sm:$0xff]
    %v969 = vld [vmem:[%s965 + $0x18] sm:$0xff]
    %v970 = vld [vmem:[%s965 + $0x20] sm:$0xff]
    %v971 = vld [vmem:[%s965 + $0x28] sm:$0xff]
    %v972 = vld [vmem:[%s965 + $0x30] sm:$0xff]
    %v973 = vld [vmem:[%s965 + $0x38] sm:$0xff]
    %v975 = vsel %vm210, %v966, 0
    %v978 = vsel %vm210, %v967, 0
    %v981 = vsel %vm210, %v968, 0
    %v984 = vsel %vm210, %v969, 0
    %v987 = vsel %vm210, %v970, 0
    %v990 = vsel %vm210, %v971, 0
    %v993 = vsel %vm210, %v972, 0
    %v996 = vsel %vm210, %v973, 0
    %998 = vmatprep.subr.mxu0 0.0
    %999 = vmatpush1.msra.mxu0 0.0
    %1000 = vmatprep.subr.mxu0 0.0
    %1001 = vmatpush1.msra.mxu0 0.0
    %1002 = vmatprep.subr.mxu0 0.0
    %1003 = vmatpush1.msra.mxu0 0.0
    %1004 = vmatprep.subr.mxu0 0.0
    %1005 = vmatpush1.msra.mxu0 0.0
    %1006 = vmatprep.subr.mxu0 0.0
    %1007 = vmatpush1.msra.mxu0 0.0
    %1008 = vmatprep.subr.mxu0 0.0
    %1009 = vmatpush1.msra.mxu0 0.0
    %1010 = vmatprep.subr.mxu0 0.0
    %1011 = vmatpush1.msra.mxu0 0.0
    %1012 = vmatprep.subr.mxu0 0.0
    %1013 = vmatpush1.msra.mxu0 0.0
    %1014 = vmatprep.subr.mxu0 0.0
    %1015 = vmatpush1.msra.mxu0 %v192
    %1016 = vmatprep.subr.mxu0 0.0
    %1017 = vmatpush1.msra.mxu0 %v187
    %1018 = vmatprep.subr.mxu0 0.0
    %1019 = vmatpush1.msra.mxu0 %v182
    %1020 = vmatprep.subr.mxu0 0.0
    %1021 = vmatpush1.msra.mxu0 %v177
    %1022 = vmatprep.subr.mxu0 0.0
    %1023 = vmatpush1.msra.mxu0 %v172
    %1024 = vmatprep.subr.mxu0 0.0
    %1025 = vmatpush1.msra.mxu0 %v167
    %1026 = vmatprep.subr.mxu0 0.0
    %1027 = vmatpush1.msra.mxu0 %v162
    %1028 = vmatprep.subr.mxu0 0.0
    %1029 = vmatpush1.msra.mxu0 %v157
    %1030 = vmatprep.subr.mxu0 0.0
    %1031 = vmatpush2.msra.mxu0 0.0
    %1032 = vmatprep.subr.mxu0 0.0
    %1033 = vmatpush2.msra.mxu0 0.0
    %1034 = vmatprep.subr.mxu0 0.0
    %1035 = vmatpush2.msra.mxu0 0.0
    %1036 = vmatprep.subr.mxu0 0.0
    %1037 = vmatpush2.msra.mxu0 0.0
    %1038 = vmatprep.subr.mxu0 0.0
    %1039 = vmatpush2.msra.mxu0 0.0
    %1040 = vmatprep.subr.mxu0 0.0
    %1041 = vmatpush2.msra.mxu0 0.0
    %1042 = vmatprep.subr.mxu0 0.0
    %1043 = vmatpush2.msra.mxu0 0.0
    %1044 = vmatprep.subr.mxu0 0.0
    %1045 = vmatpush2.msra.mxu0 0.0
    %1046 = vmatprep.subr.mxu0 0.0
    %1047 = vmatpush2.msra.mxu0 0.0
    %1048 = vmatprep.subr.mxu0 0.0
    %1049 = vmatpush2.msra.mxu0 0.0
    %1050 = vmatprep.subr.mxu0 0.0
    %1051 = vmatpush2.msra.mxu0 0.0
    %1052 = vmatprep.subr.mxu0 0.0
    %1053 = vmatpush2.msra.mxu0 0.0
    %1054 = vmatprep.subr.mxu0 0.0
    %1055 = vmatpush2.msra.mxu0 0.0
    %1056 = vmatprep.subr.mxu0 0.0
    %1057 = vmatpush2.msra.mxu0 0.0
    %1058 = vmatprep.subr.mxu0 0.0
    %1059 = vmatpush2.msra.mxu0 0.0
    %1060 = vmatprep.subr.mxu0 0.0
    %1061 = vmatpush2.msra.mxu0 0.0
    %1062 = vmatprep.mubr.f32.mxu0 0.0
    %1063 = vmatmul.mubr.f32.gmra.mxu0 %v975
    %v1064 = vpop.f32.mrf.mxu0
    %v1065 = vadd.f32 %v208, %v1064
    %v1066 = vpop.f32.mrf.mxu0
    %1067 = vmatprep.mubr.f32.mxu0 0.0
    %1068 = vmatmul.mubr.f32.gmra.mxu0 %v978
    %v1069 = vpop.f32.mrf.mxu0
    %v1070 = vadd.f32 %v208, %v1069
    %v1071 = vpop.f32.mrf.mxu0
    %1072 = vmatprep.mubr.f32.mxu0 0.0
    %1073 = vmatmul.mubr.f32.gmra.mxu0 %v981
    %v1074 = vpop.f32.mrf.mxu0
    %v1075 = vadd.f32 %v208, %v1074
    %v1076 = vpop.f32.mrf.mxu0
    %1077 = vmatprep.mubr.f32.mxu0 0.0
    %1078 = vmatmul.mubr.f32.gmra.mxu0 %v984
    %v1079 = vpop.f32.mrf.mxu0
    %v1080 = vadd.f32 %v208, %v1079
    %v1081 = vpop.f32.mrf.mxu0
    %1082 = vmatprep.mubr.f32.mxu0 0.0
    %1083 = vmatmul.mubr.f32.gmra.mxu0 %v987
    %v1084 = vpop.f32.mrf.mxu0
    %v1085 = vadd.f32 %v208, %v1084
    %v1086 = vpop.f32.mrf.mxu0
    %1087 = vmatprep.mubr.f32.mxu0 0.0
    %1088 = vmatmul.mubr.f32.gmra.mxu0 %v990
    %v1089 = vpop.f32.mrf.mxu0
    %v1090 = vadd.f32 %v208, %v1089
    %v1091 = vpop.f32.mrf.mxu0
    %1092 = vmatprep.mubr.f32.mxu0 0.0
    %1093 = vmatmul.mubr.f32.gmra.mxu0 %v993
    %v1094 = vpop.f32.mrf.mxu0
    %v1095 = vadd.f32 %v208, %v1094
    %v1096 = vpop.f32.mrf.mxu0
    %1097 = vmatprep.mubr.f32.mxu0 0.0
    %1098 = vmatmul.mubr.f32.gmra.mxu0 %v996
    %v1099 = vpop.f32.mrf.mxu0
    %v1100 = vadd.f32 %v208, %v1099
    %v1101 = vpop.f32.mrf.mxu0
    %1102 = vdwg.mxu0
    %s1103 = scalar_lea.vmem %s4, 2
    %v1104 = vld [vmem:[%s1103] sm:$0x1]
    %s1105 = scalar_lea.vmem %s5, 2
    %v1106 = vld [vmem:[%s1105] sm:$0x1]
    %v1107 = vsel %vm342, %v1065, 0.0
    %v1108 = vsel %vm342, %v1070, 0.0
    %v1109 = vadd.f32 %v1107, %v1108
    %v1110 = vsel %vm342, %v1075, 0.0
    %v1111 = vadd.f32 %v1109, %v1110
    %v1112 = vsel %vm342, %v1080, 0.0
    %v1113 = vadd.f32 %v1111, %v1112
    %v1114 = vsel %vm342, %v1085, 0.0
    %v1115 = vadd.f32 %v1113, %v1114
    %v1116 = vsel %vm342, %v1090, 0.0
    %v1117 = vadd.f32 %v1115, %v1116
    %v1118 = vsel %vm342, %v1095, 0.0
    %v1119 = vadd.f32 %v1117, %v1118
    %v1120 = vsel %vm342, %v1100, 0.0
    %v1121 = vadd.f32 %v1119, %v1120
    %v1122 = vrot.slane %v1121, 4
    %v1123 = vadd.f32 %v1121, %v1122
    %v1124 = vrot.slane %v1123, 2
    %v1125 = vadd.f32 %v1123, %v1124
    %v1126 = vrot.slane %v1125, 1
    %v1127 = vadd.f32 %v1125, %v1126
    %v1128 = vmul.f32 %v1127, %v364
    %v1129 = vsub.f32 %v1065, %v1128
    %v1130 = vsub.f32 %v1070, %v1128
    %v1131 = vsub.f32 %v1075, %v1128
    %v1132 = vsub.f32 %v1080, %v1128
    %v1133 = vsub.f32 %v1085, %v1128
    %v1134 = vsub.f32 %v1090, %v1128
    %v1135 = vsub.f32 %v1095, %v1128
    %v1136 = vsub.f32 %v1100, %v1128
    %v1137 = vmul.f32 %v1129, %v1129
    %v1138 = vmul.f32 %v1130, %v1130
    %v1139 = vmul.f32 %v1131, %v1131
    %v1140 = vmul.f32 %v1132, %v1132
    %v1141 = vmul.f32 %v1133, %v1133
    %v1142 = vmul.f32 %v1134, %v1134
    %v1143 = vmul.f32 %v1135, %v1135
    %v1144 = vmul.f32 %v1136, %v1136
    %v1145 = vsel %vm342, %v1137, 0.0
    %v1146 = vsel %vm342, %v1138, 0.0
    %v1147 = vadd.f32 %v1145, %v1146
    %v1148 = vsel %vm342, %v1139, 0.0
    %v1149 = vadd.f32 %v1147, %v1148
    %v1150 = vsel %vm342, %v1140, 0.0
    %v1151 = vadd.f32 %v1149, %v1150
    %v1152 = vsel %vm342, %v1141, 0.0
    %v1153 = vadd.f32 %v1151, %v1152
    %v1154 = vsel %vm342, %v1142, 0.0
    %v1155 = vadd.f32 %v1153, %v1154
    %v1156 = vsel %vm342, %v1143, 0.0
    %v1157 = vadd.f32 %v1155, %v1156
    %v1158 = vsel %vm342, %v1144, 0.0
    %v1159 = vadd.f32 %v1157, %v1158
    %v1160 = vrot.slane %v1159, 4
    %v1161 = vadd.f32 %v1159, %v1160
    %v1162 = vrot.slane %v1161, 2
    %v1163 = vadd.f32 %v1161, %v1162
    %v1164 = vrot.slane %v1163, 1
    %v1165 = vadd.f32 %v1163, %v1164
    %v1166 = vmul.f32 %v1165, %v364
    %v1167 = vadd.f32 %v1166, 1e-05
    %v1168 = vrsqrt.pop %v1167
    %v1169 = vmul.f32 %v1129, %v1168
    %v1170 = vmul.f32 %v1130, %v1168
    %v1171 = vmul.f32 %v1131, %v1168
    %v1172 = vmul.f32 %v1132, %v1168
    %v1173 = vmul.f32 %v1133, %v1168
    %v1174 = vmul.f32 %v1134, %v1168
    %v1175 = vmul.f32 %v1135, %v1168
    %v1176 = vmul.f32 %v1136, %v1168
    %v1178 = vlaneseq
    %v1179 = vshrl.u32 %v1178, 7
    %v1180 = vsub.s32 0, %v1179
    %v1181 = vrot.slane %v1104, %v1180
    %v1183 = vmul.f32 %v1169, %v1181
    %v1184 = vmul.f32 %v1170, %v1181
    %v1185 = vmul.f32 %v1171, %v1181
    %v1186 = vmul.f32 %v1172, %v1181
    %v1187 = vmul.f32 %v1173, %v1181
    %v1188 = vmul.f32 %v1174, %v1181
    %v1189 = vmul.f32 %v1175, %v1181
    %v1190 = vmul.f32 %v1176, %v1181
    %v1192 = vlaneseq
    %v1193 = vshrl.u32 %v1192, 7
    %v1194 = vsub.s32 0, %v1193
    %v1195 = vrot.slane %v1106, %v1194
    %v1197 = vadd.f32 %v1183, %v1195
    %v1198 = vadd.f32 %v1184, %v1195
    %v1199 = vadd.f32 %v1185, %v1195
    %v1200 = vadd.f32 %v1186, %v1195
    %v1201 = vadd.f32 %v1187, %v1195
    %v1202 = vadd.f32 %v1188, %v1195
    %v1203 = vadd.f32 %v1189, %v1195
    %v1204 = vadd.f32 %v1190, %v1195
    %v1205 = vmax.f32 %v1197, 0.0
    %v1206 = vmax.f32 %v1198, 0.0
    %v1207 = vmax.f32 %v1199, 0.0
    %v1208 = vmax.f32 %v1200, 0.0
    %v1209 = vmax.f32 %v1201, 0.0
    %v1210 = vmax.f32 %v1202, 0.0
    %v1211 = vmax.f32 %v1203, 0.0
    %v1212 = vmax.f32 %v1204, 0.0
    %s1213 = scalar_lea.vmem %s6, 64
    %v1214 = vld [vmem:[%s1213] sm:$0xff]
    %v1215 = vld [vmem:[%s1213 + $0x8] sm:$0xff]
    %v1216 = vld [vmem:[%s1213 + $0x10] sm:$0xff]
    %v1217 = vld [vmem:[%s1213 + $0x18] sm:$0xff]
    %v1219 = vsel %vm342, %v1205, 0
    %v1222 = vsel %vm342, %v1206, 0
    %v1225 = vsel %vm342, %v1207, 0
    %v1228 = vsel %vm342, %v1208, 0
    %v1231 = vsel %vm342, %v1209, 0
    %v1234 = vsel %vm342, %v1210, 0
    %v1237 = vsel %vm342, %v1211, 0
    %v1240 = vsel %vm342, %v1212, 0
    %1242 = vmatprep.subr.mxu0 0.0
    %1243 = vmatpush1.msra.mxu0 0.0
    %1244 = vmatprep.subr.mxu0 0.0
    %1245 = vmatpush1.msra.mxu0 0.0
    %1246 = vmatprep.subr.mxu0 0.0
    %1247 = vmatpush1.msra.mxu0 0.0
    %1248 = vmatprep.subr.mxu0 0.0
    %1249 = vmatpush1.msra.mxu0 0.0
    %1250 = vmatprep.subr.mxu0 0.0
    %1251 = vmatpush1.msra.mxu0 0.0
    %1252 = vmatprep.subr.mxu0 0.0
    %1253 = vmatpush1.msra.mxu0 0.0
    %1254 = vmatprep.subr.mxu0 0.0
    %1255 = vmatpush1.msra.mxu0 0.0
    %1256 = vmatprep.subr.mxu0 0.0
    %1257 = vmatpush1.msra.mxu0 0.0
    %1258 = vmatprep.subr.mxu0 0.0
    %1259 = vmatpush1.msra.mxu0 0.0
    %1260 = vmatprep.subr.mxu0 0.0
    %1261 = vmatpush1.msra.mxu0 0.0
    %1262 = vmatprep.subr.mxu0 0.0
    %1263 = vmatpush1.msra.mxu0 0.0
    %1264 = vmatprep.subr.mxu0 0.0
    %1265 = vmatpush1.msra.mxu0 0.0
    %1266 = vmatprep.subr.mxu0 0.0
    %1267 = vmatpush1.msra.mxu0 %v1217
    %1268 = vmatprep.subr.mxu0 0.0
    %1269 = vmatpush1.msra.mxu0 %v1216
    %1270 = vmatprep.subr.mxu0 0.0
    %1271 = vmatpush1.msra.mxu0 %v1215
    %1272 = vmatprep.subr.mxu0 0.0
    %1273 = vmatpush1.msra.mxu0 %v1214
    %1274 = vmatprep.subr.mxu0 0.0
    %1275 = vmatpush2.msra.mxu0 0.0
    %1276 = vmatprep.subr.mxu0 0.0
    %1277 = vmatpush2.msra.mxu0 0.0
    %1278 = vmatprep.subr.mxu0 0.0
    %1279 = vmatpush2.msra.mxu0 0.0
    %1280 = vmatprep.subr.mxu0 0.0
    %1281 = vmatpush2.msra.mxu0 0.0
    %1282 = vmatprep.subr.mxu0 0.0
    %1283 = vmatpush2.msra.mxu0 0.0
    %1284 = vmatprep.subr.mxu0 0.0
    %1285 = vmatpush2.msra.mxu0 0.0
    %1286 = vmatprep.subr.mxu0 0.0
    %1287 = vmatpush2.msra.mxu0 0.0
    %1288 = vmatprep.subr.mxu0 0.0
    %1289 = vmatpush2.msra.mxu0 0.0
    %1290 = vmatprep.subr.mxu0 0.0
    %1291 = vmatpush2.msra.mxu0 0.0
    %1292 = vmatprep.subr.mxu0 0.0
    %1293 = vmatpush2.msra.mxu0 0.0
    %1294 = vmatprep.subr.mxu0 0.0
    %1295 = vmatpush2.msra.mxu0 0.0
    %1296 = vmatprep.subr.mxu0 0.0
    %1297 = vmatpush2.msra.mxu0 0.0
    %1298 = vmatprep.subr.mxu0 0.0
    %1299 = vmatpush2.msra.mxu0 0.0
    %1300 = vmatprep.subr.mxu0 0.0
    %1301 = vmatpush2.msra.mxu0 0.0
    %1302 = vmatprep.subr.mxu0 0.0
    %1303 = vmatpush2.msra.mxu0 0.0
    %1304 = vmatprep.subr.mxu0 0.0
    %1305 = vmatpush2.msra.mxu0 0.0
    %1306 = vmatprep.mubr.f32.mxu0 0.0
    %1307 = vmatmul.mubr.f32.gmra.mxu0 %v1219
    %v1308 = vpop.f32.mrf.mxu0
    %v1309 = vadd.f32 0.0, %v1308
    %v1310 = vpop.f32.mrf.mxu0
    %1311 = vmatprep.mubr.f32.mxu0 0.0
    %1312 = vmatmul.mubr.f32.gmra.mxu0 %v1222
    %v1313 = vpop.f32.mrf.mxu0
    %v1314 = vadd.f32 0.0, %v1313
    %v1315 = vpop.f32.mrf.mxu0
    %1316 = vmatprep.mubr.f32.mxu0 0.0
    %1317 = vmatmul.mubr.f32.gmra.mxu0 %v1225
    %v1318 = vpop.f32.mrf.mxu0
    %v1319 = vadd.f32 0.0, %v1318
    %v1320 = vpop.f32.mrf.mxu0
    %1321 = vmatprep.mubr.f32.mxu0 0.0
    %1322 = vmatmul.mubr.f32.gmra.mxu0 %v1228
    %v1323 = vpop.f32.mrf.mxu0
    %v1324 = vadd.f32 0.0, %v1323
    %v1325 = vpop.f32.mrf.mxu0
    %1326 = vmatprep.mubr.f32.mxu0 0.0
    %1327 = vmatmul.mubr.f32.gmra.mxu0 %v1231
    %v1328 = vpop.f32.mrf.mxu0
    %v1329 = vadd.f32 0.0, %v1328
    %v1330 = vpop.f32.mrf.mxu0
    %1331 = vmatprep.mubr.f32.mxu0 0.0
    %1332 = vmatmul.mubr.f32.gmra.mxu0 %v1234
    %v1333 = vpop.f32.mrf.mxu0
    %v1334 = vadd.f32 0.0, %v1333
    %v1335 = vpop.f32.mrf.mxu0
    %1336 = vmatprep.mubr.f32.mxu0 0.0
    %1337 = vmatmul.mubr.f32.gmra.mxu0 %v1237
    %v1338 = vpop.f32.mrf.mxu0
    %v1339 = vadd.f32 0.0, %v1338
    %v1340 = vpop.f32.mrf.mxu0
    %1341 = vmatprep.mubr.f32.mxu0 0.0
    %1342 = vmatmul.mubr.f32.gmra.mxu0 %v1240
    %v1343 = vpop.f32.mrf.mxu0
    %v1344 = vadd.f32 0.0, %v1343
    %v1345 = vpop.f32.mrf.mxu0
    %1346 = vdwg.mxu0
    %v1347 = vadd.f32 %v927, %v1309
    %v1348 = vadd.f32 %v932, %v1314
    %v1349 = vadd.f32 %v937, %v1319
    %v1350 = vadd.f32 %v942, %v1324
    %v1351 = vadd.f32 %v947, %v1329
    %v1352 = vadd.f32 %v952, %v1334
    %v1353 = vadd.f32 %v957, %v1339
    %v1354 = vadd.f32 %v962, %v1344
    %s1355 = scalar_lea.vmem [#allocation2], 192
    %v1356 = vld [vmem:[%s1355] sm:$0xff]
    %v1357 = vld [vmem:[%s1355 + $0x8] sm:$0xff]
    %v1358 = vld [vmem:[%s1355 + $0x10] sm:$0xff]
    %v1359 = vld [vmem:[%s1355 + $0x18] sm:$0xff]
    %v1360 = vld [vmem:[%s1355 + $0x20] sm:$0xff]
    %v1361 = vld [vmem:[%s1355 + $0x28] sm:$0xff]
    %v1362 = vld [vmem:[%s1355 + $0x30] sm:$0xff]
    %v1363 = vld [vmem:[%s1355 + $0x38] sm:$0xff]
    %v1365 = vsel %vm210, %v1356, 0
    %v1368 = vsel %vm210, %v1357, 0
    %v1371 = vsel %vm210, %v1358, 0
    %v1374 = vsel %vm210, %v1359, 0
    %v1377 = vsel %vm210, %v1360, 0
    %v1380 = vsel %vm210, %v1361, 0
    %v1383 = vsel %vm210, %v1362, 0
    %v1386 = vsel %vm210, %v1363, 0
    %1388 = vmatprep.subr.mxu0 0.0
    %1389 = vmatpush1.msra.mxu0 0.0
    %1390 = vmatprep.subr.mxu0 0.0
    %1391 = vmatpush1.msra.mxu0 0.0
    %1392 = vmatprep.subr.mxu0 0.0
    %1393 = vmatpush1.msra.mxu0 0.0
    %1394 = vmatprep.subr.mxu0 0.0
    %1395 = vmatpush1.msra.mxu0 0.0
    %1396 = vmatprep.subr.mxu0 0.0
    %1397 = vmatpush1.msra.mxu0 0.0
    %1398 = vmatprep.subr.mxu0 0.0
    %1399 = vmatpush1.msra.mxu0 0.0
    %1400 = vmatprep.subr.mxu0 0.0
    %1401 = vmatpush1.msra.mxu0 0.0
    %1402 = vmatprep.subr.mxu0 0.0
    %1403 = vmatpush1.msra.mxu0 0.0
    %1404 = vmatprep.subr.mxu0 0.0
    %1405 = vmatpush1.msra.mxu0 %v192
    %1406 = vmatprep.subr.mxu0 0.0
    %1407 = vmatpush1.msra.mxu0 %v187
    %1408 = vmatprep.subr.mxu0 0.0
    %1409 = vmatpush1.msra.mxu0 %v182
    %1410 = vmatprep.subr.mxu0 0.0
    %1411 = vmatpush1.msra.mxu0 %v177
    %1412 = vmatprep.subr.mxu0 0.0
    %1413 = vmatpush1.msra.mxu0 %v172
    %1414 = vmatprep.subr.mxu0 0.0
    %1415 = vmatpush1.msra.mxu0 %v167
    %1416 = vmatprep.subr.mxu0 0.0
    %1417 = vmatpush1.msra.mxu0 %v162
    %1418 = vmatprep.subr.mxu0 0.0
    %1419 = vmatpush1.msra.mxu0 %v157
    %1420 = vmatprep.subr.mxu0 0.0
    %1421 = vmatpush2.msra.mxu0 0.0
    %1422 = vmatprep.subr.mxu0 0.0
    %1423 = vmatpush2.msra.mxu0 0.0
    %1424 = vmatprep.subr.mxu0 0.0
    %1425 = vmatpush2.msra.mxu0 0.0
    %1426 = vmatprep.subr.mxu0 0.0
    %1427 = vmatpush2.msra.mxu0 0.0
    %1428 = vmatprep.subr.mxu0 0.0
    %1429 = vmatpush2.msra.mxu0 0.0
    %1430 = vmatprep.subr.mxu0 0.0
    %1431 = vmatpush2.msra.mxu0 0.0
    %1432 = vmatprep.subr.mxu0 0.0
    %1433 = vmatpush2.msra.mxu0 0.0
    %1434 = vmatprep.subr.mxu0 0.0
    %1435 = vmatpush2.msra.mxu0 0.0
    %1436 = vmatprep.subr.mxu0 0.0
    %1437 = vmatpush2.msra.mxu0 0.0
    %1438 = vmatprep.subr.mxu0 0.0
    %1439 = vmatpush2.msra.mxu0 0.0
    %1440 = vmatprep.subr.mxu0 0.0
    %1441 = vmatpush2.msra.mxu0 0.0
    %1442 = vmatprep.subr.mxu0 0.0
    %1443 = vmatpush2.msra.mxu0 0.0
    %1444 = vmatprep.subr.mxu0 0.0
    %1445 = vmatpush2.msra.mxu0 0.0
    %1446 = vmatprep.subr.mxu0 0.0
    %1447 = vmatpush2.msra.mxu0 0.0
    %1448 = vmatprep.subr.mxu0 0.0
    %1449 = vmatpush2.msra.mxu0 0.0
    %1450 = vmatprep.subr.mxu0 0.0
    %1451 = vmatpush2.msra.mxu0 0.0
    %1452 = vmatprep.mubr.f32.mxu0 0.0
    %1453 = vmatmul.mubr.f32.gmra.mxu0 %v1365
    %v1454 = vpop.f32.mrf.mxu0
    %v1455 = vadd.f32 %v208, %v1454
    %v1456 = vpop.f32.mrf.mxu0
    %1457 = vmatprep.mubr.f32.mxu0 0.0
    %1458 = vmatmul.mubr.f32.gmra.mxu0 %v1368
    %v1459 = vpop.f32.mrf.mxu0
    %v1460 = vadd.f32 %v208, %v1459
    %v1461 = vpop.f32.mrf.mxu0
    %1462 = vmatprep.mubr.f32.mxu0 0.0
    %1463 = vmatmul.mubr.f32.gmra.mxu0 %v1371
    %v1464 = vpop.f32.mrf.mxu0
    %v1465 = vadd.f32 %v208, %v1464
    %v1466 = vpop.f32.mrf.mxu0
    %1467 = vmatprep.mubr.f32.mxu0 0.0
    %1468 = vmatmul.mubr.f32.gmra.mxu0 %v1374
    %v1469 = vpop.f32.mrf.mxu0
    %v1470 = vadd.f32 %v208, %v1469
    %v1471 = vpop.f32.mrf.mxu0
    %1472 = vmatprep.mubr.f32.mxu0 0.0
    %1473 = vmatmul.mubr.f32.gmra.mxu0 %v1377
    %v1474 = vpop.f32.mrf.mxu0
    %v1475 = vadd.f32 %v208, %v1474
    %v1476 = vpop.f32.mrf.mxu0
    %1477 = vmatprep.mubr.f32.mxu0 0.0
    %1478 = vmatmul.mubr.f32.gmra.mxu0 %v1380
    %v1479 = vpop.f32.mrf.mxu0
    %v1480 = vadd.f32 %v208, %v1479
    %v1481 = vpop.f32.mrf.mxu0
    %1482 = vmatprep.mubr.f32.mxu0 0.0
    %1483 = vmatmul.mubr.f32.gmra.mxu0 %v1383
    %v1484 = vpop.f32.mrf.mxu0
    %v1485 = vadd.f32 %v208, %v1484
    %v1486 = vpop.f32.mrf.mxu0
    %1487 = vmatprep.mubr.f32.mxu0 0.0
    %1488 = vmatmul.mubr.f32.gmra.mxu0 %v1386
    %v1489 = vpop.f32.mrf.mxu0
    %v1490 = vadd.f32 %v208, %v1489
    %v1491 = vpop.f32.mrf.mxu0
    %1492 = vdwg.mxu0
    %s1493 = scalar_lea.vmem %s4, 3
    %v1494 = vld [vmem:[%s1493] sm:$0x1]
    %s1495 = scalar_lea.vmem %s5, 3
    %v1496 = vld [vmem:[%s1495] sm:$0x1]
    %v1497 = vsel %vm342, %v1455, 0.0
    %v1498 = vsel %vm342, %v1460, 0.0
    %v1499 = vadd.f32 %v1497, %v1498
    %v1500 = vsel %vm342, %v1465, 0.0
    %v1501 = vadd.f32 %v1499, %v1500
    %v1502 = vsel %vm342, %v1470, 0.0
    %v1503 = vadd.f32 %v1501, %v1502
    %v1504 = vsel %vm342, %v1475, 0.0
    %v1505 = vadd.f32 %v1503, %v1504
    %v1506 = vsel %vm342, %v1480, 0.0
    %v1507 = vadd.f32 %v1505, %v1506
    %v1508 = vsel %vm342, %v1485, 0.0
    %v1509 = vadd.f32 %v1507, %v1508
    %v1510 = vsel %vm342, %v1490, 0.0
    %v1511 = vadd.f32 %v1509, %v1510
    %v1512 = vrot.slane %v1511, 4
    %v1513 = vadd.f32 %v1511, %v1512
    %v1514 = vrot.slane %v1513, 2
    %v1515 = vadd.f32 %v1513, %v1514
    %v1516 = vrot.slane %v1515, 1
    %v1517 = vadd.f32 %v1515, %v1516
    %v1518 = vmul.f32 %v1517, %v364
    %v1519 = vsub.f32 %v1455, %v1518
    %v1520 = vsub.f32 %v1460, %v1518
    %v1521 = vsub.f32 %v1465, %v1518
    %v1522 = vsub.f32 %v1470, %v1518
    %v1523 = vsub.f32 %v1475, %v1518
    %v1524 = vsub.f32 %v1480, %v1518
    %v1525 = vsub.f32 %v1485, %v1518
    %v1526 = vsub.f32 %v1490, %v1518
    %v1527 = vmul.f32 %v1519, %v1519
    %v1528 = vmul.f32 %v1520, %v1520
    %v1529 = vmul.f32 %v1521, %v1521
    %v1530 = vmul.f32 %v1522, %v1522
    %v1531 = vmul.f32 %v1523, %v1523
    %v1532 = vmul.f32 %v1524, %v1524
    %v1533 = vmul.f32 %v1525, %v1525
    %v1534 = vmul.f32 %v1526, %v1526
    %v1535 = vsel %vm342, %v1527, 0.0
    %v1536 = vsel %vm342, %v1528, 0.0
    %v1537 = vadd.f32 %v1535, %v1536
    %v1538 = vsel %vm342, %v1529, 0.0
    %v1539 = vadd.f32 %v1537, %v1538
    %v1540 = vsel %vm342, %v1530, 0.0
    %v1541 = vadd.f32 %v1539, %v1540
    %v1542 = vsel %vm342, %v1531, 0.0
    %v1543 = vadd.f32 %v1541, %v1542
    %v1544 = vsel %vm342, %v1532, 0.0
    %v1545 = vadd.f32 %v1543, %v1544
    %v1546 = vsel %vm342, %v1533, 0.0
    %v1547 = vadd.f32 %v1545, %v1546
    %v1548 = vsel %vm342, %v1534, 0.0
    %v1549 = vadd.f32 %v1547, %v1548
    %v1550 = vrot.slane %v1549, 4
    %v1551 = vadd.f32 %v1549, %v1550
    %v1552 = vrot.slane %v1551, 2
    %v1553 = vadd.f32 %v1551, %v1552
    %v1554 = vrot.slane %v1553, 1
    %v1555 = vadd.f32 %v1553, %v1554
    %v1556 = vmul.f32 %v1555, %v364
    %v1557 = vadd.f32 %v1556, 1e-05
    %v1558 = vrsqrt.pop %v1557
    %v1559 = vmul.f32 %v1519, %v1558
    %v1560 = vmul.f32 %v1520, %v1558
    %v1561 = vmul.f32 %v1521, %v1558
    %v1562 = vmul.f32 %v1522, %v1558
    %v1563 = vmul.f32 %v1523, %v1558
    %v1564 = vmul.f32 %v1524, %v1558
    %v1565 = vmul.f32 %v1525, %v1558
    %v1566 = vmul.f32 %v1526, %v1558
    %v1568 = vlaneseq
    %v1569 = vshrl.u32 %v1568, 7
    %v1570 = vsub.s32 0, %v1569
    %v1571 = vrot.slane %v1494, %v1570
    %v1573 = vmul.f32 %v1559, %v1571
    %v1574 = vmul.f32 %v1560, %v1571
    %v1575 = vmul.f32 %v1561, %v1571
    %v1576 = vmul.f32 %v1562, %v1571
    %v1577 = vmul.f32 %v1563, %v1571
    %v1578 = vmul.f32 %v1564, %v1571
    %v1579 = vmul.f32 %v1565, %v1571
    %v1580 = vmul.f32 %v1566, %v1571
    %v1582 = vlaneseq
    %v1583 = vshrl.u32 %v1582, 7
    %v1584 = vsub.s32 0, %v1583
    %v1585 = vrot.slane %v1496, %v1584
    %v1587 = vadd.f32 %v1573, %v1585
    %v1588 = vadd.f32 %v1574, %v1585
    %v1589 = vadd.f32 %v1575, %v1585
    %v1590 = vadd.f32 %v1576, %v1585
    %v1591 = vadd.f32 %v1577, %v1585
    %v1592 = vadd.f32 %v1578, %v1585
    %v1593 = vadd.f32 %v1579, %v1585
    %v1594 = vadd.f32 %v1580, %v1585
    %v1595 = vmax.f32 %v1587, 0.0
    %v1596 = vmax.f32 %v1588, 0.0
    %v1597 = vmax.f32 %v1589, 0.0
    %v1598 = vmax.f32 %v1590, 0.0
    %v1599 = vmax.f32 %v1591, 0.0
    %v1600 = vmax.f32 %v1592, 0.0
    %v1601 = vmax.f32 %v1593, 0.0
    %v1602 = vmax.f32 %v1594, 0.0
    %s1603 = scalar_lea.vmem %s6, 96
    %v1604 = vld [vmem:[%s1603] sm:$0xff]
    %v1605 = vld [vmem:[%s1603 + $0x8] sm:$0xff]
    %v1606 = vld [vmem:[%s1603 + $0x10] sm:$0xff]
    %v1607 = vld [vmem:[%s1603 + $0x18] sm:$0xff]
    %v1609 = vsel %vm342, %v1595, 0
    %v1612 = vsel %vm342, %v1596, 0
    %v1615 = vsel %vm342, %v1597, 0
    %v1618 = vsel %vm342, %v1598, 0
    %v1621 = vsel %vm342, %v1599, 0
    %v1624 = vsel %vm342, %v1600, 0
    %v1627 = vsel %vm342, %v1601, 0
    %v1630 = vsel %vm342, %v1602, 0
    %1632 = vmatprep.subr.mxu0 0.0
    %1633 = vmatpush1.msra.mxu0 0.0
    %1634 = vmatprep.subr.mxu0 0.0
    %1635 = vmatpush1.msra.mxu0 0.0
    %1636 = vmatprep.subr.mxu0 0.0
    %1637 = vmatpush1.msra.mxu0 0.0
    %1638 = vmatprep.subr.mxu0 0.0
    %1639 = vmatpush1.msra.mxu0 0.0
    %1640 = vmatprep.subr.mxu0 0.0
    %1641 = vmatpush1.msra.mxu0 0.0
    %1642 = vmatprep.subr.mxu0 0.0
    %1643 = vmatpush1.msra.mxu0 0.0
    %1644 = vmatprep.subr.mxu0 0.0
    %1645 = vmatpush1.msra.mxu0 0.0
    %1646 = vmatprep.subr.mxu0 0.0
    %1647 = vmatpush1.msra.mxu0 0.0
    %1648 = vmatprep.subr.mxu0 0.0
    %1649 = vmatpush1.msra.mxu0 0.0
    %1650 = vmatprep.subr.mxu0 0.0
    %1651 = vmatpush1.msra.mxu0 0.0
    %1652 = vmatprep.subr.mxu0 0.0
    %1653 = vmatpush1.msra.mxu0 0.0
    %1654 = vmatprep.subr.mxu0 0.0
    %1655 = vmatpush1.msra.mxu0 0.0
    %1656 = vmatprep.subr.mxu0 0.0
    %1657 = vmatpush1.msra.mxu0 %v1607
    %1658 = vmatprep.subr.mxu0 0.0
    %1659 = vmatpush1.msra.mxu0 %v1606
    %1660 = vmatprep.subr.mxu0 0.0
    %1661 = vmatpush1.msra.mxu0 %v1605
    %1662 = vmatprep.subr.mxu0 0.0
    %1663 = vmatpush1.msra.mxu0 %v1604
    %1664 = vmatprep.subr.mxu0 0.0
    %1665 = vmatpush2.msra.mxu0 0.0
    %1666 = vmatprep.subr.mxu0 0.0
    %1667 = vmatpush2.msra.mxu0 0.0
    %1668 = vmatprep.subr.mxu0 0.0
    %1669 = vmatpush2.msra.mxu0 0.0
    %1670 = vmatprep.subr.mxu0 0.0
    %1671 = vmatpush2.msra.mxu0 0.0
    %1672 = vmatprep.subr.mxu0 0.0
    %1673 = vmatpush2.msra.mxu0 0.0
    %1674 = vmatprep.subr.mxu0 0.0
    %1675 = vmatpush2.msra.mxu0 0.0
    %1676 = vmatprep.subr.mxu0 0.0
    %1677 = vmatpush2.msra.mxu0 0.0
    %1678 = vmatprep.subr.mxu0 0.0
    %1679 = vmatpush2.msra.mxu0 0.0
    %1680 = vmatprep.subr.mxu0 0.0
    %1681 = vmatpush2.msra.mxu0 0.0
    %1682 = vmatprep.subr.mxu0 0.0
    %1683 = vmatpush2.msra.mxu0 0.0
    %1684 = vmatprep.subr.mxu0 0.0
    %1685 = vmatpush2.msra.mxu0 0.0
    %1686 = vmatprep.subr.mxu0 0.0
    %1687 = vmatpush2.msra.mxu0 0.0
    %1688 = vmatprep.subr.mxu0 0.0
    %1689 = vmatpush2.msra.mxu0 0.0
    %1690 = vmatprep.subr.mxu0 0.0
    %1691 = vmatpush2.msra.mxu0 0.0
    %1692 = vmatprep.subr.mxu0 0.0
    %1693 = vmatpush2.msra.mxu0 0.0
    %1694 = vmatprep.subr.mxu0 0.0
    %1695 = vmatpush2.msra.mxu0 0.0
    %1696 = vmatprep.mubr.f32.mxu0 0.0
    %1697 = vmatmul.mubr.f32.gmra.mxu0 %v1609
    %v1698 = vpop.f32.mrf.mxu0
    %v1699 = vadd.f32 0.0, %v1698
    %v1700 = vpop.f32.mrf.mxu0
    %1701 = vmatprep.mubr.f32.mxu0 0.0
    %1702 = vmatmul.mubr.f32.gmra.mxu0 %v1612
    %v1703 = vpop.f32.mrf.mxu0
    %v1704 = vadd.f32 0.0, %v1703
    %v1705 = vpop.f32.mrf.mxu0
    %1706 = vmatprep.mubr.f32.mxu0 0.0
    %1707 = vmatmul.mubr.f32.gmra.mxu0 %v1615
    %v1708 = vpop.f32.mrf.mxu0
    %v1709 = vadd.f32 0.0, %v1708
    %v1710 = vpop.f32.mrf.mxu0
    %1711 = vmatprep.mubr.f32.mxu0 0.0
    %1712 = vmatmul.mubr.f32.gmra.mxu0 %v1618
    %v1713 = vpop.f32.mrf.mxu0
    %v1714 = vadd.f32 0.0, %v1713
    %v1715 = vpop.f32.mrf.mxu0
    %1716 = vmatprep.mubr.f32.mxu0 0.0
    %1717 = vmatmul.mubr.f32.gmra.mxu0 %v1621
    %v1718 = vpop.f32.mrf.mxu0
    %v1719 = vadd.f32 0.0, %v1718
    %v1720 = vpop.f32.mrf.mxu0
    %1721 = vmatprep.mubr.f32.mxu0 0.0
    %1722 = vmatmul.mubr.f32.gmra.mxu0 %v1624
    %v1723 = vpop.f32.mrf.mxu0
    %v1724 = vadd.f32 0.0, %v1723
    %v1725 = vpop.f32.mrf.mxu0
    %1726 = vmatprep.mubr.f32.mxu0 0.0
    %1727 = vmatmul.mubr.f32.gmra.mxu0 %v1627
    %v1728 = vpop.f32.mrf.mxu0
    %v1729 = vadd.f32 0.0, %v1728
    %v1730 = vpop.f32.mrf.mxu0
    %1731 = vmatprep.mubr.f32.mxu0 0.0
    %1732 = vmatmul.mubr.f32.gmra.mxu0 %v1630
    %v1733 = vpop.f32.mrf.mxu0
    %v1734 = vadd.f32 0.0, %v1733
    %v1735 = vpop.f32.mrf.mxu0
    %1736 = vdwg.mxu0
    %v1737 = vadd.f32 %v1347, %v1699
    %v1738 = vadd.f32 %v1348, %v1704
    %v1739 = vadd.f32 %v1349, %v1709
    %v1740 = vadd.f32 %v1350, %v1714
    %v1741 = vadd.f32 %v1351, %v1719
    %v1742 = vadd.f32 %v1352, %v1724
    %v1743 = vadd.f32 %v1353, %v1729
    %v1744 = vadd.f32 %v1354, %v1734
    %v1745 = vld [vmem:[%s7] sm:$0x1]
    %v1747 = vlaneseq
    %v1748 = vshrl.u32 %v1747, 7
    %v1749 = vsub.s32 0, %v1748
    %v1750 = vrot.slane %v1745, %v1749
    %1752 = vmatprep.subr.mxu0 0.0
    %1753 = vmatpush1.msra.mxu0 0.0
    %1754 = vmatprep.subr.mxu0 0.0
    %1755 = vmatpush1.msra.mxu0 0.0
    %1756 = vmatprep.subr.mxu0 0.0
    %1757 = vmatpush1.msra.mxu0 0.0
    %1758 = vmatprep.subr.mxu0 0.0
    %1759 = vmatpush1.msra.mxu0 0.0
    %1760 = vmatprep.subr.mxu0 0.0
    %1761 = vmatpush1.msra.mxu0 0.0
    %1762 = vmatprep.subr.mxu0 0.0
    %1763 = vmatpush1.msra.mxu0 0.0
    %1764 = vmatprep.subr.mxu0 0.0
    %1765 = vmatpush1.msra.mxu0 0.0
    %1766 = vmatprep.subr.mxu0 0.0
    %1767 = vmatpush1.msra.mxu0 0.0
    %1768 = vmatprep.subr.mxu0 0.0
    %1769 = vmatpush1.msra.mxu0 %v1744
    %1770 = vmatprep.subr.mxu0 0.0
    %1771 = vmatpush1.msra.mxu0 %v1743
    %1772 = vmatprep.subr.mxu0 0.0
    %1773 = vmatpush1.msra.mxu0 %v1742
    %1774 = vmatprep.subr.mxu0 0.0
    %1775 = vmatpush1.msra.mxu0 %v1741
    %1776 = vmatprep.subr.mxu0 0.0
    %1777 = vmatpush1.msra.mxu0 %v1740
    %1778 = vmatprep.subr.mxu0 0.0
    %1779 = vmatpush1.msra.mxu0 %v1739
    %1780 = vmatprep.subr.mxu0 0.0
    %1781 = vmatpush1.msra.mxu0 %v1738
    %1782 = vmatprep.subr.mxu0 0.0
    %1783 = vmatpush1.msra.mxu0 %v1737
    %1784 = vmatprep.subr.mxu0 0.0
    %1785 = vmatpush2.msra.mxu0 0.0
    %1786 = vmatprep.subr.mxu0 0.0
    %1787 = vmatpush2.msra.mxu0 0.0
    %1788 = vmatprep.subr.mxu0 0.0
    %1789 = vmatpush2.msra.mxu0 0.0
    %1790 = vmatprep.subr.mxu0 0.0
    %1791 = vmatpush2.msra.mxu0 0.0
    %1792 = vmatprep.subr.mxu0 0.0
    %1793 = vmatpush2.msra.mxu0 0.0
    %1794 = vmatprep.subr.mxu0 0.0
    %1795 = vmatpush2.msra.mxu0 0.0
    %1796 = vmatprep.subr.mxu0 0.0
    %1797 = vmatpush2.msra.mxu0 0.0
    %1798 = vmatprep.subr.mxu0 0.0
    %1799 = vmatpush2.msra.mxu0 0.0
    %1800 = vmatprep.subr.mxu0 0.0
    %1801 = vmatpush2.msra.mxu0 0.0
    %1802 = vmatprep.subr.mxu0 0.0
    %1803 = vmatpush2.msra.mxu0 0.0
    %1804 = vmatprep.subr.mxu0 0.0
    %1805 = vmatpush2.msra.mxu0 0.0
    %1806 = vmatprep.subr.mxu0 0.0
    %1807 = vmatpush2.msra.mxu0 0.0
    %1808 = vmatprep.subr.mxu0 0.0
    %1809 = vmatpush2.msra.mxu0 0.0
    %1810 = vmatprep.subr.mxu0 0.0
    %1811 = vmatpush2.msra.mxu0 0.0
    %1812 = vmatprep.subr.mxu0 0.0
    %1813 = vmatpush2.msra.mxu0 0.0
    %1814 = vmatprep.subr.mxu0 0.0
    %1815 = vmatpush2.msra.mxu0 0.0
    %1816 = vmatprep.mubr.f32.mxu0 0.0
    %1817 = vmatmul.mubr.f32.gmra.mxu0 %v212
    %v1818 = vpop.f32.mrf.mxu0
    %v1819 = vadd.f32 %v1750, %v1818
    %v1820 = vpop.f32.mrf.mxu0
    %1821 = vmatprep.mubr.f32.mxu0 0.0
    %1822 = vmatmul.mubr.f32.gmra.mxu0 %v215
    %v1823 = vpop.f32.mrf.mxu0
    %v1824 = vadd.f32 %v1750, %v1823
    %v1825 = vpop.f32.mrf.mxu0
    %1826 = vmatprep.mubr.f32.mxu0 0.0
    %1827 = vmatmul.mubr.f32.gmra.mxu0 %v218
    %v1828 = vpop.f32.mrf.mxu0
    %v1829 = vadd.f32 %v1750, %v1828
    %v1830 = vpop.f32.mrf.mxu0
    %1831 = vmatprep.mubr.f32.mxu0 0.0
    %1832 = vmatmul.mubr.f32.gmra.mxu0 %v221
    %v1833 = vpop.f32.mrf.mxu0
    %v1834 = vadd.f32 %v1750, %v1833
    %v1835 = vpop.f32.mrf.mxu0
    %1836 = vmatprep.mubr.f32.mxu0 0.0
    %1837 = vmatmul.mubr.f32.gmra.mxu0 %v224
    %v1838 = vpop.f32.mrf.mxu0
    %v1839 = vadd.f32 %v1750, %v1838
    %v1840 = vpop.f32.mrf.mxu0
    %1841 = vmatprep.mubr.f32.mxu0 0.0
    %1842 = vmatmul.mubr.f32.gmra.mxu0 %v227
    %v1843 = vpop.f32.mrf.mxu0
    %v1844 = vadd.f32 %v1750, %v1843
    %v1845 = vpop.f32.mrf.mxu0
    %1846 = vmatprep.mubr.f32.mxu0 0.0
    %1847 = vmatmul.mubr.f32.gmra.mxu0 %v230
    %v1848 = vpop.f32.mrf.mxu0
    %v1849 = vadd.f32 %v1750, %v1848
    %v1850 = vpop.f32.mrf.mxu0
    %1851 = vmatprep.mubr.f32.mxu0 0.0
    %1852 = vmatmul.mubr.f32.gmra.mxu0 %v233
    %v1853 = vpop.f32.mrf.mxu0
    %v1854 = vadd.f32 %v1750, %v1853
    %v1855 = vpop.f32.mrf.mxu0
    %1856 = vdwg.mxu0
    %v1857 = vld [vmem:[%s8] sm:$0x1]
    %v1858 = vld [vmem:[%s9] sm:$0x1]
    %vm1859 = vcmask 64512
    %v1860 = vsel %vm1859, %v1819, 0.0
    %v1861 = vsel %vm1859, %v1824, 0.0
    %v1862 = vadd.f32 %v1860, %v1861
    %v1863 = vsel %vm1859, %v1829, 0.0
    %v1864 = vadd.f32 %v1862, %v1863
    %v1865 = vsel %vm1859, %v1834, 0.0
    %v1866 = vadd.f32 %v1864, %v1865
    %v1867 = vsel %vm1859, %v1839, 0.0
    %v1868 = vadd.f32 %v1866, %v1867
    %v1869 = vsel %vm1859, %v1844, 0.0
    %v1870 = vadd.f32 %v1868, %v1869
    %v1871 = vsel %vm1859, %v1849, 0.0
    %v1872 = vadd.f32 %v1870, %v1871
    %v1873 = vsel %vm1859, %v1854, 0.0
    %v1874 = vadd.f32 %v1872, %v1873
    %v1875 = vrot.slane %v1874, 4
    %v1876 = vadd.f32 %v1874, %v1875
    %v1877 = vrot.slane %v1876, 2
    %v1878 = vadd.f32 %v1876, %v1877
    %v1879 = vrot.slane %v1878, 1
    %v1880 = vadd.f32 %v1878, %v1879
    %v1881 = vmul.f32 %v1880, %v364
    %v1882 = vsub.f32 %v1819, %v1881
    %v1883 = vsub.f32 %v1824, %v1881
    %v1884 = vsub.f32 %v1829, %v1881
    %v1885 = vsub.f32 %v1834, %v1881
    %v1886 = vsub.f32 %v1839, %v1881
    %v1887 = vsub.f32 %v1844, %v1881
    %v1888 = vsub.f32 %v1849, %v1881
    %v1889 = vsub.f32 %v1854, %v1881
    %v1890 = vmul.f32 %v1882, %v1882
    %v1891 = vmul.f32 %v1883, %v1883
    %v1892 = vmul.f32 %v1884, %v1884
    %v1893 = vmul.f32 %v1885, %v1885
    %v1894 = vmul.f32 %v1886, %v1886
    %v1895 = vmul.f32 %v1887, %v1887
    %v1896 = vmul.f32 %v1888, %v1888
    %v1897 = vmul.f32 %v1889, %v1889
    %v1898 = vsel %vm1859, %v1890, 0.0
    %v1899 = vsel %vm1859, %v1891, 0.0
    %v1900 = vadd.f32 %v1898, %v1899
    %v1901 = vsel %vm1859, %v1892, 0.0
    %v1902 = vadd.f32 %v1900, %v1901
    %v1903 = vsel %vm1859, %v1893, 0.0
    %v1904 = vadd.f32 %v1902, %v1903
    %v1905 = vsel %vm1859, %v1894, 0.0
    %v1906 = vadd.f32 %v1904, %v1905
    %v1907 = vsel %vm1859, %v1895, 0.0
    %v1908 = vadd.f32 %v1906, %v1907
    %v1909 = vsel %vm1859, %v1896, 0.0
    %v1910 = vadd.f32 %v1908, %v1909
    %v1911 = vsel %vm1859, %v1897, 0.0
    %v1912 = vadd.f32 %v1910, %v1911
    %v1913 = vrot.slane %v1912, 4
    %v1914 = vadd.f32 %v1912, %v1913
    %v1915 = vrot.slane %v1914, 2
    %v1916 = vadd.f32 %v1914, %v1915
    %v1917 = vrot.slane %v1916, 1
    %v1918 = vadd.f32 %v1916, %v1917
    %v1919 = vmul.f32 %v1918, %v364
    %v1920 = vadd.f32 %v1919, 1e-05
    %v1921 = vrsqrt.pop %v1920
    %v1922 = vmul.f32 %v1882, %v1921
    %v1923 = vmul.f32 %v1883, %v1921
    %v1924 = vmul.f32 %v1884, %v1921
    %v1925 = vmul.f32 %v1885, %v1921
    %v1926 = vmul.f32 %v1886, %v1921
    %v1927 = vmul.f32 %v1887, %v1921
    %v1928 = vmul.f32 %v1888, %v1921
    %v1929 = vmul.f32 %v1889, %v1921
    %v1931 = vlaneseq
    %v1932 = vshrl.u32 %v1931, 7
    %v1933 = vsub.s32 0, %v1932
    %v1934 = vrot.slane %v1857, %v1933
    %v1936 = vmul.f32 %v1922, %v1934
    %v1937 = vmul.f32 %v1923, %v1934
    %v1938 = vmul.f32 %v1924, %v1934
    %v1939 = vmul.f32 %v1925, %v1934
    %v1940 = vmul.f32 %v1926, %v1934
    %v1941 = vmul.f32 %v1927, %v1934
    %v1942 = vmul.f32 %v1928, %v1934
    %v1943 = vmul.f32 %v1929, %v1934
    %v1945 = vlaneseq
    %v1946 = vshrl.u32 %v1945, 7
    %v1947 = vsub.s32 0, %v1946
    %v1948 = vrot.slane %v1858, %v1947
    %v1950 = vadd.f32 %v1936, %v1948
    %v1951 = vadd.f32 %v1937, %v1948
    %v1952 = vadd.f32 %v1938, %v1948
    %v1953 = vadd.f32 %v1939, %v1948
    %v1954 = vadd.f32 %v1940, %v1948
    %v1955 = vadd.f32 %v1941, %v1948
    %v1956 = vadd.f32 %v1942, %v1948
    %v1957 = vadd.f32 %v1943, %v1948
    %v1958 = vld [vmem:[%s10] sm:$0xff]
    %1959 = vmatprep.subr.mxu0 0.0
    %1960 = vmatpush1.msra.mxu0 0.0
    %1961 = vmatprep.subr.mxu0 0.0
    %1962 = vmatpush1.msra.mxu0 0.0
    %1963 = vmatprep.subr.mxu0 0.0
    %1964 = vmatpush1.msra.mxu0 0.0
    %1965 = vmatprep.subr.mxu0 0.0
    %1966 = vmatpush1.msra.mxu0 0.0
    %1967 = vmatprep.subr.mxu0 0.0
    %1968 = vmatpush1.msra.mxu0 0.0
    %1969 = vmatprep.subr.mxu0 0.0
    %1970 = vmatpush1.msra.mxu0 0.0
    %1971 = vmatprep.subr.mxu0 0.0
    %1972 = vmatpush1.msra.mxu0 0.0
    %1973 = vmatprep.subr.mxu0 0.0
    %1974 = vmatpush1.msra.mxu0 0.0
    %1975 = vmatprep.subr.mxu0 0.0
    %1976 = vmatpush1.msra.mxu0 %v1744
    %1977 = vmatprep.subr.mxu0 0.0
    %1978 = vmatpush1.msra.mxu0 %v1743
    %1979 = vmatprep.subr.mxu0 0.0
    %1980 = vmatpush1.msra.mxu0 %v1742
    %1981 = vmatprep.subr.mxu0 0.0
    %1982 = vmatpush1.msra.mxu0 %v1741
    %1983 = vmatprep.subr.mxu0 0.0
    %1984 = vmatpush1.msra.mxu0 %v1740
    %1985 = vmatprep.subr.mxu0 0.0
    %1986 = vmatpush1.msra.mxu0 %v1739
    %1987 = vmatprep.subr.mxu0 0.0
    %1988 = vmatpush1.msra.mxu0 %v1738
    %1989 = vmatprep.subr.mxu0 0.0
    %1990 = vmatpush1.msra.mxu0 %v1737
    %1991 = vmatprep.subr.mxu0 0.0
    %1992 = vmatpush2.msra.mxu0 0.0
    %1993 = vmatprep.subr.mxu0 0.0
    %1994 = vmatpush2.msra.mxu0 0.0
    %1995 = vmatprep.subr.mxu0 0.0
    %1996 = vmatpush2.msra.mxu0 0.0
    %1997 = vmatprep.subr.mxu0 0.0
    %1998 = vmatpush2.msra.mxu0 0.0
    %1999 = vmatprep.subr.mxu0 0.0
    %2000 = vmatpush2.msra.mxu0 0.0
    %2001 = vmatprep.subr.mxu0 0.0
    %2002 = vmatpush2.msra.mxu0 0.0
    %2003 = vmatprep.subr.mxu0 0.0
    %2004 = vmatpush2.msra.mxu0 0.0
    %2005 = vmatprep.subr.mxu0 0.0
    %2006 = vmatpush2.msra.mxu0 0.0
    %2007 = vmatprep.subr.mxu0 0.0
    %2008 = vmatpush2.msra.mxu0 0.0
    %2009 = vmatprep.subr.mxu0 0.0
    %2010 = vmatpush2.msra.mxu0 0.0
    %2011 = vmatprep.subr.mxu0 0.0
    %2012 = vmatpush2.msra.mxu0 0.0
    %2013 = vmatprep.subr.mxu0 0.0
    %2014 = vmatpush2.msra.mxu0 0.0
    %2015 = vmatprep.subr.mxu0 0.0
    %2016 = vmatpush2.msra.mxu0 0.0
    %2017 = vmatprep.subr.mxu0 0.0
    %2018 = vmatpush2.msra.mxu0 0.0
    %2019 = vmatprep.subr.mxu0 0.0
    %2020 = vmatpush2.msra.mxu0 0.0
    %2021 = vmatprep.subr.mxu0 0.0
    %2022 = vmatpush2.msra.mxu0 0.0
    %2023 = vmatprep.mubr.f32.mxu0 0.0
    %2024 = vmatmul.mubr.f32.gmra.mxu0 %v464
    %v2025 = vpop.f32.mrf.mxu0
    %v2026 = vadd.f32 %v1750, %v2025
    %v2027 = vpop.f32.mrf.mxu0
    %2028 = vmatprep.mubr.f32.mxu0 0.0
    %2029 = vmatmul.mubr.f32.gmra.mxu0 %v467
    %v2030 = vpop.f32.mrf.mxu0
    %v2031 = vadd.f32 %v1750, %v2030
    %v2032 = vpop.f32.mrf.mxu0
    %2033 = vmatprep.mubr.f32.mxu0 0.0
    %2034 = vmatmul.mubr.f32.gmra.mxu0 %v470
    %v2035 = vpop.f32.mrf.mxu0
    %v2036 = vadd.f32 %v1750, %v2035
    %v2037 = vpop.f32.mrf.mxu0
    %2038 = vmatprep.mubr.f32.mxu0 0.0
    %2039 = vmatmul.mubr.f32.gmra.mxu0 %v473
    %v2040 = vpop.f32.mrf.mxu0
    %v2041 = vadd.f32 %v1750, %v2040
    %v2042 = vpop.f32.mrf.mxu0
    %2043 = vmatprep.mubr.f32.mxu0 0.0
    %2044 = vmatmul.mubr.f32.gmra.mxu0 %v476
    %v2045 = vpop.f32.mrf.mxu0
    %v2046 = vadd.f32 %v1750, %v2045
    %v2047 = vpop.f32.mrf.mxu0
    %2048 = vmatprep.mubr.f32.mxu0 0.0
    %2049 = vmatmul.mubr.f32.gmra.mxu0 %v479
    %v2050 = vpop.f32.mrf.mxu0
    %v2051 = vadd.f32 %v1750, %v2050
    %v2052 = vpop.f32.mrf.mxu0
    %2053 = vmatprep.mubr.f32.mxu0 0.0
    %2054 = vmatmul.mubr.f32.gmra.mxu0 %v482
    %v2055 = vpop.f32.mrf.mxu0
    %v2056 = vadd.f32 %v1750, %v2055
    %v2057 = vpop.f32.mrf.mxu0
    %2058 = vmatprep.mubr.f32.mxu0 0.0
    %2059 = vmatmul.mubr.f32.gmra.mxu0 %v485
    %v2060 = vpop.f32.mrf.mxu0
    %v2061 = vadd.f32 %v1750, %v2060
    %v2062 = vpop.f32.mrf.mxu0
    %2063 = vdwg.mxu0
    %s2064 = scalar_lea.vmem %s8, 1
    %v2065 = vld [vmem:[%s2064] sm:$0x1]
    %s2066 = scalar_lea.vmem %s9, 1
    %v2067 = vld [vmem:[%s2066] sm:$0x1]
    %v2068 = vsel %vm1859, %v2026, 0.0
    %v2069 = vsel %vm1859, %v2031, 0.0
    %v2070 = vadd.f32 %v2068, %v2069
    %v2071 = vsel %vm1859, %v2036, 0.0
    %v2072 = vadd.f32 %v2070, %v2071
    %v2073 = vsel %vm1859, %v2041, 0.0
    %v2074 = vadd.f32 %v2072, %v2073
    %v2075 = vsel %vm1859, %v2046, 0.0
    %v2076 = vadd.f32 %v2074, %v2075
    %v2077 = vsel %vm1859, %v2051, 0.0
    %v2078 = vadd.f32 %v2076, %v2077
    %v2079 = vsel %vm1859, %v2056, 0.0
    %v2080 = vadd.f32 %v2078, %v2079
    %v2081 = vsel %vm1859, %v2061, 0.0
    %v2082 = vadd.f32 %v2080, %v2081
    %v2083 = vrot.slane %v2082, 4
    %v2084 = vadd.f32 %v2082, %v2083
    %v2085 = vrot.slane %v2084, 2
    %v2086 = vadd.f32 %v2084, %v2085
    %v2087 = vrot.slane %v2086, 1
    %v2088 = vadd.f32 %v2086, %v2087
    %v2089 = vmul.f32 %v2088, %v364
    %v2090 = vsub.f32 %v2026, %v2089
    %v2091 = vsub.f32 %v2031, %v2089
    %v2092 = vsub.f32 %v2036, %v2089
    %v2093 = vsub.f32 %v2041, %v2089
    %v2094 = vsub.f32 %v2046, %v2089
    %v2095 = vsub.f32 %v2051, %v2089
    %v2096 = vsub.f32 %v2056, %v2089
    %v2097 = vsub.f32 %v2061, %v2089
    %v2098 = vmul.f32 %v2090, %v2090
    %v2099 = vmul.f32 %v2091, %v2091
    %v2100 = vmul.f32 %v2092, %v2092
    %v2101 = vmul.f32 %v2093, %v2093
    %v2102 = vmul.f32 %v2094, %v2094
    %v2103 = vmul.f32 %v2095, %v2095
    %v2104 = vmul.f32 %v2096, %v2096
    %v2105 = vmul.f32 %v2097, %v2097
    %v2106 = vsel %vm1859, %v2098, 0.0
    %v2107 = vsel %vm1859, %v2099, 0.0
    %v2108 = vadd.f32 %v2106, %v2107
    %v2109 = vsel %vm1859, %v2100, 0.0
    %v2110 = vadd.f32 %v2108, %v2109
    %v2111 = vsel %vm1859, %v2101, 0.0
    %v2112 = vadd.f32 %v2110, %v2111
    %v2113 = vsel %vm1859, %v2102, 0.0
    %v2114 = vadd.f32 %v2112, %v2113
    %v2115 = vsel %vm1859, %v2103, 0.0
    %v2116 = vadd.f32 %v2114, %v2115
    %v2117 = vsel %vm1859, %v2104, 0.0
    %v2118 = vadd.f32 %v2116, %v2117
    %v2119 = vsel %vm1859, %v2105, 0.0
    %v2120 = vadd.f32 %v2118, %v2119
    %v2121 = vrot.slane %v2120, 4
    %v2122 = vadd.f32 %v2120, %v2121
    %v2123 = vrot.slane %v2122, 2
    %v2124 = vadd.f32 %v2122, %v2123
    %v2125 = vrot.slane %v2124, 1
    %v2126 = vadd.f32 %v2124, %v2125
    %v2127 = vmul.f32 %v2126, %v364
    %v2128 = vadd.f32 %v2127, 1e-05
    %v2129 = vrsqrt.pop %v2128
    %v2130 = vmul.f32 %v2090, %v2129
    %v2131 = vmul.f32 %v2091, %v2129
    %v2132 = vmul.f32 %v2092, %v2129
    %v2133 = vmul.f32 %v2093, %v2129
    %v2134 = vmul.f32 %v2094, %v2129
    %v2135 = vmul.f32 %v2095, %v2129
    %v2136 = vmul.f32 %v2096, %v2129
    %v2137 = vmul.f32 %v2097, %v2129
    %v2139 = vlaneseq
    %v2140 = vshrl.u32 %v2139, 7
    %v2141 = vsub.s32 0, %v2140
    %v2142 = vrot.slane %v2065, %v2141
    %v2144 = vmul.f32 %v2130, %v2142
    %v2145 = vmul.f32 %v2131, %v2142
    %v2146 = vmul.f32 %v2132, %v2142
    %v2147 = vmul.f32 %v2133, %v2142
    %v2148 = vmul.f32 %v2134, %v2142
    %v2149 = vmul.f32 %v2135, %v2142
    %v2150 = vmul.f32 %v2136, %v2142
    %v2151 = vmul.f32 %v2137, %v2142
    %v2153 = vlaneseq
    %v2154 = vshrl.u32 %v2153, 7
    %v2155 = vsub.s32 0, %v2154
    %v2156 = vrot.slane %v2067, %v2155
    %v2158 = vadd.f32 %v2144, %v2156
    %v2159 = vadd.f32 %v2145, %v2156
    %v2160 = vadd.f32 %v2146, %v2156
    %v2161 = vadd.f32 %v2147, %v2156
    %v2162 = vadd.f32 %v2148, %v2156
    %v2163 = vadd.f32 %v2149, %v2156
    %v2164 = vadd.f32 %v2150, %v2156
    %v2165 = vadd.f32 %v2151, %v2156
    %s2166 = scalar_lea.vmem %s10, 8
    %v2167 = vld [vmem:[%s2166] sm:$0xff]
    %v2169 = vsel %vm1859, %v2158, 0
    %v2172 = vsel %vm1859, %v2159, 0
    %v2175 = vsel %vm1859, %v2160, 0
    %v2178 = vsel %vm1859, %v2161, 0
    %v2181 = vsel %vm1859, %v2162, 0
    %v2184 = vsel %vm1859, %v2163, 0
    %v2187 = vsel %vm1859, %v2164, 0
    %v2190 = vsel %vm1859, %v2165, 0
    %2192 = vmatprep.subr.mxu0 0.0
    %2193 = vmatpush1.msra.mxu0 0.0
    %2194 = vmatprep.subr.mxu0 0.0
    %2195 = vmatpush1.msra.mxu0 0.0
    %2196 = vmatprep.subr.mxu0 0.0
    %2197 = vmatpush1.msra.mxu0 0.0
    %2198 = vmatprep.subr.mxu0 0.0
    %2199 = vmatpush1.msra.mxu0 0.0
    %2200 = vmatprep.subr.mxu0 0.0
    %2201 = vmatpush1.msra.mxu0 0.0
    %2202 = vmatprep.subr.mxu0 0.0
    %2203 = vmatpush1.msra.mxu0 0.0
    %2204 = vmatprep.subr.mxu0 0.0
    %2205 = vmatpush1.msra.mxu0 0.0
    %2206 = vmatprep.subr.mxu0 0.0
    %2207 = vmatpush1.msra.mxu0 0.0
    %2208 = vmatprep.subr.mxu0 0.0
    %2209 = vmatpush1.msra.mxu0 0.0
    %2210 = vmatprep.subr.mxu0 0.0
    %2211 = vmatpush1.msra.mxu0 0.0
    %2212 = vmatprep.subr.mxu0 0.0
    %2213 = vmatpush1.msra.mxu0 0.0
    %2214 = vmatprep.subr.mxu0 0.0
    %2215 = vmatpush1.msra.mxu0 0.0
    %2216 = vmatprep.subr.mxu0 0.0
    %2217 = vmatpush1.msra.mxu0 0.0
    %2218 = vmatprep.subr.mxu0 0.0
    %2219 = vmatpush1.msra.mxu0 0.0
    %2220 = vmatprep.subr.mxu0 0.0
    %2221 = vmatpush1.msra.mxu0 0.0
    %2222 = vmatprep.subr.mxu0 0.0
    %2223 = vmatpush1.msra.mxu0 %v2167
    %2224 = vmatprep.subr.mxu0 0.0
    %2225 = vmatpush2.msra.mxu0 0.0
    %2226 = vmatprep.subr.mxu0 0.0
    %2227 = vmatpush2.msra.mxu0 0.0
    %2228 = vmatprep.subr.mxu0 0.0
    %2229 = vmatpush2.msra.mxu0 0.0
    %2230 = vmatprep.subr.mxu0 0.0
    %2231 = vmatpush2.msra.mxu0 0.0
    %2232 = vmatprep.subr.mxu0 0.0
    %2233 = vmatpush2.msra.mxu0 0.0
    %2234 = vmatprep.subr.mxu0 0.0
    %2235 = vmatpush2.msra.mxu0 0.0
    %2236 = vmatprep.subr.mxu0 0.0
    %2237 = vmatpush2.msra.mxu0 0.0
    %2238 = vmatprep.subr.mxu0 0.0
    %2239 = vmatpush2.msra.mxu0 0.0
    %2240 = vmatprep.subr.mxu0 0.0
    %2241 = vmatpush2.msra.mxu0 0.0
    %2242 = vmatprep.subr.mxu0 0.0
    %2243 = vmatpush2.msra.mxu0 0.0
    %2244 = vmatprep.subr.mxu0 0.0
    %2245 = vmatpush2.msra.mxu0 0.0
    %2246 = vmatprep.subr.mxu0 0.0
    %2247 = vmatpush2.msra.mxu0 0.0
    %2248 = vmatprep.subr.mxu0 0.0
    %2249 = vmatpush2.msra.mxu0 0.0
    %2250 = vmatprep.subr.mxu0 0.0
    %2251 = vmatpush2.msra.mxu0 0.0
    %2252 = vmatprep.subr.mxu0 0.0
    %2253 = vmatpush2.msra.mxu0 0.0
    %2254 = vmatprep.subr.mxu0 0.0
    %2255 = vmatpush2.msra.mxu0 0.0
    %2256 = vmatprep.mubr.f32.mxu0 0.0
    %2257 = vmatmul.mubr.f32.gmra.mxu0 %v2169
    %v2258 = vpop.f32.mrf.mxu0
    %v2259 = vadd.f32 0.0, %v2258
    %v2260 = vpop.f32.mrf.mxu0
    %2261 = vmatprep.mubr.f32.mxu0 0.0
    %2262 = vmatmul.mubr.f32.gmra.mxu0 %v2172
    %v2263 = vpop.f32.mrf.mxu0
    %v2264 = vadd.f32 0.0, %v2263
    %v2265 = vpop.f32.mrf.mxu0
    %2266 = vmatprep.mubr.f32.mxu0 0.0
    %2267 = vmatmul.mubr.f32.gmra.mxu0 %v2175
    %v2268 = vpop.f32.mrf.mxu0
    %v2269 = vadd.f32 0.0, %v2268
    %v2270 = vpop.f32.mrf.mxu0
    %2271 = vmatprep.mubr.f32.mxu0 0.0
    %2272 = vmatmul.mubr.f32.gmra.mxu0 %v2178
    %v2273 = vpop.f32.mrf.mxu0
    %v2274 = vadd.f32 0.0, %v2273
    %v2275 = vpop.f32.mrf.mxu0
    %2276 = vmatprep.mubr.f32.mxu0 0.0
    %2277 = vmatmul.mubr.f32.gmra.mxu0 %v2181
    %v2278 = vpop.f32.mrf.mxu0
    %v2279 = vadd.f32 0.0, %v2278
    %v2280 = vpop.f32.mrf.mxu0
    %2281 = vmatprep.mubr.f32.mxu0 0.0
    %2282 = vmatmul.mubr.f32.gmra.mxu0 %v2184
    %v2283 = vpop.f32.mrf.mxu0
    %v2284 = vadd.f32 0.0, %v2283
    %v2285 = vpop.f32.mrf.mxu0
    %2286 = vmatprep.mubr.f32.mxu0 0.0
    %2287 = vmatmul.mubr.f32.gmra.mxu0 %v2187
    %v2288 = vpop.f32.mrf.mxu0
    %v2289 = vadd.f32 0.0, %v2288
    %v2290 = vpop.f32.mrf.mxu0
    %2291 = vmatprep.mubr.f32.mxu0 0.0
    %2292 = vmatmul.mubr.f32.gmra.mxu0 %v2190
    %v2293 = vpop.f32.mrf.mxu0
    %v2294 = vadd.f32 0.0, %v2293
    %v2295 = vpop.f32.mrf.mxu0
    %2296 = vdwg.mxu0
    %v2298 = vsel %vm1859, %v1950, 0
    %v2301 = vsel %vm1859, %v1951, 0
    %v2304 = vsel %vm1859, %v1952, 0
    %v2307 = vsel %vm1859, %v1953, 0
    %v2310 = vsel %vm1859, %v1954, 0
    %v2313 = vsel %vm1859, %v1955, 0
    %v2316 = vsel %vm1859, %v1956, 0
    %v2319 = vsel %vm1859, %v1957, 0
    %2321 = vmatprep.subr.mxu0 0.0
    %2322 = vmatpush1.msra.mxu0 0.0
    %2323 = vmatprep.subr.mxu0 0.0
    %2324 = vmatpush1.msra.mxu0 0.0
    %2325 = vmatprep.subr.mxu0 0.0
    %2326 = vmatpush1.msra.mxu0 0.0
    %2327 = vmatprep.subr.mxu0 0.0
    %2328 = vmatpush1.msra.mxu0 0.0
    %2329 = vmatprep.subr.mxu0 0.0
    %2330 = vmatpush1.msra.mxu0 0.0
    %2331 = vmatprep.subr.mxu0 0.0
    %2332 = vmatpush1.msra.mxu0 0.0
    %2333 = vmatprep.subr.mxu0 0.0
    %2334 = vmatpush1.msra.mxu0 0.0
    %2335 = vmatprep.subr.mxu0 0.0
    %2336 = vmatpush1.msra.mxu0 0.0
    %2337 = vmatprep.subr.mxu0 0.0
    %2338 = vmatpush1.msra.mxu0 0.0
    %2339 = vmatprep.subr.mxu0 0.0
    %2340 = vmatpush1.msra.mxu0 0.0
    %2341 = vmatprep.subr.mxu0 0.0
    %2342 = vmatpush1.msra.mxu0 0.0
    %2343 = vmatprep.subr.mxu0 0.0
    %2344 = vmatpush1.msra.mxu0 0.0
    %2345 = vmatprep.subr.mxu0 0.0
    %2346 = vmatpush1.msra.mxu0 0.0
    %2347 = vmatprep.subr.mxu0 0.0
    %2348 = vmatpush1.msra.mxu0 0.0
    %2349 = vmatprep.subr.mxu0 0.0
    %2350 = vmatpush1.msra.mxu0 0.0
    %2351 = vmatprep.subr.mxu0 0.0
    %2352 = vmatpush1.msra.mxu0 %v1958
    %2353 = vmatprep.subr.mxu0 0.0
    %2354 = vmatpush2.msra.mxu0 0.0
    %2355 = vmatprep.subr.mxu0 0.0
    %2356 = vmatpush2.msra.mxu0 0.0
    %2357 = vmatprep.subr.mxu0 0.0
    %2358 = vmatpush2.msra.mxu0 0.0
    %2359 = vmatprep.subr.mxu0 0.0
    %2360 = vmatpush2.msra.mxu0 0.0
    %2361 = vmatprep.subr.mxu0 0.0
    %2362 = vmatpush2.msra.mxu0 0.0
    %2363 = vmatprep.subr.mxu0 0.0
    %2364 = vmatpush2.msra.mxu0 0.0
    %2365 = vmatprep.subr.mxu0 0.0
    %2366 = vmatpush2.msra.mxu0 0.0
    %2367 = vmatprep.subr.mxu0 0.0
    %2368 = vmatpush2.msra.mxu0 0.0
    %2369 = vmatprep.subr.mxu0 0.0
    %2370 = vmatpush2.msra.mxu0 0.0
    %2371 = vmatprep.subr.mxu0 0.0
    %2372 = vmatpush2.msra.mxu0 0.0
    %2373 = vmatprep.subr.mxu0 0.0
    %2374 = vmatpush2.msra.mxu0 0.0
    %2375 = vmatprep.subr.mxu0 0.0
    %2376 = vmatpush2.msra.mxu0 0.0
    %2377 = vmatprep.subr.mxu0 0.0
    %2378 = vmatpush2.msra.mxu0 0.0
    %2379 = vmatprep.subr.mxu0 0.0
    %2380 = vmatpush2.msra.mxu0 0.0
    %2381 = vmatprep.subr.mxu0 0.0
    %2382 = vmatpush2.msra.mxu0 0.0
    %2383 = vmatprep.subr.mxu0 0.0
    %2384 = vmatpush2.msra.mxu0 0.0
    %2385 = vmatprep.mubr.f32.mxu0 0.0
    %2386 = vmatmul.mubr.f32.gmra.mxu0 %v2298
    %v2387 = vpop.f32.mrf.mxu0
    %v2388 = vadd.f32 %v2259, %v2387
    %v2389 = vpop.f32.mrf.mxu0
    %2390 = vmatprep.mubr.f32.mxu0 0.0
    %2391 = vmatmul.mubr.f32.gmra.mxu0 %v2301
    %v2392 = vpop.f32.mrf.mxu0
    %v2393 = vadd.f32 %v2264, %v2392
    %v2394 = vpop.f32.mrf.mxu0
    %2395 = vmatprep.mubr.f32.mxu0 0.0
    %2396 = vmatmul.mubr.f32.gmra.mxu0 %v2304
    %v2397 = vpop.f32.mrf.mxu0
    %v2398 = vadd.f32 %v2269, %v2397
    %v2399 = vpop.f32.mrf.mxu0
    %2400 = vmatprep.mubr.f32.mxu0 0.0
    %2401 = vmatmul.mubr.f32.gmra.mxu0 %v2307
    %v2402 = vpop.f32.mrf.mxu0
    %v2403 = vadd.f32 %v2274, %v2402
    %v2404 = vpop.f32.mrf.mxu0
    %2405 = vmatprep.mubr.f32.mxu0 0.0
    %2406 = vmatmul.mubr.f32.gmra.mxu0 %v2310
    %v2407 = vpop.f32.mrf.mxu0
    %v2408 = vadd.f32 %v2279, %v2407
    %v2409 = vpop.f32.mrf.mxu0
    %2410 = vmatprep.mubr.f32.mxu0 0.0
    %2411 = vmatmul.mubr.f32.gmra.mxu0 %v2313
    %v2412 = vpop.f32.mrf.mxu0
    %v2413 = vadd.f32 %v2284, %v2412
    %v2414 = vpop.f32.mrf.mxu0
    %2415 = vmatprep.mubr.f32.mxu0 0.0
    %2416 = vmatmul.mubr.f32.gmra.mxu0 %v2316
    %v2417 = vpop.f32.mrf.mxu0
    %v2418 = vadd.f32 %v2289, %v2417
    %v2419 = vpop.f32.mrf.mxu0
    %2420 = vmatprep.mubr.f32.mxu0 0.0
    %2421 = vmatmul.mubr.f32.gmra.mxu0 %v2319
    %v2422 = vpop.f32.mrf.mxu0
    %v2423 = vadd.f32 %v2294, %v2422
    %v2424 = vpop.f32.mrf.mxu0
    %2425 = vdwg.mxu0
    %2426 = vmatprep.subr.mxu0 0.0
    %2427 = vmatpush1.msra.mxu0 0.0
    %2428 = vmatprep.subr.mxu0 0.0
    %2429 = vmatpush1.msra.mxu0 0.0
    %2430 = vmatprep.subr.mxu0 0.0
    %2431 = vmatpush1.msra.mxu0 0.0
    %2432 = vmatprep.subr.mxu0 0.0
    %2433 = vmatpush1.msra.mxu0 0.0
    %2434 = vmatprep.subr.mxu0 0.0
    %2435 = vmatpush1.msra.mxu0 0.0
    %2436 = vmatprep.subr.mxu0 0.0
    %2437 = vmatpush1.msra.mxu0 0.0
    %2438 = vmatprep.subr.mxu0 0.0
    %2439 = vmatpush1.msra.mxu0 0.0
    %2440 = vmatprep.subr.mxu0 0.0
    %2441 = vmatpush1.msra.mxu0 0.0
    %2442 = vmatprep.subr.mxu0 0.0
    %2443 = vmatpush1.msra.mxu0 %v1744
    %2444 = vmatprep.subr.mxu0 0.0
    %2445 = vmatpush1.msra.mxu0 %v1743
    %2446 = vmatprep.subr.mxu0 0.0
    %2447 = vmatpush1.msra.mxu0 %v1742
    %2448 = vmatprep.subr.mxu0 0.0
    %2449 = vmatpush1.msra.mxu0 %v1741
    %2450 = vmatprep.subr.mxu0 0.0
    %2451 = vmatpush1.msra.mxu0 %v1740
    %2452 = vmatprep.subr.mxu0 0.0
    %2453 = vmatpush1.msra.mxu0 %v1739
    %2454 = vmatprep.subr.mxu0 0.0
    %2455 = vmatpush1.msra.mxu0 %v1738
    %2456 = vmatprep.subr.mxu0 0.0
    %2457 = vmatpush1.msra.mxu0 %v1737
    %2458 = vmatprep.subr.mxu0 0.0
    %2459 = vmatpush2.msra.mxu0 0.0
    %2460 = vmatprep.subr.mxu0 0.0
    %2461 = vmatpush2.msra.mxu0 0.0
    %2462 = vmatprep.subr.mxu0 0.0
    %2463 = vmatpush2.msra.mxu0 0.0
    %2464 = vmatprep.subr.mxu0 0.0
    %2465 = vmatpush2.msra.mxu0 0.0
    %2466 = vmatprep.subr.mxu0 0.0
    %2467 = vmatpush2.msra.mxu0 0.0
    %2468 = vmatprep.subr.mxu0 0.0
    %2469 = vmatpush2.msra.mxu0 0.0
    %2470 = vmatprep.subr.mxu0 0.0
    %2471 = vmatpush2.msra.mxu0 0.0
    %2472 = vmatprep.subr.mxu0 0.0
    %2473 = vmatpush2.msra.mxu0 0.0
    %2474 = vmatprep.subr.mxu0 0.0
    %2475 = vmatpush2.msra.mxu0 0.0
    %2476 = vmatprep.subr.mxu0 0.0
    %2477 = vmatpush2.msra.mxu0 0.0
    %2478 = vmatprep.subr.mxu0 0.0
    %2479 = vmatpush2.msra.mxu0 0.0
    %2480 = vmatprep.subr.mxu0 0.0
    %2481 = vmatpush2.msra.mxu0 0.0
    %2482 = vmatprep.subr.mxu0 0.0
    %2483 = vmatpush2.msra.mxu0 0.0
    %2484 = vmatprep.subr.mxu0 0.0
    %2485 = vmatpush2.msra.mxu0 0.0
    %2486 = vmatprep.subr.mxu0 0.0
    %2487 = vmatpush2.msra.mxu0 0.0
    %2488 = vmatprep.subr.mxu0 0.0
    %2489 = vmatpush2.msra.mxu0 0.0
    %2490 = vmatprep.mubr.f32.mxu0 0.0
    %2491 = vmatmul.mubr.f32.gmra.mxu0 %v975
    %v2492 = vpop.f32.mrf.mxu0
    %v2493 = vadd.f32 %v1750, %v2492
    %v2494 = vpop.f32.mrf.mxu0
    %2495 = vmatprep.mubr.f32.mxu0 0.0
    %2496 = vmatmul.mubr.f32.gmra.mxu0 %v978
    %v2497 = vpop.f32.mrf.mxu0
    %v2498 = vadd.f32 %v1750, %v2497
    %v2499 = vpop.f32.mrf.mxu0
    %2500 = vmatprep.mubr.f32.mxu0 0.0
    %2501 = vmatmul.mubr.f32.gmra.mxu0 %v981
    %v2502 = vpop.f32.mrf.mxu0
    %v2503 = vadd.f32 %v1750, %v2502
    %v2504 = vpop.f32.mrf.mxu0
    %2505 = vmatprep.mubr.f32.mxu0 0.0
    %2506 = vmatmul.mubr.f32.gmra.mxu0 %v984
    %v2507 = vpop.f32.mrf.mxu0
    %v2508 = vadd.f32 %v1750, %v2507
    %v2509 = vpop.f32.mrf.mxu0
    %2510 = vmatprep.mubr.f32.mxu0 0.0
    %2511 = vmatmul.mubr.f32.gmra.mxu0 %v987
    %v2512 = vpop.f32.mrf.mxu0
    %v2513 = vadd.f32 %v1750, %v2512
    %v2514 = vpop.f32.mrf.mxu0
    %2515 = vmatprep.mubr.f32.mxu0 0.0
    %2516 = vmatmul.mubr.f32.gmra.mxu0 %v990
    %v2517 = vpop.f32.mrf.mxu0
    %v2518 = vadd.f32 %v1750, %v2517
    %v2519 = vpop.f32.mrf.mxu0
    %2520 = vmatprep.mubr.f32.mxu0 0.0
    %2521 = vmatmul.mubr.f32.gmra.mxu0 %v993
    %v2522 = vpop.f32.mrf.mxu0
    %v2523 = vadd.f32 %v1750, %v2522
    %v2524 = vpop.f32.mrf.mxu0
    %2525 = vmatprep.mubr.f32.mxu0 0.0
    %2526 = vmatmul.mubr.f32.gmra.mxu0 %v996
    %v2527 = vpop.f32.mrf.mxu0
    %v2528 = vadd.f32 %v1750, %v2527
    %v2529 = vpop.f32.mrf.mxu0
    %2530 = vdwg.mxu0
    %s2531 = scalar_lea.vmem %s8, 2
    %v2532 = vld [vmem:[%s2531] sm:$0x1]
    %s2533 = scalar_lea.vmem %s9, 2
    %v2534 = vld [vmem:[%s2533] sm:$0x1]
    %v2535 = vsel %vm1859, %v2493, 0.0
    %v2536 = vsel %vm1859, %v2498, 0.0
    %v2537 = vadd.f32 %v2535, %v2536
    %v2538 = vsel %vm1859, %v2503, 0.0
    %v2539 = vadd.f32 %v2537, %v2538
    %v2540 = vsel %vm1859, %v2508, 0.0
    %v2541 = vadd.f32 %v2539, %v2540
    %v2542 = vsel %vm1859, %v2513, 0.0
    %v2543 = vadd.f32 %v2541, %v2542
    %v2544 = vsel %vm1859, %v2518, 0.0
    %v2545 = vadd.f32 %v2543, %v2544
    %v2546 = vsel %vm1859, %v2523, 0.0
    %v2547 = vadd.f32 %v2545, %v2546
    %v2548 = vsel %vm1859, %v2528, 0.0
    %v2549 = vadd.f32 %v2547, %v2548
    %v2550 = vrot.slane %v2549, 4
    %v2551 = vadd.f32 %v2549, %v2550
    %v2552 = vrot.slane %v2551, 2
    %v2553 = vadd.f32 %v2551, %v2552
    %v2554 = vrot.slane %v2553, 1
    %v2555 = vadd.f32 %v2553, %v2554
    %v2556 = vmul.f32 %v2555, %v364
    %v2557 = vsub.f32 %v2493, %v2556
    %v2558 = vsub.f32 %v2498, %v2556
    %v2559 = vsub.f32 %v2503, %v2556
    %v2560 = vsub.f32 %v2508, %v2556
    %v2561 = vsub.f32 %v2513, %v2556
    %v2562 = vsub.f32 %v2518, %v2556
    %v2563 = vsub.f32 %v2523, %v2556
    %v2564 = vsub.f32 %v2528, %v2556
    %v2565 = vmul.f32 %v2557, %v2557
    %v2566 = vmul.f32 %v2558, %v2558
    %v2567 = vmul.f32 %v2559, %v2559
    %v2568 = vmul.f32 %v2560, %v2560
    %v2569 = vmul.f32 %v2561, %v2561
    %v2570 = vmul.f32 %v2562, %v2562
    %v2571 = vmul.f32 %v2563, %v2563
    %v2572 = vmul.f32 %v2564, %v2564
    %v2573 = vsel %vm1859, %v2565, 0.0
    %v2574 = vsel %vm1859, %v2566, 0.0
    %v2575 = vadd.f32 %v2573, %v2574
    %v2576 = vsel %vm1859, %v2567, 0.0
    %v2577 = vadd.f32 %v2575, %v2576
    %v2578 = vsel %vm1859, %v2568, 0.0
    %v2579 = vadd.f32 %v2577, %v2578
    %v2580 = vsel %vm1859, %v2569, 0.0
    %v2581 = vadd.f32 %v2579, %v2580
    %v2582 = vsel %vm1859, %v2570, 0.0
    %v2583 = vadd.f32 %v2581, %v2582
    %v2584 = vsel %vm1859, %v2571, 0.0
    %v2585 = vadd.f32 %v2583, %v2584
    %v2586 = vsel %vm1859, %v2572, 0.0
    %v2587 = vadd.f32 %v2585, %v2586
    %v2588 = vrot.slane %v2587, 4
    %v2589 = vadd.f32 %v2587, %v2588
    %v2590 = vrot.slane %v2589, 2
    %v2591 = vadd.f32 %v2589, %v2590
    %v2592 = vrot.slane %v2591, 1
    %v2593 = vadd.f32 %v2591, %v2592
    %v2594 = vmul.f32 %v2593, %v364
    %v2595 = vadd.f32 %v2594, 1e-05
    %v2596 = vrsqrt.pop %v2595
    %v2597 = vmul.f32 %v2557, %v2596
    %v2598 = vmul.f32 %v2558, %v2596
    %v2599 = vmul.f32 %v2559, %v2596
    %v2600 = vmul.f32 %v2560, %v2596
    %v2601 = vmul.f32 %v2561, %v2596
    %v2602 = vmul.f32 %v2562, %v2596
    %v2603 = vmul.f32 %v2563, %v2596
    %v2604 = vmul.f32 %v2564, %v2596
    %v2606 = vlaneseq
    %v2607 = vshrl.u32 %v2606, 7
    %v2608 = vsub.s32 0, %v2607
    %v2609 = vrot.slane %v2532, %v2608
    %v2611 = vmul.f32 %v2597, %v2609
    %v2612 = vmul.f32 %v2598, %v2609
    %v2613 = vmul.f32 %v2599, %v2609
    %v2614 = vmul.f32 %v2600, %v2609
    %v2615 = vmul.f32 %v2601, %v2609
    %v2616 = vmul.f32 %v2602, %v2609
    %v2617 = vmul.f32 %v2603, %v2609
    %v2618 = vmul.f32 %v2604, %v2609
    %v2620 = vlaneseq
    %v2621 = vshrl.u32 %v2620, 7
    %v2622 = vsub.s32 0, %v2621
    %v2623 = vrot.slane %v2534, %v2622
    %v2625 = vadd.f32 %v2611, %v2623
    %v2626 = vadd.f32 %v2612, %v2623
    %v2627 = vadd.f32 %v2613, %v2623
    %v2628 = vadd.f32 %v2614, %v2623
    %v2629 = vadd.f32 %v2615, %v2623
    %v2630 = vadd.f32 %v2616, %v2623
    %v2631 = vadd.f32 %v2617, %v2623
    %v2632 = vadd.f32 %v2618, %v2623
    %s2633 = scalar_lea.vmem %s10, 16
    %v2634 = vld [vmem:[%s2633] sm:$0xff]
    %v2636 = vsel %vm1859, %v2625, 0
    %v2639 = vsel %vm1859, %v2626, 0
    %v2642 = vsel %vm1859, %v2627, 0
    %v2645 = vsel %vm1859, %v2628, 0
    %v2648 = vsel %vm1859, %v2629, 0
    %v2651 = vsel %vm1859, %v2630, 0
    %v2654 = vsel %vm1859, %v2631, 0
    %v2657 = vsel %vm1859, %v2632, 0
    %2659 = vmatprep.subr.mxu0 0.0
    %2660 = vmatpush1.msra.mxu0 0.0
    %2661 = vmatprep.subr.mxu0 0.0
    %2662 = vmatpush1.msra.mxu0 0.0
    %2663 = vmatprep.subr.mxu0 0.0
    %2664 = vmatpush1.msra.mxu0 0.0
    %2665 = vmatprep.subr.mxu0 0.0
    %2666 = vmatpush1.msra.mxu0 0.0
    %2667 = vmatprep.subr.mxu0 0.0
    %2668 = vmatpush1.msra.mxu0 0.0
    %2669 = vmatprep.subr.mxu0 0.0
    %2670 = vmatpush1.msra.mxu0 0.0
    %2671 = vmatprep.subr.mxu0 0.0
    %2672 = vmatpush1.msra.mxu0 0.0
    %2673 = vmatprep.subr.mxu0 0.0
    %2674 = vmatpush1.msra.mxu0 0.0
    %2675 = vmatprep.subr.mxu0 0.0
    %2676 = vmatpush1.msra.mxu0 0.0
    %2677 = vmatprep.subr.mxu0 0.0
    %2678 = vmatpush1.msra.mxu0 0.0
    %2679 = vmatprep.subr.mxu0 0.0
    %2680 = vmatpush1.msra.mxu0 0.0
    %2681 = vmatprep.subr.mxu0 0.0
    %2682 = vmatpush1.msra.mxu0 0.0
    %2683 = vmatprep.subr.mxu0 0.0
    %2684 = vmatpush1.msra.mxu0 0.0
    %2685 = vmatprep.subr.mxu0 0.0
    %2686 = vmatpush1.msra.mxu0 0.0
    %2687 = vmatprep.subr.mxu0 0.0
    %2688 = vmatpush1.msra.mxu0 0.0
    %2689 = vmatprep.subr.mxu0 0.0
    %2690 = vmatpush1.msra.mxu0 %v2634
    %2691 = vmatprep.subr.mxu0 0.0
    %2692 = vmatpush2.msra.mxu0 0.0
    %2693 = vmatprep.subr.mxu0 0.0
    %2694 = vmatpush2.msra.mxu0 0.0
    %2695 = vmatprep.subr.mxu0 0.0
    %2696 = vmatpush2.msra.mxu0 0.0
    %2697 = vmatprep.subr.mxu0 0.0
    %2698 = vmatpush2.msra.mxu0 0.0
    %2699 = vmatprep.subr.mxu0 0.0
    %2700 = vmatpush2.msra.mxu0 0.0
    %2701 = vmatprep.subr.mxu0 0.0
    %2702 = vmatpush2.msra.mxu0 0.0
    %2703 = vmatprep.subr.mxu0 0.0
    %2704 = vmatpush2.msra.mxu0 0.0
    %2705 = vmatprep.subr.mxu0 0.0
    %2706 = vmatpush2.msra.mxu0 0.0
    %2707 = vmatprep.subr.mxu0 0.0
    %2708 = vmatpush2.msra.mxu0 0.0
    %2709 = vmatprep.subr.mxu0 0.0
    %2710 = vmatpush2.msra.mxu0 0.0
    %2711 = vmatprep.subr.mxu0 0.0
    %2712 = vmatpush2.msra.mxu0 0.0
    %2713 = vmatprep.subr.mxu0 0.0
    %2714 = vmatpush2.msra.mxu0 0.0
    %2715 = vmatprep.subr.mxu0 0.0
    %2716 = vmatpush2.msra.mxu0 0.0
    %2717 = vmatprep.subr.mxu0 0.0
    %2718 = vmatpush2.msra.mxu0 0.0
    %2719 = vmatprep.subr.mxu0 0.0
    %2720 = vmatpush2.msra.mxu0 0.0
    %2721 = vmatprep.subr.mxu0 0.0
    %2722 = vmatpush2.msra.mxu0 0.0
    %2723 = vmatprep.mubr.f32.mxu0 0.0
    %2724 = vmatmul.mubr.f32.gmra.mxu0 %v2636
    %v2725 = vpop.f32.mrf.mxu0
    %v2726 = vadd.f32 0.0, %v2725
    %v2727 = vpop.f32.mrf.mxu0
    %2728 = vmatprep.mubr.f32.mxu0 0.0
    %2729 = vmatmul.mubr.f32.gmra.mxu0 %v2639
    %v2730 = vpop.f32.mrf.mxu0
    %v2731 = vadd.f32 0.0, %v2730
    %v2732 = vpop.f32.mrf.mxu0
    %2733 = vmatprep.mubr.f32.mxu0 0.0
    %2734 = vmatmul.mubr.f32.gmra.mxu0 %v2642
    %v2735 = vpop.f32.mrf.mxu0
    %v2736 = vadd.f32 0.0, %v2735
    %v2737 = vpop.f32.mrf.mxu0
    %2738 = vmatprep.mubr.f32.mxu0 0.0
    %2739 = vmatmul.mubr.f32.gmra.mxu0 %v2645
    %v2740 = vpop.f32.mrf.mxu0
    %v2741 = vadd.f32 0.0, %v2740
    %v2742 = vpop.f32.mrf.mxu0
    %2743 = vmatprep.mubr.f32.mxu0 0.0
    %2744 = vmatmul.mubr.f32.gmra.mxu0 %v2648
    %v2745 = vpop.f32.mrf.mxu0
    %v2746 = vadd.f32 0.0, %v2745
    %v2747 = vpop.f32.mrf.mxu0
    %2748 = vmatprep.mubr.f32.mxu0 0.0
    %2749 = vmatmul.mubr.f32.gmra.mxu0 %v2651
    %v2750 = vpop.f32.mrf.mxu0
    %v2751 = vadd.f32 0.0, %v2750
    %v2752 = vpop.f32.mrf.mxu0
    %2753 = vmatprep.mubr.f32.mxu0 0.0
    %2754 = vmatmul.mubr.f32.gmra.mxu0 %v2654
    %v2755 = vpop.f32.mrf.mxu0
    %v2756 = vadd.f32 0.0, %v2755
    %v2757 = vpop.f32.mrf.mxu0
    %2758 = vmatprep.mubr.f32.mxu0 0.0
    %2759 = vmatmul.mubr.f32.gmra.mxu0 %v2657
    %v2760 = vpop.f32.mrf.mxu0
    %v2761 = vadd.f32 0.0, %v2760
    %v2762 = vpop.f32.mrf.mxu0
    %2763 = vdwg.mxu0
    %v2764 = vadd.f32 %v2388, %v2726
    %v2765 = vadd.f32 %v2393, %v2731
    %v2766 = vadd.f32 %v2398, %v2736
    %v2767 = vadd.f32 %v2403, %v2741
    %v2768 = vadd.f32 %v2408, %v2746
    %v2769 = vadd.f32 %v2413, %v2751
    %v2770 = vadd.f32 %v2418, %v2756
    %v2771 = vadd.f32 %v2423, %v2761
    %2772 = vmatprep.subr.mxu0 0.0
    %2773 = vmatpush1.msra.mxu0 0.0
    %2774 = vmatprep.subr.mxu0 0.0
    %2775 = vmatpush1.msra.mxu0 0.0
    %2776 = vmatprep.subr.mxu0 0.0
    %2777 = vmatpush1.msra.mxu0 0.0
    %2778 = vmatprep.subr.mxu0 0.0
    %2779 = vmatpush1.msra.mxu0 0.0
    %2780 = vmatprep.subr.mxu0 0.0
    %2781 = vmatpush1.msra.mxu0 0.0
    %2782 = vmatprep.subr.mxu0 0.0
    %2783 = vmatpush1.msra.mxu0 0.0
    %2784 = vmatprep.subr.mxu0 0.0
    %2785 = vmatpush1.msra.mxu0 0.0
    %2786 = vmatprep.subr.mxu0 0.0
    %2787 = vmatpush1.msra.mxu0 0.0
    %2788 = vmatprep.subr.mxu0 0.0
    %2789 = vmatpush1.msra.mxu0 %v1744
    %2790 = vmatprep.subr.mxu0 0.0
    %2791 = vmatpush1.msra.mxu0 %v1743
    %2792 = vmatprep.subr.mxu0 0.0
    %2793 = vmatpush1.msra.mxu0 %v1742
    %2794 = vmatprep.subr.mxu0 0.0
    %2795 = vmatpush1.msra.mxu0 %v1741
    %2796 = vmatprep.subr.mxu0 0.0
    %2797 = vmatpush1.msra.mxu0 %v1740
    %2798 = vmatprep.subr.mxu0 0.0
    %2799 = vmatpush1.msra.mxu0 %v1739
    %2800 = vmatprep.subr.mxu0 0.0
    %2801 = vmatpush1.msra.mxu0 %v1738
    %2802 = vmatprep.subr.mxu0 0.0
    %2803 = vmatpush1.msra.mxu0 %v1737
    %2804 = vmatprep.subr.mxu0 0.0
    %2805 = vmatpush2.msra.mxu0 0.0
    %2806 = vmatprep.subr.mxu0 0.0
    %2807 = vmatpush2.msra.mxu0 0.0
    %2808 = vmatprep.subr.mxu0 0.0
    %2809 = vmatpush2.msra.mxu0 0.0
    %2810 = vmatprep.subr.mxu0 0.0
    %2811 = vmatpush2.msra.mxu0 0.0
    %2812 = vmatprep.subr.mxu0 0.0
    %2813 = vmatpush2.msra.mxu0 0.0
    %2814 = vmatprep.subr.mxu0 0.0
    %2815 = vmatpush2.msra.mxu0 0.0
    %2816 = vmatprep.subr.mxu0 0.0
    %2817 = vmatpush2.msra.mxu0 0.0
    %2818 = vmatprep.subr.mxu0 0.0
    %2819 = vmatpush2.msra.mxu0 0.0
    %2820 = vmatprep.subr.mxu0 0.0
    %2821 = vmatpush2.msra.mxu0 0.0
    %2822 = vmatprep.subr.mxu0 0.0
    %2823 = vmatpush2.msra.mxu0 0.0
    %2824 = vmatprep.subr.mxu0 0.0
    %2825 = vmatpush2.msra.mxu0 0.0
    %2826 = vmatprep.subr.mxu0 0.0
    %2827 = vmatpush2.msra.mxu0 0.0
    %2828 = vmatprep.subr.mxu0 0.0
    %2829 = vmatpush2.msra.mxu0 0.0
    %2830 = vmatprep.subr.mxu0 0.0
    %2831 = vmatpush2.msra.mxu0 0.0
    %2832 = vmatprep.subr.mxu0 0.0
    %2833 = vmatpush2.msra.mxu0 0.0
    %2834 = vmatprep.subr.mxu0 0.0
    %2835 = vmatpush2.msra.mxu0 0.0
    %2836 = vmatprep.mubr.f32.mxu0 0.0
    %2837 = vmatmul.mubr.f32.gmra.mxu0 %v1365
    %v2838 = vpop.f32.mrf.mxu0
    %v2839 = vadd.f32 %v1750, %v2838
    %v2840 = vpop.f32.mrf.mxu0
    %2841 = vmatprep.mubr.f32.mxu0 0.0
    %2842 = vmatmul.mubr.f32.gmra.mxu0 %v1368
    %v2843 = vpop.f32.mrf.mxu0
    %v2844 = vadd.f32 %v1750, %v2843
    %v2845 = vpop.f32.mrf.mxu0
    %2846 = vmatprep.mubr.f32.mxu0 0.0
    %2847 = vmatmul.mubr.f32.gmra.mxu0 %v1371
    %v2848 = vpop.f32.mrf.mxu0
    %v2849 = vadd.f32 %v1750, %v2848
    %v2850 = vpop.f32.mrf.mxu0
    %2851 = vmatprep.mubr.f32.mxu0 0.0
    %2852 = vmatmul.mubr.f32.gmra.mxu0 %v1374
    %v2853 = vpop.f32.mrf.mxu0
    %v2854 = vadd.f32 %v1750, %v2853
    %v2855 = vpop.f32.mrf.mxu0
    %2856 = vmatprep.mubr.f32.mxu0 0.0
    %2857 = vmatmul.mubr.f32.gmra.mxu0 %v1377
    %v2858 = vpop.f32.mrf.mxu0
    %v2859 = vadd.f32 %v1750, %v2858
    %v2860 = vpop.f32.mrf.mxu0
    %2861 = vmatprep.mubr.f32.mxu0 0.0
    %2862 = vmatmul.mubr.f32.gmra.mxu0 %v1380
    %v2863 = vpop.f32.mrf.mxu0
    %v2864 = vadd.f32 %v1750, %v2863
    %v2865 = vpop.f32.mrf.mxu0
    %2866 = vmatprep.mubr.f32.mxu0 0.0
    %2867 = vmatmul.mubr.f32.gmra.mxu0 %v1383
    %v2868 = vpop.f32.mrf.mxu0
    %v2869 = vadd.f32 %v1750, %v2868
    %v2870 = vpop.f32.mrf.mxu0
    %2871 = vmatprep.mubr.f32.mxu0 0.0
    %2872 = vmatmul.mubr.f32.gmra.mxu0 %v1386
    %v2873 = vpop.f32.mrf.mxu0
    %v2874 = vadd.f32 %v1750, %v2873
    %v2875 = vpop.f32.mrf.mxu0
    %2876 = vdwg.mxu0
    %s2877 = scalar_lea.vmem %s8, 3
    %v2878 = vld [vmem:[%s2877] sm:$0x1]
    %s2879 = scalar_lea.vmem %s9, 3
    %v2880 = vld [vmem:[%s2879] sm:$0x1]
    %v2881 = vsel %vm1859, %v2839, 0.0
    %v2882 = vsel %vm1859, %v2844, 0.0
    %v2883 = vadd.f32 %v2881, %v2882
    %v2884 = vsel %vm1859, %v2849, 0.0
    %v2885 = vadd.f32 %v2883, %v2884
    %v2886 = vsel %vm1859, %v2854, 0.0
    %v2887 = vadd.f32 %v2885, %v2886
    %v2888 = vsel %vm1859, %v2859, 0.0
    %v2889 = vadd.f32 %v2887, %v2888
    %v2890 = vsel %vm1859, %v2864, 0.0
    %v2891 = vadd.f32 %v2889, %v2890
    %v2892 = vsel %vm1859, %v2869, 0.0
    %v2893 = vadd.f32 %v2891, %v2892
    %v2894 = vsel %vm1859, %v2874, 0.0
    %v2895 = vadd.f32 %v2893, %v2894
    %v2896 = vrot.slane %v2895, 4
    %v2897 = vadd.f32 %v2895, %v2896
    %v2898 = vrot.slane %v2897, 2
    %v2899 = vadd.f32 %v2897, %v2898
    %v2900 = vrot.slane %v2899, 1
    %v2901 = vadd.f32 %v2899, %v2900
    %v2902 = vmul.f32 %v2901, %v364
    %v2903 = vsub.f32 %v2839, %v2902
    %v2904 = vsub.f32 %v2844, %v2902
    %v2905 = vsub.f32 %v2849, %v2902
    %v2906 = vsub.f32 %v2854, %v2902
    %v2907 = vsub.f32 %v2859, %v2902
    %v2908 = vsub.f32 %v2864, %v2902
    %v2909 = vsub.f32 %v2869, %v2902
    %v2910 = vsub.f32 %v2874, %v2902
    %v2911 = vmul.f32 %v2903, %v2903
    %v2912 = vmul.f32 %v2904, %v2904
    %v2913 = vmul.f32 %v2905, %v2905
    %v2914 = vmul.f32 %v2906, %v2906
    %v2915 = vmul.f32 %v2907, %v2907
    %v2916 = vmul.f32 %v2908, %v2908
    %v2917 = vmul.f32 %v2909, %v2909
    %v2918 = vmul.f32 %v2910, %v2910
    %v2919 = vsel %vm1859, %v2911, 0.0
    %v2920 = vsel %vm1859, %v2912, 0.0
    %v2921 = vadd.f32 %v2919, %v2920
    %v2922 = vsel %vm1859, %v2913, 0.0
    %v2923 = vadd.f32 %v2921, %v2922
    %v2924 = vsel %vm1859, %v2914, 0.0
    %v2925 = vadd.f32 %v2923, %v2924
    %v2926 = vsel %vm1859, %v2915, 0.0
    %v2927 = vadd.f32 %v2925, %v2926
    %v2928 = vsel %vm1859, %v2916, 0.0
    %v2929 = vadd.f32 %v2927, %v2928
    %v2930 = vsel %vm1859, %v2917, 0.0
    %v2931 = vadd.f32 %v2929, %v2930
    %v2932 = vsel %vm1859, %v2918, 0.0
    %v2933 = vadd.f32 %v2931, %v2932
    %v2934 = vrot.slane %v2933, 4
    %v2935 = vadd.f32 %v2933, %v2934
    %v2936 = vrot.slane %v2935, 2
    %v2937 = vadd.f32 %v2935, %v2936
    %v2938 = vrot.slane %v2937, 1
    %v2939 = vadd.f32 %v2937, %v2938
    %v2940 = vmul.f32 %v2939, %v364
    %v2941 = vadd.f32 %v2940, 1e-05
    %v2942 = vrsqrt.pop %v2941
    %v2943 = vmul.f32 %v2903, %v2942
    %v2944 = vmul.f32 %v2904, %v2942
    %v2945 = vmul.f32 %v2905, %v2942
    %v2946 = vmul.f32 %v2906, %v2942
    %v2947 = vmul.f32 %v2907, %v2942
    %v2948 = vmul.f32 %v2908, %v2942
    %v2949 = vmul.f32 %v2909, %v2942
    %v2950 = vmul.f32 %v2910, %v2942
    %v2952 = vlaneseq
    %v2953 = vshrl.u32 %v2952, 7
    %v2954 = vsub.s32 0, %v2953
    %v2955 = vrot.slane %v2878, %v2954
    %v2957 = vmul.f32 %v2943, %v2955
    %v2958 = vmul.f32 %v2944, %v2955
    %v2959 = vmul.f32 %v2945, %v2955
    %v2960 = vmul.f32 %v2946, %v2955
    %v2961 = vmul.f32 %v2947, %v2955
    %v2962 = vmul.f32 %v2948, %v2955
    %v2963 = vmul.f32 %v2949, %v2955
    %v2964 = vmul.f32 %v2950, %v2955
    %v2966 = vlaneseq
    %v2967 = vshrl.u32 %v2966, 7
    %v2968 = vsub.s32 0, %v2967
    %v2969 = vrot.slane %v2880, %v2968
    %v2971 = vadd.f32 %v2957, %v2969
    %v2972 = vadd.f32 %v2958, %v2969
    %v2973 = vadd.f32 %v2959, %v2969
    %v2974 = vadd.f32 %v2960, %v2969
    %v2975 = vadd.f32 %v2961, %v2969
    %v2976 = vadd.f32 %v2962, %v2969
    %v2977 = vadd.f32 %v2963, %v2969
    %v2978 = vadd.f32 %v2964, %v2969
    %s2979 = scalar_lea.vmem %s10, 24
    %v2980 = vld [vmem:[%s2979] sm:$0xff]
    %v2982 = vsel %vm1859, %v2971, 0
    %v2985 = vsel %vm1859, %v2972, 0
    %v2988 = vsel %vm1859, %v2973, 0
    %v2991 = vsel %vm1859, %v2974, 0
    %v2994 = vsel %vm1859, %v2975, 0
    %v2997 = vsel %vm1859, %v2976, 0
    %v3000 = vsel %vm1859, %v2977, 0
    %v3003 = vsel %vm1859, %v2978, 0
    %3005 = vmatprep.subr.mxu0 0.0
    %3006 = vmatpush1.msra.mxu0 0.0
    %3007 = vmatprep.subr.mxu0 0.0
    %3008 = vmatpush1.msra.mxu0 0.0
    %3009 = vmatprep.subr.mxu0 0.0
    %3010 = vmatpush1.msra.mxu0 0.0
    %3011 = vmatprep.subr.mxu0 0.0
    %3012 = vmatpush1.msra.mxu0 0.0
    %3013 = vmatprep.subr.mxu0 0.0
    %3014 = vmatpush1.msra.mxu0 0.0
    %3015 = vmatprep.subr.mxu0 0.0
    %3016 = vmatpush1.msra.mxu0 0.0
    %3017 = vmatprep.subr.mxu0 0.0
    %3018 = vmatpush1.msra.mxu0 0.0
    %3019 = vmatprep.subr.mxu0 0.0
    %3020 = vmatpush1.msra.mxu0 0.0
    %3021 = vmatprep.subr.mxu0 0.0
    %3022 = vmatpush1.msra.mxu0 0.0
    %3023 = vmatprep.subr.mxu0 0.0
    %3024 = vmatpush1.msra.mxu0 0.0
    %3025 = vmatprep.subr.mxu0 0.0
    %3026 = vmatpush1.msra.mxu0 0.0
    %3027 = vmatprep.subr.mxu0 0.0
    %3028 = vmatpush1.msra.mxu0 0.0
    %3029 = vmatprep.subr.mxu0 0.0
    %3030 = vmatpush1.msra.mxu0 0.0
    %3031 = vmatprep.subr.mxu0 0.0
    %3032 = vmatpush1.msra.mxu0 0.0
    %3033 = vmatprep.subr.mxu0 0.0
    %3034 = vmatpush1.msra.mxu0 0.0
    %3035 = vmatprep.subr.mxu0 0.0
    %3036 = vmatpush1.msra.mxu0 %v2980
    %3037 = vmatprep.subr.mxu0 0.0
    %3038 = vmatpush2.msra.mxu0 0.0
    %3039 = vmatprep.subr.mxu0 0.0
    %3040 = vmatpush2.msra.mxu0 0.0
    %3041 = vmatprep.subr.mxu0 0.0
    %3042 = vmatpush2.msra.mxu0 0.0
    %3043 = vmatprep.subr.mxu0 0.0
    %3044 = vmatpush2.msra.mxu0 0.0
    %3045 = vmatprep.subr.mxu0 0.0
    %3046 = vmatpush2.msra.mxu0 0.0
    %3047 = vmatprep.subr.mxu0 0.0
    %3048 = vmatpush2.msra.mxu0 0.0
    %3049 = vmatprep.subr.mxu0 0.0
    %3050 = vmatpush2.msra.mxu0 0.0
    %3051 = vmatprep.subr.mxu0 0.0
    %3052 = vmatpush2.msra.mxu0 0.0
    %3053 = vmatprep.subr.mxu0 0.0
    %3054 = vmatpush2.msra.mxu0 0.0
    %3055 = vmatprep.subr.mxu0 0.0
    %3056 = vmatpush2.msra.mxu0 0.0
    %3057 = vmatprep.subr.mxu0 0.0
    %3058 = vmatpush2.msra.mxu0 0.0
    %3059 = vmatprep.subr.mxu0 0.0
    %3060 = vmatpush2.msra.mxu0 0.0
    %3061 = vmatprep.subr.mxu0 0.0
    %3062 = vmatpush2.msra.mxu0 0.0
    %3063 = vmatprep.subr.mxu0 0.0
    %3064 = vmatpush2.msra.mxu0 0.0
    %3065 = vmatprep.subr.mxu0 0.0
    %3066 = vmatpush2.msra.mxu0 0.0
    %3067 = vmatprep.subr.mxu0 0.0
    %3068 = vmatpush2.msra.mxu0 0.0
    %3069 = vmatprep.mubr.f32.mxu0 0.0
    %3070 = vmatmul.mubr.f32.gmra.mxu0 %v2982
    %v3071 = vpop.f32.mrf.mxu0
    %v3072 = vadd.f32 0.0, %v3071
    %v3073 = vpop.f32.mrf.mxu0
    %3074 = vmatprep.mubr.f32.mxu0 0.0
    %3075 = vmatmul.mubr.f32.gmra.mxu0 %v2985
    %v3076 = vpop.f32.mrf.mxu0
    %v3077 = vadd.f32 0.0, %v3076
    %v3078 = vpop.f32.mrf.mxu0
    %3079 = vmatprep.mubr.f32.mxu0 0.0
    %3080 = vmatmul.mubr.f32.gmra.mxu0 %v2988
    %v3081 = vpop.f32.mrf.mxu0
    %v3082 = vadd.f32 0.0, %v3081
    %v3083 = vpop.f32.mrf.mxu0
    %3084 = vmatprep.mubr.f32.mxu0 0.0
    %3085 = vmatmul.mubr.f32.gmra.mxu0 %v2991
    %v3086 = vpop.f32.mrf.mxu0
    %v3087 = vadd.f32 0.0, %v3086
    %v3088 = vpop.f32.mrf.mxu0
    %3089 = vmatprep.mubr.f32.mxu0 0.0
    %3090 = vmatmul.mubr.f32.gmra.mxu0 %v2994
    %v3091 = vpop.f32.mrf.mxu0
    %v3092 = vadd.f32 0.0, %v3091
    %v3093 = vpop.f32.mrf.mxu0
    %3094 = vmatprep.mubr.f32.mxu0 0.0
    %3095 = vmatmul.mubr.f32.gmra.mxu0 %v2997
    %v3096 = vpop.f32.mrf.mxu0
    %v3097 = vadd.f32 0.0, %v3096
    %v3098 = vpop.f32.mrf.mxu0
    %3099 = vmatprep.mubr.f32.mxu0 0.0
    %3100 = vmatmul.mubr.f32.gmra.mxu0 %v3000
    %v3101 = vpop.f32.mrf.mxu0
    %v3102 = vadd.f32 0.0, %v3101
    %v3103 = vpop.f32.mrf.mxu0
    %3104 = vmatprep.mubr.f32.mxu0 0.0
    %3105 = vmatmul.mubr.f32.gmra.mxu0 %v3003
    %v3106 = vpop.f32.mrf.mxu0
    %v3107 = vadd.f32 0.0, %v3106
    %v3108 = vpop.f32.mrf.mxu0
    %3109 = vdwg.mxu0
    %v3110 = vadd.f32 %v2764, %v3072
    %v3111 = vadd.f32 %v2765, %v3077
    %v3112 = vadd.f32 %v2766, %v3082
    %v3113 = vadd.f32 %v2767, %v3087
    %v3114 = vadd.f32 %v2768, %v3092
    %v3115 = vadd.f32 %v2769, %v3097
    %v3116 = vadd.f32 %v2770, %v3102
    %v3117 = vadd.f32 %v2771, %v3107
    %v3118 = vld [vmem:[%s11] sm:$0x1]
    %v3120 = vlaneseq
    %v3121 = vshrl.u32 %v3120, 7
    %v3122 = vsub.s32 0, %v3121
    %v3123 = vrot.slane %v3118, %v3122
    %v3125 = vadd.f32 %v3110, %v3123
    %v3126 = vadd.f32 %v3111, %v3123
    %v3127 = vadd.f32 %v3112, %v3123
    %v3128 = vadd.f32 %v3113, %v3123
    %v3129 = vadd.f32 %v3114, %v3123
    %v3130 = vadd.f32 %v3115, %v3123
    %v3131 = vadd.f32 %v3116, %v3123
    %v3132 = vadd.f32 %v3117, %v3123
    %3133 = vst.msk [vmem:[%s12] sm:$0xff] %vm1859, %v3125
    %3134 = vst.msk [vmem:[%s12 + $0x8] sm:$0xff] %vm1859, %v3126
    %3135 = vst.msk [vmem:[%s12 + $0x10] sm:$0xff] %vm1859, %v3127
    %3136 = vst.msk [vmem:[%s12 + $0x18] sm:$0xff] %vm1859, %v3128
    %3137 = vst.msk [vmem:[%s12 + $0x20] sm:$0xff] %vm1859, %v3129
    %3138 = vst.msk [vmem:[%s12 + $0x28] sm:$0xff] %vm1859, %v3130
    %3139 = vst.msk [vmem:[%s12 + $0x30] sm:$0xff] %vm1859, %v3131
    %3140 = vst.msk [vmem:[%s12 + $0x38] sm:$0xff] %vm1859, %v3132
    // Predicated region
    $region54: #{tpu_custom_call.1} parent=1 // pred_check
      _
    $region55: #{tpu_custom_call.1} parent=1 // pred_check_branch
      %3142 = sbr.rel (0) target = $region57
    $region56: #{tpu_custom_call.1} parent=1 // pred_region
      _
    $region57: #{tpu_custom_call.1} parent=1 // pred_fallthru
      _
    // Predicated region
    $region58: #{tpu_custom_call.1} parent=1 // pred_check
      _
    $region59: #{tpu_custom_call.1} parent=1 // pred_check_branch
      %3144 = sbr.rel (0) target = $region61
    $region60: #{tpu_custom_call.1} parent=1 // pred_region
      _
    $region61: #{tpu_custom_call.1} parent=1 // pred_fallthru
      _
    %3145 = vsyncpa [#allocation3], 1

</llo_original>
